<compile_context>
chip_gen: v7x
topology: tpu7x:2x2x1
jax: 0.10.0
libtpu: 0.0.40
codegen_flags: <defaults>
</compile_context>

<pallas_src>
import jax
import jax.numpy as jnp
from jax.experimental import pallas as pl
from jax.experimental.pallas import tpu as pltpu

HIDDEN = 512
_LANE = 256                        # tile granularity: MXU-friendly v6e/v7x, 2x128 lanes v5e
_VMEM_BUDGET = 28 * 1024 * 1024    # per-step budget, sized for v7x's 64 MiB/TC VMEM


def _cdiv(a, b):
    return (a + b - 1) // b


def _vmem_bytes(tile, c_in):
    """Conservative per-step VMEM footprint estimate for a given pixel tile."""
    # double-buffered input / output blocks (f32)
    blocks = 2 * (c_in * tile * 4 + 1 * tile * 4)
    # weights + biases; constant index_maps -> fetched once, but the pipeline
    # still allocates two buffers, so count both (instead of a Buffered(1) override)
    weights = 2 * (HIDDEN * c_in * 2 + HIDDEN * HIDDEN * 2 + HIDDEN * 2
                   + (2 * HIDDEN + 1) * 4)
    # in-kernel intermediates: bf16 x, two f32 h's + their bf16 casts (generous)
    interm = tile * (2 * c_in + 12 * HIDDEN + 8)
    return blocks + weights + interm


def _pick_tiling(HW, N, C, tile_hw):
    """Balanced 256-aligned tiling: minimize padding, cap VMEM, >=2 grid steps."""
    chunks = _cdiv(HW, _LANE)
    # cap chunks-per-tile by user request and by the VMEM budget
    max_cpt = max(1, min(tile_hw // _LANE, chunks))
    while max_cpt > 1 and _vmem_bytes(max_cpt * _LANE, C) > _VMEM_BUDGET:
        max_cpt -= 1
    # v7x has 2 TensorCores; make sure the parallel grid has >= 2 steps
    # (no-op on v5e/v6e, and when N >= 2 the batch axis already provides them).
    min_tiles = 1 if N >= 2 else min(2, chunks)
    best = None
    for cpt in range(max_cpt, 0, -1):
        n = _cdiv(chunks, cpt)
        if n < min_tiles:
            continue
        key = (n * cpt - chunks, -cpt)   # minimize padding, then prefer fewer steps
        if best is None or key < best[0]:
            best = (key, cpt, n)
    cpt, num_tiles = best[1], best[2]
    return cpt * _LANE, num_tiles


def _local_disc_kernel(x_ref, w0_ref, b0_ref, w1_ref, b1_ref, w2_ref, b2_ref, o_ref):
    # x_ref: (C_in, T) channel-major pixel tile (f32)
    # w0: (512, C_in) bf16, w1: (512, 512) bf16, w2: (1, 512) bf16
    # b0/b1: (512, 1) f32, b2: (1, 1) f32, o_ref: (1, T) f32
    x = x_ref[...].astype(jnp.bfloat16)

    # Layer 0: bias + ReLU + bf16 cast fused into one expression so only the
    # bf16 activation is materialized (keeps v5e's single store slot unbound).
    h = jnp.dot(w0_ref[...], x, preferred_element_type=jnp.float32)
    h = jnp.maximum(h + b0_ref[...], 0.0).astype(jnp.bfloat16)

    # Layer 1 (dominant 512x512 matmul), same fused epilogue.
    h = jnp.dot(w1_ref[...], h, preferred_element_type=jnp.float32)
    h = jnp.maximum(h + b1_ref[...], 0.0).astype(jnp.bfloat16)

    # Layer 2: 1-channel output, f32.
    out = jnp.dot(w2_ref[...], h, preferred_element_type=jnp.float32)
    o_ref[...] = (out + b2_ref[...]).astype(o_ref.dtype)


def local_discriminator_forward(x_nchw, params, *, tile_hw=2048):
    """x_nchw: (N, C_in, H, W) float32. Returns (N, 1, H, W) float32."""
    w0, b0, w1, b1, w2, b2 = params
    N, C, H, W = x_nchw.shape
    HW = H * W

    # Flatten spatial dims; stay channel-major (no transposes needed).
    x_flat = x_nchw.reshape(N, C, HW)

    tile, num_tiles = _pick_tiling(HW, N, C, tile_hw)
    HW_pad = tile * num_tiles
    if HW_pad != HW:
        x_flat = jnp.pad(x_flat, ((0, 0), (0, 0), (0, HW_pad - HW)))

    # bf16 weights for the MXU; biases and accumulation stay f32.
    w0b = w0.astype(jnp.bfloat16)
    w1b = w1.astype(jnp.bfloat16)
    w2b = w2.astype(jnp.bfloat16)

    weight_bytes = (w0b.size + w1b.size + w2b.size) * 2 \
                   + (b0.size + b1.size + b2.size) * 4
    cost = pl.CostEstimate(
        flops=2 * N * HW_pad * HIDDEN * (C + HIDDEN + 1),
        transcendentals=0,
        bytes_accessed=N * HW_pad * (C + 1) * 4 + weight_bytes,
    )

    vmem_limit = int(min(max(_vmem_bytes(tile, C) + (8 << 20), 24 << 20), 40 << 20))

    grid = (N, num_tiles)

    out = pl.pallas_call(
        _local_disc_kernel,
        out_shape=jax.ShapeDtypeStruct((N, 1, HW_pad), jnp.float32),
        grid_spec=pltpu.PrefetchScalarGridSpec(
            num_scalar_prefetch=0,
            grid=grid,
            in_specs=[
                pl.BlockSpec((None, C, tile), lambda n, i: (n, 0, i)),   # x tile
                pl.BlockSpec((HIDDEN, C), lambda n, i: (0, 0)),          # w0
                pl.BlockSpec((HIDDEN, 1), lambda n, i: (0, 0)),          # b0
                pl.BlockSpec((HIDDEN, HIDDEN), lambda n, i: (0, 0)),     # w1
                pl.BlockSpec((HIDDEN, 1), lambda n, i: (0, 0)),          # b1
                pl.BlockSpec((1, HIDDEN), lambda n, i: (0, 0)),          # w2
                pl.BlockSpec((1, 1), lambda n, i: (0, 0)),               # b2
            ],
            out_specs=pl.BlockSpec((None, 1, tile), lambda n, i: (n, 0, i)),
        ),
        compiler_params=pltpu.CompilerParams(
            dimension_semantics=("parallel", "parallel"),
            vmem_limit_bytes=vmem_limit,
        ),
        cost_estimate=cost,
    )(x_flat, w0b, b0, w1b, b1, w2b, b2)

    if HW_pad != HW:
        out = out[:, :, :HW]   # drop spatial padding (not computed downstream)
    return out.reshape(N, 1, H, W)


def init_params(key, in_channels):
    k0, k1, k2, k3, k4, k5 = jax.random.split(key, 6)
    s0 = 1.0 / jnp.sqrt(in_channels)
    s1 = 1.0 / jnp.sqrt(HIDDEN)
    # Conv2d(k=1) weights stored channel-major: (C_out, C_in); biases (C_out, 1).
    w0 = jax.random.uniform(k0, (HIDDEN, in_channels), jnp.float32, -s0, s0)
    b0 = jax.random.uniform(k1, (HIDDEN, 1), jnp.float32, -s0, s0)
    w1 = jax.random.uniform(k2, (HIDDEN, HIDDEN), jnp.float32, -s1, s1)
    b1 = jax.random.uniform(k3, (HIDDEN, 1), jnp.float32, -s1, s1)
    w2 = jax.random.uniform(k4, (1, HIDDEN), jnp.float32, -s1, s1)
    b2 = jax.random.uniform(k5, (1, 1), jnp.float32, -s1, s1)
    return (w0, b0, w1, b1, w2, b2)


def _reference_forward_f32(x_nchw, params):
    """Pure-JAX f32 reference (exact semantics of the PyTorch module)."""
    w0, b0, w1, b1, w2, b2 = params
    N, C, H, W = x_nchw.shape
    xf = x_nchw.reshape(N, C, H * W)
    h = jnp.maximum(jnp.einsum("oc,ncp->nop", w0, xf) + b0[None], 0.0)
    h = jnp.maximum(jnp.einsum("oc,ncp->nop", w1, h) + b1[None], 0.0)
    y = jnp.einsum("oc,ncp->nop", w2, h) + b2[None]
    return y.reshape(N, 1, H, W)


def _reference_forward_bf16(x_nchw, params):
    """Pure-JAX reference using the same bf16-input / f32-accum math as the kernel."""
    w0, b0, w1, b1, w2, b2 = params
    w0, w1, w2 = (w.astype(jnp.bfloat16) for w in (w0, w1, w2))
    N, C, H, W = x_nchw.shape
    xf = x_nchw.reshape(N, C, H * W).astype(jnp.bfloat16)
    h = jnp.einsum("oc,ncp->nop", w0, xf, preferred_element_type=jnp.float32) + b0[None]
    h = jnp.maximum(h, 0.0)
    h = jnp.einsum("oc,ncp->nop", w1, h.astype(jnp.bfloat16),
                   preferred_element_type=jnp.float32) + b1[None]
    h = jnp.maximum(h, 0.0)
    y = jnp.einsum("oc,ncp->nop", w2, h.astype(jnp.bfloat16),
                   preferred_element_type=jnp.float32) + b2[None]
    return y.reshape(N, 1, H, W)


if __name__ == "__main__":
    key = jax.random.PRNGKey(0)
    k_x, k_p = jax.random.split(key)

    N, C_in, H, W = 2, 4, 16, 16
    x = jax.random.normal(k_x, (N, C_in, H, W), jnp.float32)
    params = init_params(k_p, C_in)

    out = jax.block_until_ready(local_discriminator_forward(x, params))
    assert out.shape == (N, 1, H, W), out.shape

    # Tight check vs. a reference doing the same bf16-in / f32-accum math.
    ref_bf16 = jax.block_until_ready(_reference_forward_bf16(x, params))
    assert jnp.allclose(out, ref_bf16, atol=5e-3, rtol=5e-3), \
        float(jnp.max(jnp.abs(out - ref_bf16)))

    # Loose sanity check vs. the exact f32 module semantics (bf16 weight cast
    # loosens bit-level parity, as expected).
    ref_f32 = jax.block_until_ready(_reference_forward_f32(x, params))
    assert jnp.allclose(out, ref_f32, atol=1e-1, rtol=1e-1), \
        float(jnp.max(jnp.abs(out - ref_f32)))

    print("KERNEL_OK")
</pallas_src>

<mosaic_0001>
module attributes {stable_mosaic.version = 11 : i64} {
  func.func @_local_disc_kernel(%arg0: i32, %arg1: i32, %arg2: memref<1x4x256xf32, #tpu.memory_space<vmem>>, %arg3: memref<512x4xbf16, #tpu.memory_space<vmem>>, %arg4: memref<512x1xf32, #tpu.memory_space<vmem>>, %arg5: memref<512x512xbf16, #tpu.memory_space<vmem>>, %arg6: memref<512x1xf32, #tpu.memory_space<vmem>>, %arg7: memref<1x512xbf16, #tpu.memory_space<vmem>>, %arg8: memref<1x1xf32, #tpu.memory_space<vmem>>, %arg9: memref<1x1x256xf32, #tpu.memory_space<vmem>>) attributes {dimension_semantics = [#tpu.dimension_semantics<parallel>, #tpu.dimension_semantics<parallel>], iteration_bounds = array<i64: 2, 1>, scalar_prefetch = 0 : i64, scratch_operands = 0 : i64, tpu.core_type = #tpu.core_type<tc>, window_params = [{transform_indices = @transform_0, window_bounds = array<i64: 1, 4, 256>}, {pipeline_mode = #tpu.pipeline_mode<synchronous>, transform_indices = @transform_1, window_bounds = array<i64: 512, 4>}, {pipeline_mode = #tpu.pipeline_mode<synchronous>, transform_indices = @transform_2, window_bounds = array<i64: 512, 1>}, {pipeline_mode = #tpu.pipeline_mode<synchronous>, transform_indices = @transform_3, window_bounds = array<i64: 512, 512>}, {pipeline_mode = #tpu.pipeline_mode<synchronous>, transform_indices = @transform_4, window_bounds = array<i64: 512, 1>}, {pipeline_mode = #tpu.pipeline_mode<synchronous>, transform_indices = @transform_5, window_bounds = array<i64: 1, 512>}, {pipeline_mode = #tpu.pipeline_mode<synchronous>, transform_indices = @transform_6, window_bounds = array<i64: 1, 1>}, {transform_indices = @transform_7, window_bounds = array<i64: 1, 1, 256>}]} {
    %c0 = arith.constant 0 : index
    %c0_0 = arith.constant 0 : index
    %c0_1 = arith.constant 0 : index
    %0 = vector.load %arg2[%c0, %c0_0, %c0_1] : memref<1x4x256xf32, #tpu.memory_space<vmem>>, vector<1x4x256xf32>
    %1 = vector.shape_cast %0 : vector<1x4x256xf32> to vector<4x256xf32>
    %2 = arith.truncf %1 : vector<4x256xf32> to vector<4x256xbf16>
    %c0_2 = arith.constant 0 : index
    %c0_3 = arith.constant 0 : index
    %3 = vector.load %arg3[%c0_2, %c0_3] : memref<512x4xbf16, #tpu.memory_space<vmem>>, vector<512x4xbf16>
    %cst = arith.constant dense<0.000000e+00> : vector<512x256xf32>
    %4 = tpu.matmul %3, %2, %cst {dimension_numbers = #tpu.dot_dimension_numbers<[1], [0], [0], [1], [0, 0, 1, 1], [], []>} : vector<512x4xbf16>, vector<4x256xbf16>, vector<512x256xf32> -> vector<512x256xf32>
    %c0_4 = arith.constant 0 : index
    %c0_5 = arith.constant 0 : index
    %5 = vector.load %arg4[%c0_4, %c0_5] : memref<512x1xf32, #tpu.memory_space<vmem>>, vector<512x1xf32>
    %6 = vector.broadcast %5 : vector<512x1xf32> to vector<512x256xf32>
    %7 = arith.addf %4, %6 : vector<512x256xf32>
    %cst_6 = arith.constant 0.000000e+00 : f32
    %8 = vector.broadcast %cst_6 : f32 to vector<512x256xf32>
    %9 = arith.maximumf %7, %8 : vector<512x256xf32>
    %10 = arith.truncf %9 : vector<512x256xf32> to vector<512x256xbf16>
    %c0_7 = arith.constant 0 : index
    %c0_8 = arith.constant 0 : index
    %11 = vector.load %arg5[%c0_7, %c0_8] : memref<512x512xbf16, #tpu.memory_space<vmem>>, vector<512x512xbf16>
    %cst_9 = arith.constant dense<0.000000e+00> : vector<512x256xf32>
    %12 = tpu.matmul %11, %10, %cst_9 {dimension_numbers = #tpu.dot_dimension_numbers<[1], [0], [0], [1], [0, 0, 1, 1], [], []>} : vector<512x512xbf16>, vector<512x256xbf16>, vector<512x256xf32> -> vector<512x256xf32>
    %c0_10 = arith.constant 0 : index
    %c0_11 = arith.constant 0 : index
    %13 = vector.load %arg6[%c0_10, %c0_11] : memref<512x1xf32, #tpu.memory_space<vmem>>, vector<512x1xf32>
    %14 = vector.broadcast %13 : vector<512x1xf32> to vector<512x256xf32>
    %15 = arith.addf %12, %14 : vector<512x256xf32>
    %cst_12 = arith.constant 0.000000e+00 : f32
    %16 = vector.broadcast %cst_12 : f32 to vector<512x256xf32>
    %17 = arith.maximumf %15, %16 : vector<512x256xf32>
    %18 = arith.truncf %17 : vector<512x256xf32> to vector<512x256xbf16>
    %c0_13 = arith.constant 0 : index
    %c0_14 = arith.constant 0 : index
    %19 = vector.load %arg7[%c0_13, %c0_14] : memref<1x512xbf16, #tpu.memory_space<vmem>>, vector<1x512xbf16>
    %cst_15 = arith.constant dense<0.000000e+00> : vector<1x256xf32>
    %20 = tpu.matmul %19, %18, %cst_15 {dimension_numbers = #tpu.dot_dimension_numbers<[1], [0], [0], [1], [0, 0, 1, 1], [], []>} : vector<1x512xbf16>, vector<512x256xbf16>, vector<1x256xf32> -> vector<1x256xf32>
    %c0_16 = arith.constant 0 : index
    %c0_17 = arith.constant 0 : index
    %21 = vector.load %arg8[%c0_16, %c0_17] : memref<1x1xf32, #tpu.memory_space<vmem>>, vector<1x1xf32>
    %22 = vector.broadcast %21 : vector<1x1xf32> to vector<1x256xf32>
    %23 = arith.addf %20, %22 : vector<1x256xf32>
    %c0_18 = arith.constant 0 : index
    %c0_19 = arith.constant 0 : index
    %c0_20 = arith.constant 0 : index
    %24 = vector.load %arg9[%c0_18, %c0_19, %c0_20] : memref<1x1x256xf32, #tpu.memory_space<vmem>>, vector<1x1x256xf32>
    %25 = vector.shape_cast %24 : vector<1x1x256xf32> to vector<1x256xf32>
    %26 = vector.shape_cast %23 : vector<1x256xf32> to vector<1x1x256xf32>
    tpu.vector_store %arg9[%c0_18, %c0_19, %c0_20], %26 {strides = array<i32>} : memref<1x1x256xf32, #tpu.memory_space<vmem>>, vector<1x1x256xf32>,
    return
  }
  func.func @transform_0(%arg0: i32, %arg1: i32) -> (i32, i32, i32) {
    %c0_i32 = arith.constant 0 : i32
    %c0_i32_0 = arith.constant 0 : i32
    return %arg0, %c0_i32, %arg1 : i32, i32, i32
  }
  func.func @transform_1(%arg0: i32, %arg1: i32) -> (i32, i32) {
    %c0_i32 = arith.constant 0 : i32
    %c0_i32_0 = arith.constant 0 : i32
    %c0_i32_1 = arith.constant 0 : i32
    return %c0_i32, %c0_i32_0 : i32, i32
  }
  func.func @transform_2(%arg0: i32, %arg1: i32) -> (i32, i32) {
    %c0_i32 = arith.constant 0 : i32
    %c0_i32_0 = arith.constant 0 : i32
    %c0_i32_1 = arith.constant 0 : i32
    return %c0_i32, %c0_i32_0 : i32, i32
  }
  func.func @transform_3(%arg0: i32, %arg1: i32) -> (i32, i32) {
    %c0_i32 = arith.constant 0 : i32
    %c0_i32_0 = arith.constant 0 : i32
    %c0_i32_1 = arith.constant 0 : i32
    return %c0_i32, %c0_i32_0 : i32, i32
  }
  func.func @transform_4(%arg0: i32, %arg1: i32) -> (i32, i32) {
    %c0_i32 = arith.constant 0 : i32
    %c0_i32_0 = arith.constant 0 : i32
    %c0_i32_1 = arith.constant 0 : i32
    return %c0_i32, %c0_i32_0 : i32, i32
  }
  func.func @transform_5(%arg0: i32, %arg1: i32) -> (i32, i32) {
    %c0_i32 = arith.constant 0 : i32
    %c0_i32_0 = arith.constant 0 : i32
    %c0_i32_1 = arith.constant 0 : i32
    return %c0_i32, %c0_i32_0 : i32, i32
  }
  func.func @transform_6(%arg0: i32, %arg1: i32) -> (i32, i32) {
    %c0_i32 = arith.constant 0 : i32
    %c0_i32_0 = arith.constant 0 : i32
    %c0_i32_1 = arith.constant 0 : i32
    return %c0_i32, %c0_i32_0 : i32, i32
  }
  func.func @transform_7(%arg0: i32, %arg1: i32) -> (i32, i32, i32) {
    %c0_i32 = arith.constant 0 : i32
    %c0_i32_0 = arith.constant 0 : i32
    return %arg0, %c0_i32, %arg1 : i32, i32, i32
  }
}

</mosaic_0001>

<llo_original>
// kernel: tpu_custom_call.1
$region0: #{tpu_custom_call.1}
  #allocation0 [shape = 'u32[]', space=smem, size = 0x4, offset = 0x4, fixed_abs, tag = 'smem constant byte address 0x4 - core index']
  #allocation1 [shape = 'u32[144,128]{1,0:T(1,128)}', space=vmem, size = 0x12000, scoped, tag = 'internal scratch']
  #allocation2 [shape = 'f32[1,1]{1,0:T(1,128)S(1)}', space=vmem, size = 0x200, scoped, tag = 'scoped memory for tpu_custom_call.1']
  %s0 = inlined_call_operand.vmem [shape: f32[2,4,256], index: 0, kind: input, shape index: {}]
  %s1 = inlined_call_operand.vmem [shape: bf16[512,4], index: 1, kind: input, shape index: {}]
  %s2 = inlined_call_operand.vmem [shape: f32[512,1], index: 2, kind: input, shape index: {}]
  %s3 = inlined_call_operand.vmem [shape: bf16[512,512], index: 3, kind: input, shape index: {}]
  %s4 = inlined_call_operand.vmem [shape: f32[512,1], index: 4, kind: input, shape index: {}]
  %s5 = inlined_call_operand.vmem [shape: bf16[1,512], index: 5, kind: input, shape index: {}]
  %s6 = inlined_call_operand.<no memory space> [shape: f32[1,1], index: 6, kind: input, shape index: {}]
  %s7 = inlined_call_operand.hbm [shape: f32[2,1,256], index: 7, kind: output, shape index: {}]
  %s8 = sld [smem:[#allocation0]]
  $region61: #{tpu_custom_call.1} parent=0
    _
  %s10 = ssub.s32 1, %s8
  %s11 = scalar_select 0, %s10, %s8
  %v12 = vstv %s6
  %13 = vst [vmem:[#allocation2] sm:$0x1] %v12
  $region1: #{tpu_custom_call.1} parent=0
    #allocation3 [shape = 'u8[2048]{0}', space=vmem, size = 0x800, scoped, tag = 'output window, operand 0']
    #allocation4 [shape = 's32[2]{0}', space=sflag, size = 0x8, scoped, tag = 'scoped memory for tpu_custom_call.1']
    %14 = vsyncpa [#allocation4], 0
    %s15 = scalar_lea.sflag [#allocation4], 1
    %16 = vsyncpa %s15, 0
    loop: start=0, step=1, limit=4
    $region2: #{tpu_custom_call.1} parent=1 // loop_pre_header
      _
    $region3: #{tpu_custom_call.1} parent=1 // loop_header
      %s18 = sphi 0, %s22
      %p19 = scmp.ge.s32.totalorder %s18, 4
      %s25 = sphi 0, %s37
      %s26 = sphi 0, %s33
      %s27 = sphi 0, %s25
      %s28 = sphi 0, %s26
      %s29 = sphi 0, %s27
      %s30 = sphi 0, %s28
      %s42 = sphi 0, %s44
      %s45 = sphi 0, %s42
      %s46 = sphi 0, %s45
      %s62 = sphi 0, %s46
      %s66 = sphi 0, %s66
      %s68 = sphi 0, %s66
      %s69 = sphi 0, %s68
      %s83 = sphi 0, %s69
      %s87 = sphi 0, %s87
      %s89 = sphi 0, %s87
      %s90 = sphi 0, %s89
      %s104 = sphi 0, %s90
      %s108 = sphi 0, %s108
      %s110 = sphi 0, %s108
      %s111 = sphi 0, %s110
      %s125 = sphi 0, %s111
      %s129 = sphi 0, %s129
      %s131 = sphi 0, %s129
      %s132 = sphi 0, %s131
      %s146 = sphi 0, %s132
      %s150 = sphi 0, %s150
      %s152 = sphi 0, %s150
      %s153 = sphi 0, %s152
      %s167 = sphi 0, %s153
      %s171 = sphi 0, %s171
      %s173 = sphi 0, %s171
      %s174 = sphi 0, %s173
      %s188 = sphi 0, %s174
      %s196 = sphi 0, %s198
      %s199 = sphi 0, %s196
      %s200 = sphi 0, %s199
      %s216 = sphi 0, %s200
    $region4: #{tpu_custom_call.1} parent=1 // loop_header_branch
      %21 = sbr.rel (%p19) target = $region8
    $region5: #{tpu_custom_call.1} parent=1 // loop_body
      %s23 = ssub.s32 %s18, 1
      %s24 = ssub.s32 %s18, 2
      %s31 = sadd.s32 1, %s26
      %p32 = scmp.ge.s32.totalorder %s31, 1
      %s33 = scalar_select %p32, 0, %s31
      %s34 = sadd.s32 1, %s25
      %s35 = scalar_select %p32, %s34, %s25
      %p36 = scmp.ge.s32.totalorder %s35, 2
      %s37 = scalar_select %p36, 0, %s35
      %s38 = ssub.s32 %s25, %s37
      %s39 = ssub.s32 %s26, %s33
      %s40 = sor.u32 %s38, %s39
      %p41 = scmp.eq.s32.totalorder %s40, 0
      %s43 = sadd.s32 %s42, 1
      %s44 = scalar_select %p41, %s42, %s43
      %p47 = pneg %p41
      %p48 = scmp.eq.s32.totalorder %s18, 1
      %p49 = por %p47, %p48
      %p50 = scmp.ne.s32.totalorder %s42, %s45
      %p51 = scmp.eq.s32.totalorder %s18, 0
      %p52 = por %p50, %p51
      %p53 = scmp.ne.s32.totalorder %s42, %s45
      %p54 = scmp.eq.s32.totalorder %s23, 1
      %p55 = por %p53, %p54
      %p56 = scmp.ne.s32.totalorder %s45, %s46
      %p57 = scmp.eq.s32.totalorder %s23, 0
      %p58 = por %p56, %p57
      %p59 = scmp.ne.s32.totalorder %s45, %s46
      %p60 = scmp.eq.s32.totalorder %s24, 1
      %p61 = por %p59, %p60
      %p63 = scmp.ne.s32.totalorder %s46, %s62
      %p64 = scmp.eq.s32.totalorder %s24, 0
      %p65 = por %p63, %p64
      %s67 = sadd.s32 %s66, 1
      %p70 = scmp.eq.s32.totalorder %s18, 1
      %p71 = scmp.ne.s32.totalorder %s66, %s68
      %p72 = scmp.eq.s32.totalorder %s18, 0
      %p73 = por %p71, %p72
      %p74 = scmp.ne.s32.totalorder %s66, %s68
      %p75 = scmp.eq.s32.totalorder %s23, 1
      %p76 = por %p74, %p75
      %p77 = scmp.ne.s32.totalorder %s68, %s69
      %p78 = scmp.eq.s32.totalorder %s23, 0
      %p79 = por %p77, %p78
      %p80 = scmp.ne.s32.totalorder %s68, %s69
      %p81 = scmp.eq.s32.totalorder %s24, 1
      %p82 = por %p80, %p81
      %p84 = scmp.ne.s32.totalorder %s69, %s83
      %p85 = scmp.eq.s32.totalorder %s24, 0
      %p86 = por %p84, %p85
      %s88 = sadd.s32 %s87, 1
      %p91 = scmp.eq.s32.totalorder %s18, 1
      %p92 = scmp.ne.s32.totalorder %s87, %s89
      %p93 = scmp.eq.s32.totalorder %s18, 0
      %p94 = por %p92, %p93
      %p95 = scmp.ne.s32.totalorder %s87, %s89
      %p96 = scmp.eq.s32.totalorder %s23, 1
      %p97 = por %p95, %p96
      %p98 = scmp.ne.s32.totalorder %s89, %s90
      %p99 = scmp.eq.s32.totalorder %s23, 0
      %p100 = por %p98, %p99
      %p101 = scmp.ne.s32.totalorder %s89, %s90
      %p102 = scmp.eq.s32.totalorder %s24, 1
      %p103 = por %p101, %p102
      %p105 = scmp.ne.s32.totalorder %s90, %s104
      %p106 = scmp.eq.s32.totalorder %s24, 0
      %p107 = por %p105, %p106
      %s109 = sadd.s32 %s108, 1
      %p112 = scmp.eq.s32.totalorder %s18, 1
      %p113 = scmp.ne.s32.totalorder %s108, %s110
      %p114 = scmp.eq.s32.totalorder %s18, 0
      %p115 = por %p113, %p114
      %p116 = scmp.ne.s32.totalorder %s108, %s110
      %p117 = scmp.eq.s32.totalorder %s23, 1
      %p118 = por %p116, %p117
      %p119 = scmp.ne.s32.totalorder %s110, %s111
      %p120 = scmp.eq.s32.totalorder %s23, 0
      %p121 = por %p119, %p120
      %p122 = scmp.ne.s32.totalorder %s110, %s111
      %p123 = scmp.eq.s32.totalorder %s24, 1
      %p124 = por %p122, %p123
      %p126 = scmp.ne.s32.totalorder %s111, %s125
      %p127 = scmp.eq.s32.totalorder %s24, 0
      %p128 = por %p126, %p127
      %s130 = sadd.s32 %s129, 1
      %p133 = scmp.eq.s32.totalorder %s18, 1
      %p134 = scmp.ne.s32.totalorder %s129, %s131
      %p135 = scmp.eq.s32.totalorder %s18, 0
      %p136 = por %p134, %p135
      %p137 = scmp.ne.s32.totalorder %s129, %s131
      %p138 = scmp.eq.s32.totalorder %s23, 1
      %p139 = por %p137, %p138
      %p140 = scmp.ne.s32.totalorder %s131, %s132
      %p141 = scmp.eq.s32.totalorder %s23, 0
      %p142 = por %p140, %p141
      %p143 = scmp.ne.s32.totalorder %s131, %s132
      %p144 = scmp.eq.s32.totalorder %s24, 1
      %p145 = por %p143, %p144
      %p147 = scmp.ne.s32.totalorder %s132, %s146
      %p148 = scmp.eq.s32.totalorder %s24, 0
      %p149 = por %p147, %p148
      %s151 = sadd.s32 %s150, 1
      %p154 = scmp.eq.s32.totalorder %s18, 1
      %p155 = scmp.ne.s32.totalorder %s150, %s152
      %p156 = scmp.eq.s32.totalorder %s18, 0
      %p157 = por %p155, %p156
      %p158 = scmp.ne.s32.totalorder %s150, %s152
      %p159 = scmp.eq.s32.totalorder %s23, 1
      %p160 = por %p158, %p159
      %p161 = scmp.ne.s32.totalorder %s152, %s153
      %p162 = scmp.eq.s32.totalorder %s23, 0
      %p163 = por %p161, %p162
      %p164 = scmp.ne.s32.totalorder %s152, %s153
      %p165 = scmp.eq.s32.totalorder %s24, 1
      %p166 = por %p164, %p165
      %p168 = scmp.ne.s32.totalorder %s153, %s167
      %p169 = scmp.eq.s32.totalorder %s24, 0
      %p170 = por %p168, %p169
      %s172 = sadd.s32 %s171, 1
      %p175 = scmp.eq.s32.totalorder %s18, 1
      %p176 = scmp.ne.s32.totalorder %s171, %s173
      %p177 = scmp.eq.s32.totalorder %s18, 0
      %p178 = por %p176, %p177
      %p179 = scmp.ne.s32.totalorder %s171, %s173
      %p180 = scmp.eq.s32.totalorder %s23, 1
      %p181 = por %p179, %p180
      %p182 = scmp.ne.s32.totalorder %s173, %s174
      %p183 = scmp.eq.s32.totalorder %s23, 0
      %p184 = por %p182, %p183
      %p185 = scmp.ne.s32.totalorder %s173, %s174
      %p186 = scmp.eq.s32.totalorder %s24, 1
      %p187 = por %p185, %p186
      %p189 = scmp.ne.s32.totalorder %s174, %s188
      %p190 = scmp.eq.s32.totalorder %s24, 0
      %p191 = por %p189, %p190
      %s192 = ssub.s32 %s25, %s37
      %s193 = ssub.s32 %s26, %s33
      %s194 = sor.u32 %s192, %s193
      %p195 = scmp.eq.s32.totalorder %s194, 0
      %s197 = sadd.s32 %s196, 1
      %s198 = scalar_select %p195, %s196, %s197
      %p201 = pneg %p195
      %p202 = scmp.eq.s32.totalorder %s18, 1
      %p203 = por %p201, %p202
      %p204 = scmp.ne.s32.totalorder %s196, %s199
      %p205 = scmp.eq.s32.totalorder %s18, 0
      %p206 = por %p204, %p205
      %p207 = scmp.ne.s32.totalorder %s196, %s199
      %p208 = scmp.eq.s32.totalorder %s23, 1
      %p209 = por %p207, %p208
      %p210 = scmp.ne.s32.totalorder %s199, %s200
      %p211 = scmp.eq.s32.totalorder %s23, 0
      %p212 = por %p210, %p211
      %p213 = scmp.ne.s32.totalorder %s199, %s200
      %p214 = scmp.eq.s32.totalorder %s24, 1
      %p215 = por %p213, %p214
      %p217 = scmp.ne.s32.totalorder %s200, %s216
      %p218 = scmp.eq.s32.totalorder %s24, 0
      %p219 = por %p217, %p218
      %p220 = scmp.le.s32.totalorder 1, %s18
      %p221 = scmp.lt.s32.totalorder %s18, 3
      %p222 = pnand %p220, %p221
      %p223 = pneg %p222
      // Predicated region
      $region9: #{tpu_custom_call.1} parent=5 // pred_check
        _
      $region10: #{tpu_custom_call.1} parent=5 // pred_check_branch
        %225 = sbr.rel (%p222) target = $region12
      $region11: #{tpu_custom_call.1} parent=5 // pred_region
        %s226 = ssub.s32 %s18, 1
        // Predicated region
        $region13: #{tpu_custom_call.1} parent=11 // pred_check
          %p227 = pneg %p79
        $region14: #{tpu_custom_call.1} parent=11 // pred_check_branch
          %229 = sbr.rel (%p227) target = $region16
        $region15: #{tpu_custom_call.1} parent=11 // pred_region
          _
        $region16: #{tpu_custom_call.1} parent=11 // pred_fallthru
          _
        // Predicated region
        $region17: #{tpu_custom_call.1} parent=11 // pred_check
          %p230 = pneg %p100
        $region18: #{tpu_custom_call.1} parent=11 // pred_check_branch
          %232 = sbr.rel (%p230) target = $region20
        $region19: #{tpu_custom_call.1} parent=11 // pred_region
          _
        $region20: #{tpu_custom_call.1} parent=11 // pred_fallthru
          _
        // Predicated region
        $region21: #{tpu_custom_call.1} parent=11 // pred_check
          %p233 = pneg %p121
        $region22: #{tpu_custom_call.1} parent=11 // pred_check_branch
          %235 = sbr.rel (%p233) target = $region24
        $region23: #{tpu_custom_call.1} parent=11 // pred_region
          _
        $region24: #{tpu_custom_call.1} parent=11 // pred_fallthru
          _
        // Predicated region
        $region25: #{tpu_custom_call.1} parent=11 // pred_check
          %p236 = pneg %p142
        $region26: #{tpu_custom_call.1} parent=11 // pred_check_branch
          %238 = sbr.rel (%p236) target = $region28
        $region27: #{tpu_custom_call.1} parent=11 // pred_region
          _
        $region28: #{tpu_custom_call.1} parent=11 // pred_fallthru
          _
        // Predicated region
        $region29: #{tpu_custom_call.1} parent=11 // pred_check
          %p239 = pneg %p163
        $region30: #{tpu_custom_call.1} parent=11 // pred_check_branch
          %241 = sbr.rel (%p239) target = $region32
        $region31: #{tpu_custom_call.1} parent=11 // pred_region
          _
        $region32: #{tpu_custom_call.1} parent=11 // pred_fallthru
          _
        // Predicated region
        $region33: #{tpu_custom_call.1} parent=11 // pred_check
          %p242 = pneg %p184
        $region34: #{tpu_custom_call.1} parent=11 // pred_check_branch
          %244 = sbr.rel (%p242) target = $region36
        $region35: #{tpu_custom_call.1} parent=11 // pred_region
          _
        $region36: #{tpu_custom_call.1} parent=11 // pred_fallthru
          _
      $region12: #{tpu_custom_call.1} parent=5 // pred_fallthru
        _
      %p245 = scmp.lt.s32.totalorder %s18, 2
      // Predicated region
      $region37: #{tpu_custom_call.1} parent=5 // pred_check
        %p246 = pneg %p245
      $region38: #{tpu_custom_call.1} parent=5 // pred_check_branch
        %248 = sbr.rel (%p246) target = $region40
      $region39: #{tpu_custom_call.1} parent=5 // pred_region
        // Predicated region
        $region41: #{tpu_custom_call.1} parent=39 // pred_check
          %p249 = pneg %p52
        $region42: #{tpu_custom_call.1} parent=39 // pred_check_branch
          %251 = sbr.rel (%p249) target = $region44
        $region43: #{tpu_custom_call.1} parent=39 // pred_region
          %s252 = smul.u32 2, %s26
          %p253 = scmp.lt.s32.totalorder %s25, 1
          %s254 = scalar_select %p253, %s25, 1
          %p255 = scmp.lt.s32.totalorder %s252, 1
          %s256 = scalar_select %p255, %s252, 1
          %s257 = smul.addr %s254, 2
          %s258 = sadd.s32 %s256, %s257
          %s259 = smul.addr %s258, 4
          %s260 = scalar_lea.vmem %s0, %s259
          %s261 = smul.u32 2, %s26
        $region44: #{tpu_custom_call.1} parent=39 // pred_fallthru
          _
      $region40: #{tpu_custom_call.1} parent=5 // pred_fallthru
        _
      %p262 = scmp.le.s32.totalorder 1, %s18
      %p263 = scmp.lt.s32.totalorder %s18, 3
      %p264 = pnand %p262, %p263
      %p265 = pneg %p264
      // Predicated region
      $region45: #{tpu_custom_call.1} parent=5 // pred_check
        _
      $region46: #{tpu_custom_call.1} parent=5 // pred_check_branch
        %267 = sbr.rel (%p264) target = $region48
      $region47: #{tpu_custom_call.1} parent=5 // pred_region
        %s268 = ssub.s32 %s18, 1
        %s269 = smul.u32 2, %s28
        %p270 = scmp.lt.s32.totalorder %s27, 1
        %s271 = scalar_select %p270, %s27, 1
        %p272 = scmp.lt.s32.totalorder %s269, 1
        %s273 = scalar_select %p272, %s269, 1
        %s274 = smul.addr %s271, 2
        %s275 = sadd.s32 %s273, %s274
        %s276 = smul.addr %s275, 4
        %s277 = scalar_lea.vmem %s0, %s276
        %p278 = pneg %p58
        %p279 = pneg %p55
        %p280 = pneg %p79
        %p281 = pneg %p76
        %p282 = pneg %p100
        %p283 = pneg %p97
        %p284 = pneg %p121
        %p285 = pneg %p118
        %p286 = pneg %p142
        %p287 = pneg %p139
        %p288 = pneg %p163
        %p289 = pneg %p160
        %p290 = pneg %p184
        %p291 = pneg %p181
        %p292 = pneg %p212
        %p293 = pneg %p209
        %s294 = sand.u32 %s199, 1
        %s295 = scalar_lea.sflag [#allocation4], %s294
        %s296 = sand.u32 %s199, 1
        %s297 = smul.addr %s296, 2
        %s298 = scalar_lea.vmem [#allocation3], %s297
        %s299 = smul.u32 2, %s28
        %p300 = scmp.lt.s32.totalorder %s27, 1
        %s301 = scalar_select %p300, %s27, 1
        %p302 = scmp.lt.s32.totalorder %s299, 1
        %s303 = scalar_select %p302, %s299, 1
        %s304 = smul.addr %s301, 2
        %s305 = sadd.s32 %s303, %s304
        %s306 = smul.addr %s305, 4
        %s307 = scalar_lea.vmem %s0, %s306
        %s308 = smul.u32 2, %s28
        %s309 = smul.u32 2, %s28
        %v311 = vld [vmem:[%s307] sm:$0xff]
        %v313 = vcombine.high %v311, %v311
        %v315 = vpack.c.bf16 %v311, %v311
        %v316 = vpack.c.bf16 %v313, %v313
        %v317 = vld [vmem:[%s1] sm:$0xf]
        %v318 = vld [vmem:[%s1 + $0x4] sm:$0xf]
        %v319 = vld [vmem:[%s1 + $0x8] sm:$0xf]
        %v320 = vld [vmem:[%s1 + $0xc] sm:$0xf]
        %v321 = vld [vmem:[%s1 + $0x10] sm:$0xf]
        %v322 = vld [vmem:[%s1 + $0x14] sm:$0xf]
        %v323 = vld [vmem:[%s1 + $0x18] sm:$0xf]
        %v324 = vld [vmem:[%s1 + $0x1c] sm:$0xf]
        %v325 = vld [vmem:[%s1 + $0x20] sm:$0xf]
        %v326 = vld [vmem:[%s1 + $0x24] sm:$0xf]
        %v327 = vld [vmem:[%s1 + $0x28] sm:$0xf]
        %v328 = vld [vmem:[%s1 + $0x2c] sm:$0xf]
        %v329 = vld [vmem:[%s1 + $0x30] sm:$0xf]
        %v330 = vld [vmem:[%s1 + $0x34] sm:$0xf]
        %v331 = vld [vmem:[%s1 + $0x38] sm:$0xf]
        %v332 = vld [vmem:[%s1 + $0x3c] sm:$0xf]
        %v333 = vld [vmem:[%s1 + $0x40] sm:$0xf]
        %v334 = vld [vmem:[%s1 + $0x44] sm:$0xf]
        %v335 = vld [vmem:[%s1 + $0x48] sm:$0xf]
        %v336 = vld [vmem:[%s1 + $0x4c] sm:$0xf]
        %v337 = vld [vmem:[%s1 + $0x50] sm:$0xf]
        %v338 = vld [vmem:[%s1 + $0x54] sm:$0xf]
        %v339 = vld [vmem:[%s1 + $0x58] sm:$0xf]
        %v340 = vld [vmem:[%s1 + $0x5c] sm:$0xf]
        %v341 = vld [vmem:[%s1 + $0x60] sm:$0xf]
        %v342 = vld [vmem:[%s1 + $0x64] sm:$0xf]
        %v343 = vld [vmem:[%s1 + $0x68] sm:$0xf]
        %v344 = vld [vmem:[%s1 + $0x6c] sm:$0xf]
        %v345 = vld [vmem:[%s1 + $0x70] sm:$0xf]
        %v346 = vld [vmem:[%s1 + $0x74] sm:$0xf]
        %v347 = vld [vmem:[%s1 + $0x78] sm:$0xf]
        %v348 = vld [vmem:[%s1 + $0x7c] sm:$0xf]
        %v349 = vld [vmem:[%s1 + $0x80] sm:$0xf]
        %v350 = vld [vmem:[%s1 + $0x84] sm:$0xf]
        %v351 = vld [vmem:[%s1 + $0x88] sm:$0xf]
        %v352 = vld [vmem:[%s1 + $0x8c] sm:$0xf]
        %v353 = vld [vmem:[%s1 + $0x90] sm:$0xf]
        %v354 = vld [vmem:[%s1 + $0x94] sm:$0xf]
        %v355 = vld [vmem:[%s1 + $0x98] sm:$0xf]
        %v356 = vld [vmem:[%s1 + $0x9c] sm:$0xf]
        %v357 = vld [vmem:[%s1 + $0xa0] sm:$0xf]
        %v358 = vld [vmem:[%s1 + $0xa4] sm:$0xf]
        %v359 = vld [vmem:[%s1 + $0xa8] sm:$0xf]
        %v360 = vld [vmem:[%s1 + $0xac] sm:$0xf]
        %v361 = vld [vmem:[%s1 + $0xb0] sm:$0xf]
        %v362 = vld [vmem:[%s1 + $0xb4] sm:$0xf]
        %v363 = vld [vmem:[%s1 + $0xb8] sm:$0xf]
        %v364 = vld [vmem:[%s1 + $0xbc] sm:$0xf]
        %v365 = vld [vmem:[%s1 + $0xc0] sm:$0xf]
        %v366 = vld [vmem:[%s1 + $0xc4] sm:$0xf]
        %v367 = vld [vmem:[%s1 + $0xc8] sm:$0xf]
        %v368 = vld [vmem:[%s1 + $0xcc] sm:$0xf]
        %v369 = vld [vmem:[%s1 + $0xd0] sm:$0xf]
        %v370 = vld [vmem:[%s1 + $0xd4] sm:$0xf]
        %v371 = vld [vmem:[%s1 + $0xd8] sm:$0xf]
        %v372 = vld [vmem:[%s1 + $0xdc] sm:$0xf]
        %v373 = vld [vmem:[%s1 + $0xe0] sm:$0xf]
        %v374 = vld [vmem:[%s1 + $0xe4] sm:$0xf]
        %v375 = vld [vmem:[%s1 + $0xe8] sm:$0xf]
        %v376 = vld [vmem:[%s1 + $0xec] sm:$0xf]
        %v377 = vld [vmem:[%s1 + $0xf0] sm:$0xf]
        %v378 = vld [vmem:[%s1 + $0xf4] sm:$0xf]
        %v379 = vld [vmem:[%s1 + $0xf8] sm:$0xf]
        %v380 = vld [vmem:[%s1 + $0xfc] sm:$0xf]
        %v381 = vld [vmem:[%s2] sm:$0xff]
        %v382 = vld [vmem:[%s2 + $0x8] sm:$0xff]
        %v383 = vld [vmem:[%s2 + $0x10] sm:$0xff]
        %v384 = vld [vmem:[%s2 + $0x18] sm:$0xff]
        %v385 = vld [vmem:[%s2 + $0x20] sm:$0xff]
        %v386 = vld [vmem:[%s2 + $0x28] sm:$0xff]
        %v387 = vld [vmem:[%s2 + $0x30] sm:$0xff]
        %v388 = vld [vmem:[%s2 + $0x38] sm:$0xff]
        %v389 = vld [vmem:[%s2 + $0x40] sm:$0xff]
        %v390 = vld [vmem:[%s2 + $0x48] sm:$0xff]
        %v391 = vld [vmem:[%s2 + $0x50] sm:$0xff]
        %v392 = vld [vmem:[%s2 + $0x58] sm:$0xff]
        %v393 = vld [vmem:[%s2 + $0x60] sm:$0xff]
        %v394 = vld [vmem:[%s2 + $0x68] sm:$0xff]
        %v395 = vld [vmem:[%s2 + $0x70] sm:$0xff]
        %v396 = vld [vmem:[%s2 + $0x78] sm:$0xff]
        %v397 = vld [vmem:[%s2 + $0x80] sm:$0xff]
        %v398 = vld [vmem:[%s2 + $0x88] sm:$0xff]
        %v399 = vld [vmem:[%s2 + $0x90] sm:$0xff]
        %v400 = vld [vmem:[%s2 + $0x98] sm:$0xff]
        %v401 = vld [vmem:[%s2 + $0xa0] sm:$0xff]
        %v402 = vld [vmem:[%s2 + $0xa8] sm:$0xff]
        %v403 = vld [vmem:[%s2 + $0xb0] sm:$0xff]
        %v404 = vld [vmem:[%s2 + $0xb8] sm:$0xff]
        %v405 = vld [vmem:[%s2 + $0xc0] sm:$0xff]
        %v406 = vld [vmem:[%s2 + $0xc8] sm:$0xff]
        %v407 = vld [vmem:[%s2 + $0xd0] sm:$0xff]
        %v408 = vld [vmem:[%s2 + $0xd8] sm:$0xff]
        %v409 = vld [vmem:[%s2 + $0xe0] sm:$0xff]
        %v410 = vld [vmem:[%s2 + $0xe8] sm:$0xff]
        %v411 = vld [vmem:[%s2 + $0xf0] sm:$0xff]
        %v412 = vld [vmem:[%s2 + $0xf8] sm:$0xff]
        %v413 = vld [vmem:[%s2 + $0x100] sm:$0xff]
        %v414 = vld [vmem:[%s2 + $0x108] sm:$0xff]
        %v415 = vld [vmem:[%s2 + $0x110] sm:$0xff]
        %v416 = vld [vmem:[%s2 + $0x118] sm:$0xff]
        %v417 = vld [vmem:[%s2 + $0x120] sm:$0xff]
        %v418 = vld [vmem:[%s2 + $0x128] sm:$0xff]
        %v419 = vld [vmem:[%s2 + $0x130] sm:$0xff]
        %v420 = vld [vmem:[%s2 + $0x138] sm:$0xff]
        %v421 = vld [vmem:[%s2 + $0x140] sm:$0xff]
        %v422 = vld [vmem:[%s2 + $0x148] sm:$0xff]
        %v423 = vld [vmem:[%s2 + $0x150] sm:$0xff]
        %v424 = vld [vmem:[%s2 + $0x158] sm:$0xff]
        %v425 = vld [vmem:[%s2 + $0x160] sm:$0xff]
        %v426 = vld [vmem:[%s2 + $0x168] sm:$0xff]
        %v427 = vld [vmem:[%s2 + $0x170] sm:$0xff]
        %v428 = vld [vmem:[%s2 + $0x178] sm:$0xff]
        %v429 = vld [vmem:[%s2 + $0x180] sm:$0xff]
        %v430 = vld [vmem:[%s2 + $0x188] sm:$0xff]
        %v431 = vld [vmem:[%s2 + $0x190] sm:$0xff]
        %v432 = vld [vmem:[%s2 + $0x198] sm:$0xff]
        %v433 = vld [vmem:[%s2 + $0x1a0] sm:$0xff]
        %v434 = vld [vmem:[%s2 + $0x1a8] sm:$0xff]
        %v435 = vld [vmem:[%s2 + $0x1b0] sm:$0xff]
        %v436 = vld [vmem:[%s2 + $0x1b8] sm:$0xff]
        %v437 = vld [vmem:[%s2 + $0x1c0] sm:$0xff]
        %v438 = vld [vmem:[%s2 + $0x1c8] sm:$0xff]
        %v439 = vld [vmem:[%s2 + $0x1d0] sm:$0xff]
        %v440 = vld [vmem:[%s2 + $0x1d8] sm:$0xff]
        %v441 = vld [vmem:[%s2 + $0x1e0] sm:$0xff]
        %v442 = vld [vmem:[%s2 + $0x1e8] sm:$0xff]
        %v443 = vld [vmem:[%s2 + $0x1f0] sm:$0xff]
        %v444 = vld [vmem:[%s2 + $0x1f8] sm:$0xff]
        %446 = vset.pattern.permute.xlu0 0
        %447 = vperm.xlu0 %446, %v381
        %v448 = vpop.permute.xlu0 %447
        %451 = vset.pattern.permute.xlu0 0
        %452 = vperm.xlu0 %451, %v382
        %v453 = vpop.permute.xlu0 %452
        %456 = vset.pattern.permute.xlu0 0
        %457 = vperm.xlu0 %456, %v383
        %v458 = vpop.permute.xlu0 %457
        %461 = vset.pattern.permute.xlu0 0
        %462 = vperm.xlu0 %461, %v384
        %v463 = vpop.permute.xlu0 %462
        %466 = vset.pattern.permute.xlu0 0
        %467 = vperm.xlu0 %466, %v385
        %v468 = vpop.permute.xlu0 %467
        %471 = vset.pattern.permute.xlu0 0
        %472 = vperm.xlu0 %471, %v386
        %v473 = vpop.permute.xlu0 %472
        %476 = vset.pattern.permute.xlu0 0
        %477 = vperm.xlu0 %476, %v387
        %v478 = vpop.permute.xlu0 %477
        %481 = vset.pattern.permute.xlu0 0
        %482 = vperm.xlu0 %481, %v388
        %v483 = vpop.permute.xlu0 %482
        %486 = vset.pattern.permute.xlu0 0
        %487 = vperm.xlu0 %486, %v389
        %v488 = vpop.permute.xlu0 %487
        %491 = vset.pattern.permute.xlu0 0
        %492 = vperm.xlu0 %491, %v390
        %v493 = vpop.permute.xlu0 %492
        %496 = vset.pattern.permute.xlu0 0
        %497 = vperm.xlu0 %496, %v391
        %v498 = vpop.permute.xlu0 %497
        %501 = vset.pattern.permute.xlu0 0
        %502 = vperm.xlu0 %501, %v392
        %v503 = vpop.permute.xlu0 %502
        %506 = vset.pattern.permute.xlu0 0
        %507 = vperm.xlu0 %506, %v393
        %v508 = vpop.permute.xlu0 %507
        %511 = vset.pattern.permute.xlu0 0
        %512 = vperm.xlu0 %511, %v394
        %v513 = vpop.permute.xlu0 %512
        %516 = vset.pattern.permute.xlu0 0
        %517 = vperm.xlu0 %516, %v395
        %v518 = vpop.permute.xlu0 %517
        %521 = vset.pattern.permute.xlu0 0
        %522 = vperm.xlu0 %521, %v396
        %v523 = vpop.permute.xlu0 %522
        %526 = vset.pattern.permute.xlu0 0
        %527 = vperm.xlu0 %526, %v397
        %v528 = vpop.permute.xlu0 %527
        %531 = vset.pattern.permute.xlu0 0
        %532 = vperm.xlu0 %531, %v398
        %v533 = vpop.permute.xlu0 %532
        %536 = vset.pattern.permute.xlu0 0
        %537 = vperm.xlu0 %536, %v399
        %v538 = vpop.permute.xlu0 %537
        %541 = vset.pattern.permute.xlu0 0
        %542 = vperm.xlu0 %541, %v400
        %v543 = vpop.permute.xlu0 %542
        %546 = vset.pattern.permute.xlu0 0
        %547 = vperm.xlu0 %546, %v401
        %v548 = vpop.permute.xlu0 %547
        %551 = vset.pattern.permute.xlu0 0
        %552 = vperm.xlu0 %551, %v402
        %v553 = vpop.permute.xlu0 %552
        %556 = vset.pattern.permute.xlu0 0
        %557 = vperm.xlu0 %556, %v403
        %v558 = vpop.permute.xlu0 %557
        %561 = vset.pattern.permute.xlu0 0
        %562 = vperm.xlu0 %561, %v404
        %v563 = vpop.permute.xlu0 %562
        %566 = vset.pattern.permute.xlu0 0
        %567 = vperm.xlu0 %566, %v405
        %v568 = vpop.permute.xlu0 %567
        %571 = vset.pattern.permute.xlu0 0
        %572 = vperm.xlu0 %571, %v406
        %v573 = vpop.permute.xlu0 %572
        %576 = vset.pattern.permute.xlu0 0
        %577 = vperm.xlu0 %576, %v407
        %v578 = vpop.permute.xlu0 %577
        %581 = vset.pattern.permute.xlu0 0
        %582 = vperm.xlu0 %581, %v408
        %v583 = vpop.permute.xlu0 %582
        %586 = vset.pattern.permute.xlu0 0
        %587 = vperm.xlu0 %586, %v409
        %v588 = vpop.permute.xlu0 %587
        %591 = vset.pattern.permute.xlu0 0
        %592 = vperm.xlu0 %591, %v410
        %v593 = vpop.permute.xlu0 %592
        %596 = vset.pattern.permute.xlu0 0
        %597 = vperm.xlu0 %596, %v411
        %v598 = vpop.permute.xlu0 %597
        %601 = vset.pattern.permute.xlu0 0
        %602 = vperm.xlu0 %601, %v412
        %v603 = vpop.permute.xlu0 %602
        %606 = vset.pattern.permute.xlu0 0
        %607 = vperm.xlu0 %606, %v413
        %v608 = vpop.permute.xlu0 %607
        %611 = vset.pattern.permute.xlu0 0
        %612 = vperm.xlu0 %611, %v414
        %v613 = vpop.permute.xlu0 %612
        %616 = vset.pattern.permute.xlu0 0
        %617 = vperm.xlu0 %616, %v415
        %v618 = vpop.permute.xlu0 %617
        %621 = vset.pattern.permute.xlu0 0
        %622 = vperm.xlu0 %621, %v416
        %v623 = vpop.permute.xlu0 %622
        %626 = vset.pattern.permute.xlu0 0
        %627 = vperm.xlu0 %626, %v417
        %v628 = vpop.permute.xlu0 %627
        %631 = vset.pattern.permute.xlu0 0
        %632 = vperm.xlu0 %631, %v418
        %v633 = vpop.permute.xlu0 %632
        %636 = vset.pattern.permute.xlu0 0
        %637 = vperm.xlu0 %636, %v419
        %v638 = vpop.permute.xlu0 %637
        %641 = vset.pattern.permute.xlu0 0
        %642 = vperm.xlu0 %641, %v420
        %v643 = vpop.permute.xlu0 %642
        %646 = vset.pattern.permute.xlu0 0
        %647 = vperm.xlu0 %646, %v421
        %v648 = vpop.permute.xlu0 %647
        %651 = vset.pattern.permute.xlu0 0
        %652 = vperm.xlu0 %651, %v422
        %v653 = vpop.permute.xlu0 %652
        %656 = vset.pattern.permute.xlu0 0
        %657 = vperm.xlu0 %656, %v423
        %v658 = vpop.permute.xlu0 %657
        %661 = vset.pattern.permute.xlu0 0
        %662 = vperm.xlu0 %661, %v424
        %v663 = vpop.permute.xlu0 %662
        %666 = vset.pattern.permute.xlu0 0
        %667 = vperm.xlu0 %666, %v425
        %v668 = vpop.permute.xlu0 %667
        %671 = vset.pattern.permute.xlu0 0
        %672 = vperm.xlu0 %671, %v426
        %v673 = vpop.permute.xlu0 %672
        %676 = vset.pattern.permute.xlu0 0
        %677 = vperm.xlu0 %676, %v427
        %v678 = vpop.permute.xlu0 %677
        %681 = vset.pattern.permute.xlu0 0
        %682 = vperm.xlu0 %681, %v428
        %v683 = vpop.permute.xlu0 %682
        %686 = vset.pattern.permute.xlu0 0
        %687 = vperm.xlu0 %686, %v429
        %v688 = vpop.permute.xlu0 %687
        %691 = vset.pattern.permute.xlu0 0
        %692 = vperm.xlu0 %691, %v430
        %v693 = vpop.permute.xlu0 %692
        %696 = vset.pattern.permute.xlu0 0
        %697 = vperm.xlu0 %696, %v431
        %v698 = vpop.permute.xlu0 %697
        %701 = vset.pattern.permute.xlu0 0
        %702 = vperm.xlu0 %701, %v432
        %v703 = vpop.permute.xlu0 %702
        %706 = vset.pattern.permute.xlu0 0
        %707 = vperm.xlu0 %706, %v433
        %v708 = vpop.permute.xlu0 %707
        %711 = vset.pattern.permute.xlu0 0
        %712 = vperm.xlu0 %711, %v434
        %v713 = vpop.permute.xlu0 %712
        %716 = vset.pattern.permute.xlu0 0
        %717 = vperm.xlu0 %716, %v435
        %v718 = vpop.permute.xlu0 %717
        %721 = vset.pattern.permute.xlu0 0
        %722 = vperm.xlu0 %721, %v436
        %v723 = vpop.permute.xlu0 %722
        %726 = vset.pattern.permute.xlu0 0
        %727 = vperm.xlu0 %726, %v437
        %v728 = vpop.permute.xlu0 %727
        %731 = vset.pattern.permute.xlu0 0
        %732 = vperm.xlu0 %731, %v438
        %v733 = vpop.permute.xlu0 %732
        %736 = vset.pattern.permute.xlu0 0
        %737 = vperm.xlu0 %736, %v439
        %v738 = vpop.permute.xlu0 %737
        %741 = vset.pattern.permute.xlu0 0
        %742 = vperm.xlu0 %741, %v440
        %v743 = vpop.permute.xlu0 %742
        %746 = vset.pattern.permute.xlu0 0
        %747 = vperm.xlu0 %746, %v441
        %v748 = vpop.permute.xlu0 %747
        %751 = vset.pattern.permute.xlu0 0
        %752 = vperm.xlu0 %751, %v442
        %v753 = vpop.permute.xlu0 %752
        %756 = vset.pattern.permute.xlu0 0
        %757 = vperm.xlu0 %756, %v443
        %v758 = vpop.permute.xlu0 %757
        %761 = vset.pattern.permute.xlu0 0
        %762 = vperm.xlu0 %761, %v444
        %v763 = vpop.permute.xlu0 %762
        %v829 = vunpack.c.l.b16 %v317
        %v830 = vunpack.c.l.b16 %v318
        %v831 = vunpack.c.l.b16 %v319
        %v832 = vunpack.c.l.b16 %v320
        %v833 = vunpack.c.l.b16 %v321
        %v834 = vunpack.c.l.b16 %v322
        %v835 = vunpack.c.l.b16 %v323
        %v836 = vunpack.c.l.b16 %v324
        %v837 = vunpack.c.l.b16 %v325
        %v838 = vunpack.c.l.b16 %v326
        %v839 = vunpack.c.l.b16 %v327
        %v840 = vunpack.c.l.b16 %v328
        %v841 = vunpack.c.l.b16 %v329
        %v842 = vunpack.c.l.b16 %v330
        %v843 = vunpack.c.l.b16 %v331
        %v844 = vunpack.c.l.b16 %v332
        %v845 = vunpack.c.l.b16 %v333
        %v846 = vunpack.c.l.b16 %v334
        %v847 = vunpack.c.l.b16 %v335
        %v848 = vunpack.c.l.b16 %v336
        %v849 = vunpack.c.l.b16 %v337
        %v850 = vunpack.c.l.b16 %v338
        %v851 = vunpack.c.l.b16 %v339
        %v852 = vunpack.c.l.b16 %v340
        %v853 = vunpack.c.l.b16 %v341
        %v854 = vunpack.c.l.b16 %v342
        %v855 = vunpack.c.l.b16 %v343
        %v856 = vunpack.c.l.b16 %v344
        %v857 = vunpack.c.l.b16 %v345
        %v858 = vunpack.c.l.b16 %v346
        %v859 = vunpack.c.l.b16 %v347
        %v860 = vunpack.c.l.b16 %v348
        %v861 = vunpack.c.l.b16 %v349
        %v862 = vunpack.c.l.b16 %v350
        %v863 = vunpack.c.l.b16 %v351
        %v864 = vunpack.c.l.b16 %v352
        %v865 = vunpack.c.l.b16 %v353
        %v866 = vunpack.c.l.b16 %v354
        %v867 = vunpack.c.l.b16 %v355
        %v868 = vunpack.c.l.b16 %v356
        %v869 = vunpack.c.l.b16 %v357
        %v870 = vunpack.c.l.b16 %v358
        %v871 = vunpack.c.l.b16 %v359
        %v872 = vunpack.c.l.b16 %v360
        %v873 = vunpack.c.l.b16 %v361
        %v874 = vunpack.c.l.b16 %v362
        %v875 = vunpack.c.l.b16 %v363
        %v876 = vunpack.c.l.b16 %v364
        %v877 = vunpack.c.l.b16 %v365
        %v878 = vunpack.c.l.b16 %v366
        %v879 = vunpack.c.l.b16 %v367
        %v880 = vunpack.c.l.b16 %v368
        %v881 = vunpack.c.l.b16 %v369
        %v882 = vunpack.c.l.b16 %v370
        %v883 = vunpack.c.l.b16 %v371
        %v884 = vunpack.c.l.b16 %v372
        %v885 = vunpack.c.l.b16 %v373
        %v886 = vunpack.c.l.b16 %v374
        %v887 = vunpack.c.l.b16 %v375
        %v888 = vunpack.c.l.b16 %v376
        %v889 = vunpack.c.l.b16 %v377
        %v890 = vunpack.c.l.b16 %v378
        %v891 = vunpack.c.l.b16 %v379
        %v892 = vunpack.c.l.b16 %v380
        %v893 = vpack.c.b16 %v830, %v829
        %v894 = vpack.c.b16 %v832, %v831
        %v895 = vpack.c.b16 %v834, %v833
        %v896 = vpack.c.b16 %v836, %v835
        %v897 = vpack.c.b16 %v838, %v837
        %v898 = vpack.c.b16 %v840, %v839
        %v899 = vpack.c.b16 %v842, %v841
        %v900 = vpack.c.b16 %v844, %v843
        %v901 = vpack.c.b16 %v846, %v845
        %v902 = vpack.c.b16 %v848, %v847
        %v903 = vpack.c.b16 %v850, %v849
        %v904 = vpack.c.b16 %v852, %v851
        %v905 = vpack.c.b16 %v854, %v853
        %v906 = vpack.c.b16 %v856, %v855
        %v907 = vpack.c.b16 %v858, %v857
        %v908 = vpack.c.b16 %v860, %v859
        %v909 = vpack.c.b16 %v862, %v861
        %v910 = vpack.c.b16 %v864, %v863
        %v911 = vpack.c.b16 %v866, %v865
        %v912 = vpack.c.b16 %v868, %v867
        %v913 = vpack.c.b16 %v870, %v869
        %v914 = vpack.c.b16 %v872, %v871
        %v915 = vpack.c.b16 %v874, %v873
        %v916 = vpack.c.b16 %v876, %v875
        %v917 = vpack.c.b16 %v878, %v877
        %v918 = vpack.c.b16 %v880, %v879
        %v919 = vpack.c.b16 %v882, %v881
        %v920 = vpack.c.b16 %v884, %v883
        %v921 = vpack.c.b16 %v886, %v885
        %v922 = vpack.c.b16 %v888, %v887
        %v923 = vpack.c.b16 %v890, %v889
        %v924 = vpack.c.b16 %v892, %v891
        %vm925 = vcmask 31744
        %v927 = vsel %vm925, %v893, 0
        %v930 = vsel %vm925, %v894, 0
        %v933 = vsel %vm925, %v895, 0
        %v936 = vsel %vm925, %v896, 0
        %v939 = vsel %vm925, %v897, 0
        %v942 = vsel %vm925, %v898, 0
        %v945 = vsel %vm925, %v899, 0
        %v948 = vsel %vm925, %v900, 0
        %v951 = vsel %vm925, %v901, 0
        %v954 = vsel %vm925, %v902, 0
        %v957 = vsel %vm925, %v903, 0
        %v960 = vsel %vm925, %v904, 0
        %v963 = vsel %vm925, %v905, 0
        %v966 = vsel %vm925, %v906, 0
        %v969 = vsel %vm925, %v907, 0
        %v972 = vsel %vm925, %v908, 0
        %v975 = vsel %vm925, %v909, 0
        %v978 = vsel %vm925, %v910, 0
        %v981 = vsel %vm925, %v911, 0
        %v984 = vsel %vm925, %v912, 0
        %v987 = vsel %vm925, %v913, 0
        %v990 = vsel %vm925, %v914, 0
        %v993 = vsel %vm925, %v915, 0
        %v996 = vsel %vm925, %v916, 0
        %v999 = vsel %vm925, %v917, 0
        %v1002 = vsel %vm925, %v918, 0
        %v1005 = vsel %vm925, %v919, 0
        %v1008 = vsel %vm925, %v920, 0
        %v1011 = vsel %vm925, %v921, 0
        %v1014 = vsel %vm925, %v922, 0
        %v1017 = vsel %vm925, %v923, 0
        %v1020 = vsel %vm925, %v924, 0
        %vm1022 = vcmask 1041408
        %v1024 = vsel %vm1022, %v315, 0
        %v1027 = vsel %vm1022, %v316, 0
        %1029 = vmatprep.subr.bf16.mxu0 %v1027
        %1030 = vmatpush1.bf16.msra.mxu0 %v1024
        %1031 = vmatprep.subr.bf16.mxu0 0
        %1032 = vmatpush1.bf16.msra.mxu0 0
        %1033 = vmatprep.subr.bf16.mxu0 0
        %1034 = vmatpush1.bf16.msra.mxu0 0
        %1035 = vmatprep.subr.bf16.mxu0 0
        %1036 = vmatpush1.bf16.msra.mxu0 0
        %1037 = vmatprep.subr.bf16.mxu0 0
        %1038 = vmatpush1.bf16.msra.mxu0 0
        %1039 = vmatprep.subr.bf16.mxu0 0
        %1040 = vmatpush1.bf16.msra.mxu0 0
        %1041 = vmatprep.subr.bf16.mxu0 0
        %1042 = vmatpush1.bf16.msra.mxu0 0
        %1043 = vmatprep.subr.bf16.mxu0 0
        %1044 = vmatpush1.bf16.msra.mxu0 0
        %1045 = vmatprep.subr.bf16.mxu0 0
        %1046 = vmatpush1.bf16.msra.mxu0 0
        %1047 = vmatprep.subr.bf16.mxu0 0
        %1048 = vmatpush1.bf16.msra.mxu0 0
        %1049 = vmatprep.subr.bf16.mxu0 0
        %1050 = vmatpush1.bf16.msra.mxu0 0
        %1051 = vmatprep.subr.bf16.mxu0 0
        %1052 = vmatpush1.bf16.msra.mxu0 0
        %1053 = vmatprep.subr.bf16.mxu0 0
        %1054 = vmatpush1.bf16.msra.mxu0 0
        %1055 = vmatprep.subr.bf16.mxu0 0
        %1056 = vmatpush1.bf16.msra.mxu0 0
        %1057 = vmatprep.subr.bf16.mxu0 0
        %1058 = vmatpush1.bf16.msra.mxu0 0
        %1059 = vmatprep.subr.bf16.mxu0 0
        %1060 = vmatpush1.bf16.msra.mxu0 0
        %1061 = vmatprep.mubr.bf16.mxu0 0
        %1062 = vmatmul.mubr.bf16.gmra.mrb[0].mxu0 %v927
        %v1063 = vpop.f32.mrb[0].mxu0
        %v1064 = vadd.f32 %v448, %v1063
        %v1065 = vpop.f32.mrb[0].mxu0
        %v1066 = vadd.f32 %v448, %v1065
        %v1067 = vpop.f32.mrb[0].mxu0
        %v1068 = vadd.f32 %v453, %v1067
        %v1069 = vpop.f32.mrb[0].mxu0
        %v1070 = vadd.f32 %v453, %v1069
        %1071 = vmatprep.mubr.bf16.mxu0 0
        %1072 = vmatmul.mubr.bf16.gmra.mrb[0].mxu0 %v930
        %v1073 = vpop.f32.mrb[0].mxu0
        %v1074 = vadd.f32 %v458, %v1073
        %v1075 = vpop.f32.mrb[0].mxu0
        %v1076 = vadd.f32 %v458, %v1075
        %v1077 = vpop.f32.mrb[0].mxu0
        %v1078 = vadd.f32 %v463, %v1077
        %v1079 = vpop.f32.mrb[0].mxu0
        %v1080 = vadd.f32 %v463, %v1079
        %1081 = vmatprep.mubr.bf16.mxu0 0
        %1082 = vmatmul.mubr.bf16.gmra.mrb[0].mxu0 %v933
        %v1083 = vpop.f32.mrb[0].mxu0
        %v1084 = vadd.f32 %v468, %v1083
        %v1085 = vpop.f32.mrb[0].mxu0
        %v1086 = vadd.f32 %v468, %v1085
        %v1087 = vpop.f32.mrb[0].mxu0
        %v1088 = vadd.f32 %v473, %v1087
        %v1089 = vpop.f32.mrb[0].mxu0
        %v1090 = vadd.f32 %v473, %v1089
        %1091 = vmatprep.mubr.bf16.mxu0 0
        %1092 = vmatmul.mubr.bf16.gmra.mrb[0].mxu0 %v936
        %v1093 = vpop.f32.mrb[0].mxu0
        %v1094 = vadd.f32 %v478, %v1093
        %v1095 = vpop.f32.mrb[0].mxu0
        %v1096 = vadd.f32 %v478, %v1095
        %v1097 = vpop.f32.mrb[0].mxu0
        %v1098 = vadd.f32 %v483, %v1097
        %v1099 = vpop.f32.mrb[0].mxu0
        %v1100 = vadd.f32 %v483, %v1099
        %1101 = vmatprep.mubr.bf16.mxu0 0
        %1102 = vmatmul.mubr.bf16.gmra.mrb[0].mxu0 %v939
        %v1103 = vpop.f32.mrb[0].mxu0
        %v1104 = vadd.f32 %v488, %v1103
        %v1105 = vpop.f32.mrb[0].mxu0
        %v1106 = vadd.f32 %v488, %v1105
        %v1107 = vpop.f32.mrb[0].mxu0
        %v1108 = vadd.f32 %v493, %v1107
        %v1109 = vpop.f32.mrb[0].mxu0
        %v1110 = vadd.f32 %v493, %v1109
        %1111 = vmatprep.mubr.bf16.mxu0 0
        %1112 = vmatmul.mubr.bf16.gmra.mrb[0].mxu0 %v942
        %v1113 = vpop.f32.mrb[0].mxu0
        %v1114 = vadd.f32 %v498, %v1113
        %v1115 = vpop.f32.mrb[0].mxu0
        %v1116 = vadd.f32 %v498, %v1115
        %v1117 = vpop.f32.mrb[0].mxu0
        %v1118 = vadd.f32 %v503, %v1117
        %v1119 = vpop.f32.mrb[0].mxu0
        %v1120 = vadd.f32 %v503, %v1119
        %1121 = vmatprep.mubr.bf16.mxu0 0
        %1122 = vmatmul.mubr.bf16.gmra.mrb[0].mxu0 %v945
        %v1123 = vpop.f32.mrb[0].mxu0
        %v1124 = vadd.f32 %v508, %v1123
        %v1125 = vpop.f32.mrb[0].mxu0
        %v1126 = vadd.f32 %v508, %v1125
        %v1127 = vpop.f32.mrb[0].mxu0
        %v1128 = vadd.f32 %v513, %v1127
        %v1129 = vpop.f32.mrb[0].mxu0
        %v1130 = vadd.f32 %v513, %v1129
        %1131 = vmatprep.mubr.bf16.mxu0 0
        %1132 = vmatmul.mubr.bf16.gmra.mrb[0].mxu0 %v948
        %v1133 = vpop.f32.mrb[0].mxu0
        %v1134 = vadd.f32 %v518, %v1133
        %v1135 = vpop.f32.mrb[0].mxu0
        %v1136 = vadd.f32 %v518, %v1135
        %v1137 = vpop.f32.mrb[0].mxu0
        %v1138 = vadd.f32 %v523, %v1137
        %v1139 = vpop.f32.mrb[0].mxu0
        %v1140 = vadd.f32 %v523, %v1139
        %1141 = vmatprep.mubr.bf16.mxu0 0
        %1142 = vmatmul.mubr.bf16.gmra.mrb[0].mxu0 %v951
        %v1143 = vpop.f32.mrb[0].mxu0
        %v1144 = vadd.f32 %v528, %v1143
        %v1145 = vpop.f32.mrb[0].mxu0
        %v1146 = vadd.f32 %v528, %v1145
        %v1147 = vpop.f32.mrb[0].mxu0
        %v1148 = vadd.f32 %v533, %v1147
        %v1149 = vpop.f32.mrb[0].mxu0
        %v1150 = vadd.f32 %v533, %v1149
        %1151 = vmatprep.mubr.bf16.mxu0 0
        %1152 = vmatmul.mubr.bf16.gmra.mrb[0].mxu0 %v954
        %v1153 = vpop.f32.mrb[0].mxu0
        %v1154 = vadd.f32 %v538, %v1153
        %v1155 = vpop.f32.mrb[0].mxu0
        %v1156 = vadd.f32 %v538, %v1155
        %v1157 = vpop.f32.mrb[0].mxu0
        %v1158 = vadd.f32 %v543, %v1157
        %v1159 = vpop.f32.mrb[0].mxu0
        %v1160 = vadd.f32 %v543, %v1159
        %1161 = vmatprep.mubr.bf16.mxu0 0
        %1162 = vmatmul.mubr.bf16.gmra.mrb[0].mxu0 %v957
        %v1163 = vpop.f32.mrb[0].mxu0
        %v1164 = vadd.f32 %v548, %v1163
        %v1165 = vpop.f32.mrb[0].mxu0
        %v1166 = vadd.f32 %v548, %v1165
        %v1167 = vpop.f32.mrb[0].mxu0
        %v1168 = vadd.f32 %v553, %v1167
        %v1169 = vpop.f32.mrb[0].mxu0
        %v1170 = vadd.f32 %v553, %v1169
        %1171 = vmatprep.mubr.bf16.mxu0 0
        %1172 = vmatmul.mubr.bf16.gmra.mrb[0].mxu0 %v960
        %v1173 = vpop.f32.mrb[0].mxu0
        %v1174 = vadd.f32 %v558, %v1173
        %v1175 = vpop.f32.mrb[0].mxu0
        %v1176 = vadd.f32 %v558, %v1175
        %v1177 = vpop.f32.mrb[0].mxu0
        %v1178 = vadd.f32 %v563, %v1177
        %v1179 = vpop.f32.mrb[0].mxu0
        %v1180 = vadd.f32 %v563, %v1179
        %1181 = vmatprep.mubr.bf16.mxu0 0
        %1182 = vmatmul.mubr.bf16.gmra.mrb[0].mxu0 %v963
        %v1183 = vpop.f32.mrb[0].mxu0
        %v1184 = vadd.f32 %v568, %v1183
        %v1185 = vpop.f32.mrb[0].mxu0
        %v1186 = vadd.f32 %v568, %v1185
        %v1187 = vpop.f32.mrb[0].mxu0
        %v1188 = vadd.f32 %v573, %v1187
        %v1189 = vpop.f32.mrb[0].mxu0
        %v1190 = vadd.f32 %v573, %v1189
        %1191 = vmatprep.mubr.bf16.mxu0 0
        %1192 = vmatmul.mubr.bf16.gmra.mrb[0].mxu0 %v966
        %v1193 = vpop.f32.mrb[0].mxu0
        %v1194 = vadd.f32 %v578, %v1193
        %v1195 = vpop.f32.mrb[0].mxu0
        %v1196 = vadd.f32 %v578, %v1195
        %v1197 = vpop.f32.mrb[0].mxu0
        %v1198 = vadd.f32 %v583, %v1197
        %v1199 = vpop.f32.mrb[0].mxu0
        %v1200 = vadd.f32 %v583, %v1199
        %1201 = vmatprep.mubr.bf16.mxu0 0
        %1202 = vmatmul.mubr.bf16.gmra.mrb[0].mxu0 %v969
        %v1203 = vpop.f32.mrb[0].mxu0
        %v1204 = vadd.f32 %v588, %v1203
        %v1205 = vpop.f32.mrb[0].mxu0
        %v1206 = vadd.f32 %v588, %v1205
        %v1207 = vpop.f32.mrb[0].mxu0
        %v1208 = vadd.f32 %v593, %v1207
        %v1209 = vpop.f32.mrb[0].mxu0
        %v1210 = vadd.f32 %v593, %v1209
        %1211 = vmatprep.mubr.bf16.mxu0 0
        %1212 = vmatmul.mubr.bf16.gmra.mrb[0].mxu0 %v972
        %v1213 = vpop.f32.mrb[0].mxu0
        %v1214 = vadd.f32 %v598, %v1213
        %v1215 = vpop.f32.mrb[0].mxu0
        %v1216 = vadd.f32 %v598, %v1215
        %v1217 = vpop.f32.mrb[0].mxu0
        %v1218 = vadd.f32 %v603, %v1217
        %v1219 = vpop.f32.mrb[0].mxu0
        %v1220 = vadd.f32 %v603, %v1219
        %1221 = vmatprep.mubr.bf16.mxu0 0
        %1222 = vmatmul.mubr.bf16.gmra.mrb[0].mxu0 %v975
        %v1223 = vpop.f32.mrb[0].mxu0
        %v1224 = vadd.f32 %v608, %v1223
        %v1225 = vpop.f32.mrb[0].mxu0
        %v1226 = vadd.f32 %v608, %v1225
        %v1227 = vpop.f32.mrb[0].mxu0
        %v1228 = vadd.f32 %v613, %v1227
        %v1229 = vpop.f32.mrb[0].mxu0
        %v1230 = vadd.f32 %v613, %v1229
        %1231 = vmatprep.mubr.bf16.mxu0 0
        %1232 = vmatmul.mubr.bf16.gmra.mrb[0].mxu0 %v978
        %v1233 = vpop.f32.mrb[0].mxu0
        %v1234 = vadd.f32 %v618, %v1233
        %v1235 = vpop.f32.mrb[0].mxu0
        %v1236 = vadd.f32 %v618, %v1235
        %v1237 = vpop.f32.mrb[0].mxu0
        %v1238 = vadd.f32 %v623, %v1237
        %v1239 = vpop.f32.mrb[0].mxu0
        %v1240 = vadd.f32 %v623, %v1239
        %1241 = vmatprep.mubr.bf16.mxu0 0
        %1242 = vmatmul.mubr.bf16.gmra.mrb[0].mxu0 %v981
        %v1243 = vpop.f32.mrb[0].mxu0
        %v1244 = vadd.f32 %v628, %v1243
        %v1245 = vpop.f32.mrb[0].mxu0
        %v1246 = vadd.f32 %v628, %v1245
        %v1247 = vpop.f32.mrb[0].mxu0
        %v1248 = vadd.f32 %v633, %v1247
        %v1249 = vpop.f32.mrb[0].mxu0
        %v1250 = vadd.f32 %v633, %v1249
        %1251 = vmatprep.mubr.bf16.mxu0 0
        %1252 = vmatmul.mubr.bf16.gmra.mrb[0].mxu0 %v984
        %v1253 = vpop.f32.mrb[0].mxu0
        %v1254 = vadd.f32 %v638, %v1253
        %v1255 = vpop.f32.mrb[0].mxu0
        %v1256 = vadd.f32 %v638, %v1255
        %v1257 = vpop.f32.mrb[0].mxu0
        %v1258 = vadd.f32 %v643, %v1257
        %v1259 = vpop.f32.mrb[0].mxu0
        %v1260 = vadd.f32 %v643, %v1259
        %1261 = vmatprep.mubr.bf16.mxu0 0
        %1262 = vmatmul.mubr.bf16.gmra.mrb[0].mxu0 %v987
        %v1263 = vpop.f32.mrb[0].mxu0
        %v1264 = vadd.f32 %v648, %v1263
        %v1265 = vpop.f32.mrb[0].mxu0
        %v1266 = vadd.f32 %v648, %v1265
        %v1267 = vpop.f32.mrb[0].mxu0
        %v1268 = vadd.f32 %v653, %v1267
        %v1269 = vpop.f32.mrb[0].mxu0
        %v1270 = vadd.f32 %v653, %v1269
        %1271 = vmatprep.mubr.bf16.mxu0 0
        %1272 = vmatmul.mubr.bf16.gmra.mrb[0].mxu0 %v990
        %v1273 = vpop.f32.mrb[0].mxu0
        %v1274 = vadd.f32 %v658, %v1273
        %v1275 = vpop.f32.mrb[0].mxu0
        %v1276 = vadd.f32 %v658, %v1275
        %v1277 = vpop.f32.mrb[0].mxu0
        %v1278 = vadd.f32 %v663, %v1277
        %v1279 = vpop.f32.mrb[0].mxu0
        %v1280 = vadd.f32 %v663, %v1279
        %1281 = vmatprep.mubr.bf16.mxu0 0
        %1282 = vmatmul.mubr.bf16.gmra.mrb[0].mxu0 %v993
        %v1283 = vpop.f32.mrb[0].mxu0
        %v1284 = vadd.f32 %v668, %v1283
        %v1285 = vpop.f32.mrb[0].mxu0
        %v1286 = vadd.f32 %v668, %v1285
        %v1287 = vpop.f32.mrb[0].mxu0
        %v1288 = vadd.f32 %v673, %v1287
        %v1289 = vpop.f32.mrb[0].mxu0
        %v1290 = vadd.f32 %v673, %v1289
        %1291 = vmatprep.mubr.bf16.mxu0 0
        %1292 = vmatmul.mubr.bf16.gmra.mrb[0].mxu0 %v996
        %v1293 = vpop.f32.mrb[0].mxu0
        %v1294 = vadd.f32 %v678, %v1293
        %v1295 = vpop.f32.mrb[0].mxu0
        %v1296 = vadd.f32 %v678, %v1295
        %v1297 = vpop.f32.mrb[0].mxu0
        %v1298 = vadd.f32 %v683, %v1297
        %v1299 = vpop.f32.mrb[0].mxu0
        %v1300 = vadd.f32 %v683, %v1299
        %1301 = vmatprep.mubr.bf16.mxu0 0
        %1302 = vmatmul.mubr.bf16.gmra.mrb[0].mxu0 %v999
        %v1303 = vpop.f32.mrb[0].mxu0
        %v1304 = vadd.f32 %v688, %v1303
        %v1305 = vpop.f32.mrb[0].mxu0
        %v1306 = vadd.f32 %v688, %v1305
        %v1307 = vpop.f32.mrb[0].mxu0
        %v1308 = vadd.f32 %v693, %v1307
        %v1309 = vpop.f32.mrb[0].mxu0
        %v1310 = vadd.f32 %v693, %v1309
        %1311 = vmatprep.mubr.bf16.mxu0 0
        %1312 = vmatmul.mubr.bf16.gmra.mrb[0].mxu0 %v1002
        %v1313 = vpop.f32.mrb[0].mxu0
        %v1314 = vadd.f32 %v698, %v1313
        %v1315 = vpop.f32.mrb[0].mxu0
        %v1316 = vadd.f32 %v698, %v1315
        %v1317 = vpop.f32.mrb[0].mxu0
        %v1318 = vadd.f32 %v703, %v1317
        %v1319 = vpop.f32.mrb[0].mxu0
        %v1320 = vadd.f32 %v703, %v1319
        %1321 = vmatprep.mubr.bf16.mxu0 0
        %1322 = vmatmul.mubr.bf16.gmra.mrb[0].mxu0 %v1005
        %v1323 = vpop.f32.mrb[0].mxu0
        %v1324 = vadd.f32 %v708, %v1323
        %v1325 = vpop.f32.mrb[0].mxu0
        %v1326 = vadd.f32 %v708, %v1325
        %v1327 = vpop.f32.mrb[0].mxu0
        %v1328 = vadd.f32 %v713, %v1327
        %v1329 = vpop.f32.mrb[0].mxu0
        %v1330 = vadd.f32 %v713, %v1329
        %1331 = vmatprep.mubr.bf16.mxu0 0
        %1332 = vmatmul.mubr.bf16.gmra.mrb[0].mxu0 %v1008
        %v1333 = vpop.f32.mrb[0].mxu0
        %v1334 = vadd.f32 %v718, %v1333
        %v1335 = vpop.f32.mrb[0].mxu0
        %v1336 = vadd.f32 %v718, %v1335
        %v1337 = vpop.f32.mrb[0].mxu0
        %v1338 = vadd.f32 %v723, %v1337
        %v1339 = vpop.f32.mrb[0].mxu0
        %v1340 = vadd.f32 %v723, %v1339
        %1341 = vmatprep.mubr.bf16.mxu0 0
        %1342 = vmatmul.mubr.bf16.gmra.mrb[0].mxu0 %v1011
        %v1343 = vpop.f32.mrb[0].mxu0
        %v1344 = vadd.f32 %v728, %v1343
        %v1345 = vpop.f32.mrb[0].mxu0
        %v1346 = vadd.f32 %v728, %v1345
        %v1347 = vpop.f32.mrb[0].mxu0
        %v1348 = vadd.f32 %v733, %v1347
        %v1349 = vpop.f32.mrb[0].mxu0
        %v1350 = vadd.f32 %v733, %v1349
        %1351 = vmatprep.mubr.bf16.mxu0 0
        %1352 = vmatmul.mubr.bf16.gmra.mrb[0].mxu0 %v1014
        %v1353 = vpop.f32.mrb[0].mxu0
        %v1354 = vadd.f32 %v738, %v1353
        %v1355 = vpop.f32.mrb[0].mxu0
        %v1356 = vadd.f32 %v738, %v1355
        %v1357 = vpop.f32.mrb[0].mxu0
        %v1358 = vadd.f32 %v743, %v1357
        %v1359 = vpop.f32.mrb[0].mxu0
        %v1360 = vadd.f32 %v743, %v1359
        %1361 = vmatprep.mubr.bf16.mxu0 0
        %1362 = vmatmul.mubr.bf16.gmra.mrb[0].mxu0 %v1017
        %v1363 = vpop.f32.mrb[0].mxu0
        %v1364 = vadd.f32 %v748, %v1363
        %v1365 = vpop.f32.mrb[0].mxu0
        %v1366 = vadd.f32 %v748, %v1365
        %v1367 = vpop.f32.mrb[0].mxu0
        %v1368 = vadd.f32 %v753, %v1367
        %v1369 = vpop.f32.mrb[0].mxu0
        %v1370 = vadd.f32 %v753, %v1369
        %1371 = vmatprep.mubr.bf16.mxu0 0
        %1372 = vmatmul.mubr.bf16.gmra.mrb[0].mxu0 %v1020
        %v1373 = vpop.f32.mrb[0].mxu0
        %v1374 = vadd.f32 %v758, %v1373
        %v1375 = vpop.f32.mrb[0].mxu0
        %v1376 = vadd.f32 %v758, %v1375
        %v1377 = vpop.f32.mrb[0].mxu0
        %v1378 = vadd.f32 %v763, %v1377
        %v1379 = vpop.f32.mrb[0].mxu0
        %v1380 = vadd.f32 %v763, %v1379
        %1381 = vdwg.mxu0
        %v1382 = vmax.f32 %v1064, 0.0
        %v1383 = vmax.f32 %v1066, 0.0
        %v1384 = vmax.f32 %v1068, 0.0
        %v1385 = vmax.f32 %v1070, 0.0
        %v1386 = vmax.f32 %v1074, 0.0
        %v1387 = vmax.f32 %v1076, 0.0
        %v1388 = vmax.f32 %v1078, 0.0
        %v1389 = vmax.f32 %v1080, 0.0
        %v1390 = vmax.f32 %v1084, 0.0
        %v1391 = vmax.f32 %v1086, 0.0
        %v1392 = vmax.f32 %v1088, 0.0
        %v1393 = vmax.f32 %v1090, 0.0
        %v1394 = vmax.f32 %v1094, 0.0
        %v1395 = vmax.f32 %v1096, 0.0
        %v1396 = vmax.f32 %v1098, 0.0
        %v1397 = vmax.f32 %v1100, 0.0
        %v1398 = vmax.f32 %v1104, 0.0
        %v1399 = vmax.f32 %v1106, 0.0
        %v1400 = vmax.f32 %v1108, 0.0
        %v1401 = vmax.f32 %v1110, 0.0
        %v1402 = vmax.f32 %v1114, 0.0
        %v1403 = vmax.f32 %v1116, 0.0
        %v1404 = vmax.f32 %v1118, 0.0
        %v1405 = vmax.f32 %v1120, 0.0
        %v1406 = vmax.f32 %v1124, 0.0
        %v1407 = vmax.f32 %v1126, 0.0
        %v1408 = vmax.f32 %v1128, 0.0
        %v1409 = vmax.f32 %v1130, 0.0
        %v1410 = vmax.f32 %v1134, 0.0
        %v1411 = vmax.f32 %v1136, 0.0
        %v1412 = vmax.f32 %v1138, 0.0
        %v1413 = vmax.f32 %v1140, 0.0
        %v1414 = vmax.f32 %v1144, 0.0
        %v1415 = vmax.f32 %v1146, 0.0
        %v1416 = vmax.f32 %v1148, 0.0
        %v1417 = vmax.f32 %v1150, 0.0
        %v1418 = vmax.f32 %v1154, 0.0
        %v1419 = vmax.f32 %v1156, 0.0
        %v1420 = vmax.f32 %v1158, 0.0
        %v1421 = vmax.f32 %v1160, 0.0
        %v1422 = vmax.f32 %v1164, 0.0
        %v1423 = vmax.f32 %v1166, 0.0
        %v1424 = vmax.f32 %v1168, 0.0
        %v1425 = vmax.f32 %v1170, 0.0
        %v1426 = vmax.f32 %v1174, 0.0
        %v1427 = vmax.f32 %v1176, 0.0
        %v1428 = vmax.f32 %v1178, 0.0
        %v1429 = vmax.f32 %v1180, 0.0
        %v1430 = vmax.f32 %v1184, 0.0
        %v1431 = vmax.f32 %v1186, 0.0
        %v1432 = vmax.f32 %v1188, 0.0
        %v1433 = vmax.f32 %v1190, 0.0
        %v1434 = vmax.f32 %v1194, 0.0
        %v1435 = vmax.f32 %v1196, 0.0
        %v1436 = vmax.f32 %v1198, 0.0
        %v1437 = vmax.f32 %v1200, 0.0
        %v1438 = vmax.f32 %v1204, 0.0
        %v1439 = vmax.f32 %v1206, 0.0
        %v1440 = vmax.f32 %v1208, 0.0
        %v1441 = vmax.f32 %v1210, 0.0
        %v1442 = vmax.f32 %v1214, 0.0
        %v1443 = vmax.f32 %v1216, 0.0
        %v1444 = vmax.f32 %v1218, 0.0
        %v1445 = vmax.f32 %v1220, 0.0
        %v1446 = vmax.f32 %v1224, 0.0
        %v1447 = vmax.f32 %v1226, 0.0
        %v1448 = vmax.f32 %v1228, 0.0
        %v1449 = vmax.f32 %v1230, 0.0
        %v1450 = vmax.f32 %v1234, 0.0
        %v1451 = vmax.f32 %v1236, 0.0
        %v1452 = vmax.f32 %v1238, 0.0
        %v1453 = vmax.f32 %v1240, 0.0
        %v1454 = vmax.f32 %v1244, 0.0
        %v1455 = vmax.f32 %v1246, 0.0
        %v1456 = vmax.f32 %v1248, 0.0
        %v1457 = vmax.f32 %v1250, 0.0
        %v1458 = vmax.f32 %v1254, 0.0
        %v1459 = vmax.f32 %v1256, 0.0
        %v1460 = vmax.f32 %v1258, 0.0
        %v1461 = vmax.f32 %v1260, 0.0
        %v1462 = vmax.f32 %v1264, 0.0
        %v1463 = vmax.f32 %v1266, 0.0
        %v1464 = vmax.f32 %v1268, 0.0
        %v1465 = vmax.f32 %v1270, 0.0
        %v1466 = vmax.f32 %v1274, 0.0
        %v1467 = vmax.f32 %v1276, 0.0
        %v1468 = vmax.f32 %v1278, 0.0
        %v1469 = vmax.f32 %v1280, 0.0
        %v1470 = vmax.f32 %v1284, 0.0
        %v1471 = vmax.f32 %v1286, 0.0
        %v1472 = vmax.f32 %v1288, 0.0
        %v1473 = vmax.f32 %v1290, 0.0
        %v1474 = vmax.f32 %v1294, 0.0
        %v1475 = vmax.f32 %v1296, 0.0
        %v1476 = vmax.f32 %v1298, 0.0
        %v1477 = vmax.f32 %v1300, 0.0
        %v1478 = vmax.f32 %v1304, 0.0
        %v1479 = vmax.f32 %v1306, 0.0
        %v1480 = vmax.f32 %v1308, 0.0
        %v1481 = vmax.f32 %v1310, 0.0
        %v1482 = vmax.f32 %v1314, 0.0
        %v1483 = vmax.f32 %v1316, 0.0
        %v1484 = vmax.f32 %v1318, 0.0
        %v1485 = vmax.f32 %v1320, 0.0
        %v1486 = vmax.f32 %v1324, 0.0
        %v1487 = vmax.f32 %v1326, 0.0
        %v1488 = vmax.f32 %v1328, 0.0
        %v1489 = vmax.f32 %v1330, 0.0
        %v1490 = vmax.f32 %v1334, 0.0
        %v1491 = vmax.f32 %v1336, 0.0
        %v1492 = vmax.f32 %v1338, 0.0
        %v1493 = vmax.f32 %v1340, 0.0
        %v1494 = vmax.f32 %v1344, 0.0
        %v1495 = vmax.f32 %v1346, 0.0
        %v1496 = vmax.f32 %v1348, 0.0
        %v1497 = vmax.f32 %v1350, 0.0
        %v1498 = vmax.f32 %v1354, 0.0
        %v1499 = vmax.f32 %v1356, 0.0
        %v1500 = vmax.f32 %v1358, 0.0
        %v1501 = vmax.f32 %v1360, 0.0
        %v1502 = vmax.f32 %v1364, 0.0
        %v1503 = vmax.f32 %v1366, 0.0
        %v1504 = vmax.f32 %v1368, 0.0
        %v1505 = vmax.f32 %v1370, 0.0
        %v1506 = vmax.f32 %v1374, 0.0
        %v1507 = vmax.f32 %v1376, 0.0
        %v1508 = vmax.f32 %v1378, 0.0
        %v1509 = vmax.f32 %v1380, 0.0
        %v1510 = vpack.c.bf16 %v1384, %v1382
        %v1511 = vpack.c.bf16 %v1385, %v1383
        %v1512 = vpack.c.bf16 %v1388, %v1386
        %v1513 = vpack.c.bf16 %v1389, %v1387
        %v1514 = vpack.c.bf16 %v1392, %v1390
        %v1515 = vpack.c.bf16 %v1393, %v1391
        %v1516 = vpack.c.bf16 %v1396, %v1394
        %v1517 = vpack.c.bf16 %v1397, %v1395
        %v1518 = vpack.c.bf16 %v1400, %v1398
        %v1519 = vpack.c.bf16 %v1401, %v1399
        %v1520 = vpack.c.bf16 %v1404, %v1402
        %v1521 = vpack.c.bf16 %v1405, %v1403
        %v1522 = vpack.c.bf16 %v1408, %v1406
        %v1523 = vpack.c.bf16 %v1409, %v1407
        %v1524 = vpack.c.bf16 %v1412, %v1410
        %v1525 = vpack.c.bf16 %v1413, %v1411
        %v1526 = vpack.c.bf16 %v1416, %v1414
        %v1527 = vpack.c.bf16 %v1417, %v1415
        %v1528 = vpack.c.bf16 %v1420, %v1418
        %v1529 = vpack.c.bf16 %v1421, %v1419
        %v1530 = vpack.c.bf16 %v1424, %v1422
        %v1531 = vpack.c.bf16 %v1425, %v1423
        %v1532 = vpack.c.bf16 %v1428, %v1426
        %v1533 = vpack.c.bf16 %v1429, %v1427
        %v1534 = vpack.c.bf16 %v1432, %v1430
        %v1535 = vpack.c.bf16 %v1433, %v1431
        %v1536 = vpack.c.bf16 %v1436, %v1434
        %v1537 = vpack.c.bf16 %v1437, %v1435
        %v1538 = vpack.c.bf16 %v1440, %v1438
        %v1539 = vpack.c.bf16 %v1441, %v1439
        %v1540 = vpack.c.bf16 %v1444, %v1442
        %v1541 = vpack.c.bf16 %v1445, %v1443
        %v1542 = vpack.c.bf16 %v1448, %v1446
        %v1543 = vpack.c.bf16 %v1449, %v1447
        %v1544 = vpack.c.bf16 %v1452, %v1450
        %v1545 = vpack.c.bf16 %v1453, %v1451
        %v1546 = vpack.c.bf16 %v1456, %v1454
        %v1547 = vpack.c.bf16 %v1457, %v1455
        %v1548 = vpack.c.bf16 %v1460, %v1458
        %v1549 = vpack.c.bf16 %v1461, %v1459
        %v1550 = vpack.c.bf16 %v1464, %v1462
        %v1551 = vpack.c.bf16 %v1465, %v1463
        %v1552 = vpack.c.bf16 %v1468, %v1466
        %v1553 = vpack.c.bf16 %v1469, %v1467
        %v1554 = vpack.c.bf16 %v1472, %v1470
        %v1555 = vpack.c.bf16 %v1473, %v1471
        %v1556 = vpack.c.bf16 %v1476, %v1474
        %v1557 = vpack.c.bf16 %v1477, %v1475
        %v1558 = vpack.c.bf16 %v1480, %v1478
        %v1559 = vpack.c.bf16 %v1481, %v1479
        %v1560 = vpack.c.bf16 %v1484, %v1482
        %v1561 = vpack.c.bf16 %v1485, %v1483
        %v1562 = vpack.c.bf16 %v1488, %v1486
        %v1563 = vpack.c.bf16 %v1489, %v1487
        %v1564 = vpack.c.bf16 %v1492, %v1490
        %v1565 = vpack.c.bf16 %v1493, %v1491
        %v1566 = vpack.c.bf16 %v1496, %v1494
        %v1567 = vpack.c.bf16 %v1497, %v1495
        %v1568 = vpack.c.bf16 %v1500, %v1498
        %v1569 = vpack.c.bf16 %v1501, %v1499
        %v1570 = vpack.c.bf16 %v1504, %v1502
        %v1571 = vpack.c.bf16 %v1505, %v1503
        %v1572 = vpack.c.bf16 %v1508, %v1506
        %v1573 = vpack.c.bf16 %v1509, %v1507
        %v1574 = vld [vmem:[%s3] sm:$0xff]
        %v1575 = vld [vmem:[%s3 + $0x8] sm:$0xff]
        %v1576 = vld [vmem:[%s3 + $0x10] sm:$0xff]
        %v1577 = vld [vmem:[%s3 + $0x18] sm:$0xff]
        %v1578 = vld [vmem:[%s3 + $0x20] sm:$0xff]
        %v1579 = vld [vmem:[%s3 + $0x28] sm:$0xff]
        %v1580 = vld [vmem:[%s3 + $0x30] sm:$0xff]
        %v1581 = vld [vmem:[%s3 + $0x38] sm:$0xff]
        %v1582 = vld [vmem:[%s3 + $0x40] sm:$0xff]
        %v1583 = vld [vmem:[%s3 + $0x48] sm:$0xff]
        %v1584 = vld [vmem:[%s3 + $0x50] sm:$0xff]
        %v1585 = vld [vmem:[%s3 + $0x58] sm:$0xff]
        %v1586 = vld [vmem:[%s3 + $0x60] sm:$0xff]
        %v1587 = vld [vmem:[%s3 + $0x68] sm:$0xff]
        %v1588 = vld [vmem:[%s3 + $0x70] sm:$0xff]
        %v1589 = vld [vmem:[%s3 + $0x78] sm:$0xff]
        %v1590 = vld [vmem:[%s3 + $0x80] sm:$0xff]
        %v1591 = vld [vmem:[%s3 + $0x88] sm:$0xff]
        %v1592 = vld [vmem:[%s3 + $0x90] sm:$0xff]
        %v1593 = vld [vmem:[%s3 + $0x98] sm:$0xff]
        %v1594 = vld [vmem:[%s3 + $0xa0] sm:$0xff]
        %v1595 = vld [vmem:[%s3 + $0xa8] sm:$0xff]
        %v1596 = vld [vmem:[%s3 + $0xb0] sm:$0xff]
        %v1597 = vld [vmem:[%s3 + $0xb8] sm:$0xff]
        %v1598 = vld [vmem:[%s3 + $0xc0] sm:$0xff]
        %v1599 = vld [vmem:[%s3 + $0xc8] sm:$0xff]
        %v1600 = vld [vmem:[%s3 + $0xd0] sm:$0xff]
        %v1601 = vld [vmem:[%s3 + $0xd8] sm:$0xff]
        %v1602 = vld [vmem:[%s3 + $0xe0] sm:$0xff]
        %v1603 = vld [vmem:[%s3 + $0xe8] sm:$0xff]
        %v1604 = vld [vmem:[%s3 + $0xf0] sm:$0xff]
        %v1605 = vld [vmem:[%s3 + $0xf8] sm:$0xff]
        %v1606 = vld [vmem:[%s3 + $0x100] sm:$0xff]
        %v1607 = vld [vmem:[%s3 + $0x108] sm:$0xff]
        %v1608 = vld [vmem:[%s3 + $0x110] sm:$0xff]
        %v1609 = vld [vmem:[%s3 + $0x118] sm:$0xff]
        %v1610 = vld [vmem:[%s3 + $0x120] sm:$0xff]
        %v1611 = vld [vmem:[%s3 + $0x128] sm:$0xff]
        %v1612 = vld [vmem:[%s3 + $0x130] sm:$0xff]
        %v1613 = vld [vmem:[%s3 + $0x138] sm:$0xff]
        %v1614 = vld [vmem:[%s3 + $0x140] sm:$0xff]
        %v1615 = vld [vmem:[%s3 + $0x148] sm:$0xff]
        %v1616 = vld [vmem:[%s3 + $0x150] sm:$0xff]
        %v1617 = vld [vmem:[%s3 + $0x158] sm:$0xff]
        %v1618 = vld [vmem:[%s3 + $0x160] sm:$0xff]
        %v1619 = vld [vmem:[%s3 + $0x168] sm:$0xff]
        %v1620 = vld [vmem:[%s3 + $0x170] sm:$0xff]
        %v1621 = vld [vmem:[%s3 + $0x178] sm:$0xff]
        %v1622 = vld [vmem:[%s3 + $0x180] sm:$0xff]
        %v1623 = vld [vmem:[%s3 + $0x188] sm:$0xff]
        %v1624 = vld [vmem:[%s3 + $0x190] sm:$0xff]
        %v1625 = vld [vmem:[%s3 + $0x198] sm:$0xff]
        %v1626 = vld [vmem:[%s3 + $0x1a0] sm:$0xff]
        %v1627 = vld [vmem:[%s3 + $0x1a8] sm:$0xff]
        %v1628 = vld [vmem:[%s3 + $0x1b0] sm:$0xff]
        %v1629 = vld [vmem:[%s3 + $0x1b8] sm:$0xff]
        %v1630 = vld [vmem:[%s3 + $0x1c0] sm:$0xff]
        %v1631 = vld [vmem:[%s3 + $0x1c8] sm:$0xff]
        %v1632 = vld [vmem:[%s3 + $0x1d0] sm:$0xff]
        %v1633 = vld [vmem:[%s3 + $0x1d8] sm:$0xff]
        %v1634 = vld [vmem:[%s3 + $0x1e0] sm:$0xff]
        %v1635 = vld [vmem:[%s3 + $0x1e8] sm:$0xff]
        %v1636 = vld [vmem:[%s3 + $0x1f0] sm:$0xff]
        %v1637 = vld [vmem:[%s3 + $0x1f8] sm:$0xff]
        %v1638 = vld [vmem:[%s3 + $0x200] sm:$0xff]
        %v1639 = vld [vmem:[%s3 + $0x208] sm:$0xff]
        %v1640 = vld [vmem:[%s3 + $0x210] sm:$0xff]
        %v1641 = vld [vmem:[%s3 + $0x218] sm:$0xff]
        %v1642 = vld [vmem:[%s3 + $0x220] sm:$0xff]
        %v1643 = vld [vmem:[%s3 + $0x228] sm:$0xff]
        %v1644 = vld [vmem:[%s3 + $0x230] sm:$0xff]
        %v1645 = vld [vmem:[%s3 + $0x238] sm:$0xff]
        %v1646 = vld [vmem:[%s3 + $0x240] sm:$0xff]
        %v1647 = vld [vmem:[%s3 + $0x248] sm:$0xff]
        %v1648 = vld [vmem:[%s3 + $0x250] sm:$0xff]
        %v1649 = vld [vmem:[%s3 + $0x258] sm:$0xff]
        %v1650 = vld [vmem:[%s3 + $0x260] sm:$0xff]
        %v1651 = vld [vmem:[%s3 + $0x268] sm:$0xff]
        %v1652 = vld [vmem:[%s3 + $0x270] sm:$0xff]
        %v1653 = vld [vmem:[%s3 + $0x278] sm:$0xff]
        %v1654 = vld [vmem:[%s3 + $0x280] sm:$0xff]
        %v1655 = vld [vmem:[%s3 + $0x288] sm:$0xff]
        %v1656 = vld [vmem:[%s3 + $0x290] sm:$0xff]
        %v1657 = vld [vmem:[%s3 + $0x298] sm:$0xff]
        %v1658 = vld [vmem:[%s3 + $0x2a0] sm:$0xff]
        %v1659 = vld [vmem:[%s3 + $0x2a8] sm:$0xff]
        %v1660 = vld [vmem:[%s3 + $0x2b0] sm:$0xff]
        %v1661 = vld [vmem:[%s3 + $0x2b8] sm:$0xff]
        %v1662 = vld [vmem:[%s3 + $0x2c0] sm:$0xff]
        %v1663 = vld [vmem:[%s3 + $0x2c8] sm:$0xff]
        %v1664 = vld [vmem:[%s3 + $0x2d0] sm:$0xff]
        %v1665 = vld [vmem:[%s3 + $0x2d8] sm:$0xff]
        %v1666 = vld [vmem:[%s3 + $0x2e0] sm:$0xff]
        %v1667 = vld [vmem:[%s3 + $0x2e8] sm:$0xff]
        %v1668 = vld [vmem:[%s3 + $0x2f0] sm:$0xff]
        %v1669 = vld [vmem:[%s3 + $0x2f8] sm:$0xff]
        %v1670 = vld [vmem:[%s3 + $0x300] sm:$0xff]
        %v1671 = vld [vmem:[%s3 + $0x308] sm:$0xff]
        %v1672 = vld [vmem:[%s3 + $0x310] sm:$0xff]
        %v1673 = vld [vmem:[%s3 + $0x318] sm:$0xff]
        %v1674 = vld [vmem:[%s3 + $0x320] sm:$0xff]
        %v1675 = vld [vmem:[%s3 + $0x328] sm:$0xff]
        %v1676 = vld [vmem:[%s3 + $0x330] sm:$0xff]
        %v1677 = vld [vmem:[%s3 + $0x338] sm:$0xff]
        %v1678 = vld [vmem:[%s3 + $0x340] sm:$0xff]
        %v1679 = vld [vmem:[%s3 + $0x348] sm:$0xff]
        %v1680 = vld [vmem:[%s3 + $0x350] sm:$0xff]
        %v1681 = vld [vmem:[%s3 + $0x358] sm:$0xff]
        %v1682 = vld [vmem:[%s3 + $0x360] sm:$0xff]
        %v1683 = vld [vmem:[%s3 + $0x368] sm:$0xff]
        %v1684 = vld [vmem:[%s3 + $0x370] sm:$0xff]
        %v1685 = vld [vmem:[%s3 + $0x378] sm:$0xff]
        %v1686 = vld [vmem:[%s3 + $0x380] sm:$0xff]
        %v1687 = vld [vmem:[%s3 + $0x388] sm:$0xff]
        %v1688 = vld [vmem:[%s3 + $0x390] sm:$0xff]
        %v1689 = vld [vmem:[%s3 + $0x398] sm:$0xff]
        %v1690 = vld [vmem:[%s3 + $0x3a0] sm:$0xff]
        %v1691 = vld [vmem:[%s3 + $0x3a8] sm:$0xff]
        %v1692 = vld [vmem:[%s3 + $0x3b0] sm:$0xff]
        %v1693 = vld [vmem:[%s3 + $0x3b8] sm:$0xff]
        %v1694 = vld [vmem:[%s3 + $0x3c0] sm:$0xff]
        %v1695 = vld [vmem:[%s3 + $0x3c8] sm:$0xff]
        %v1696 = vld [vmem:[%s3 + $0x3d0] sm:$0xff]
        %v1697 = vld [vmem:[%s3 + $0x3d8] sm:$0xff]
        %v1698 = vld [vmem:[%s3 + $0x3e0] sm:$0xff]
        %v1699 = vld [vmem:[%s3 + $0x3e8] sm:$0xff]
        %v1700 = vld [vmem:[%s3 + $0x3f0] sm:$0xff]
        %v1701 = vld [vmem:[%s3 + $0x3f8] sm:$0xff]
        %v1702 = vld [vmem:[%s4] sm:$0xff]
        %v1703 = vld [vmem:[%s4 + $0x8] sm:$0xff]
        %v1704 = vld [vmem:[%s4 + $0x10] sm:$0xff]
        %v1705 = vld [vmem:[%s4 + $0x18] sm:$0xff]
        %v1706 = vld [vmem:[%s4 + $0x20] sm:$0xff]
        %v1707 = vld [vmem:[%s4 + $0x28] sm:$0xff]
        %v1708 = vld [vmem:[%s4 + $0x30] sm:$0xff]
        %v1709 = vld [vmem:[%s4 + $0x38] sm:$0xff]
        %v1710 = vld [vmem:[%s4 + $0x40] sm:$0xff]
        %v1711 = vld [vmem:[%s4 + $0x48] sm:$0xff]
        %v1712 = vld [vmem:[%s4 + $0x50] sm:$0xff]
        %v1713 = vld [vmem:[%s4 + $0x58] sm:$0xff]
        %v1714 = vld [vmem:[%s4 + $0x60] sm:$0xff]
        %v1715 = vld [vmem:[%s4 + $0x68] sm:$0xff]
        %v1716 = vld [vmem:[%s4 + $0x70] sm:$0xff]
        %v1717 = vld [vmem:[%s4 + $0x78] sm:$0xff]
        %v1718 = vld [vmem:[%s4 + $0x80] sm:$0xff]
        %v1719 = vld [vmem:[%s4 + $0x88] sm:$0xff]
        %v1720 = vld [vmem:[%s4 + $0x90] sm:$0xff]
        %v1721 = vld [vmem:[%s4 + $0x98] sm:$0xff]
        %v1722 = vld [vmem:[%s4 + $0xa0] sm:$0xff]
        %v1723 = vld [vmem:[%s4 + $0xa8] sm:$0xff]
        %v1724 = vld [vmem:[%s4 + $0xb0] sm:$0xff]
        %v1725 = vld [vmem:[%s4 + $0xb8] sm:$0xff]
        %v1726 = vld [vmem:[%s4 + $0xc0] sm:$0xff]
        %v1727 = vld [vmem:[%s4 + $0xc8] sm:$0xff]
        %v1728 = vld [vmem:[%s4 + $0xd0] sm:$0xff]
        %v1729 = vld [vmem:[%s4 + $0xd8] sm:$0xff]
        %v1730 = vld [vmem:[%s4 + $0xe0] sm:$0xff]
        %v1731 = vld [vmem:[%s4 + $0xe8] sm:$0xff]
        %v1732 = vld [vmem:[%s4 + $0xf0] sm:$0xff]
        %v1733 = vld [vmem:[%s4 + $0xf8] sm:$0xff]
        %v1734 = vld [vmem:[%s4 + $0x100] sm:$0xff]
        %v1735 = vld [vmem:[%s4 + $0x108] sm:$0xff]
        %v1736 = vld [vmem:[%s4 + $0x110] sm:$0xff]
        %v1737 = vld [vmem:[%s4 + $0x118] sm:$0xff]
        %v1738 = vld [vmem:[%s4 + $0x120] sm:$0xff]
        %v1739 = vld [vmem:[%s4 + $0x128] sm:$0xff]
        %v1740 = vld [vmem:[%s4 + $0x130] sm:$0xff]
        %v1741 = vld [vmem:[%s4 + $0x138] sm:$0xff]
        %v1742 = vld [vmem:[%s4 + $0x140] sm:$0xff]
        %v1743 = vld [vmem:[%s4 + $0x148] sm:$0xff]
        %v1744 = vld [vmem:[%s4 + $0x150] sm:$0xff]
        %v1745 = vld [vmem:[%s4 + $0x158] sm:$0xff]
        %v1746 = vld [vmem:[%s4 + $0x160] sm:$0xff]
        %v1747 = vld [vmem:[%s4 + $0x168] sm:$0xff]
        %v1748 = vld [vmem:[%s4 + $0x170] sm:$0xff]
        %v1749 = vld [vmem:[%s4 + $0x178] sm:$0xff]
        %v1750 = vld [vmem:[%s4 + $0x180] sm:$0xff]
        %v1751 = vld [vmem:[%s4 + $0x188] sm:$0xff]
        %v1752 = vld [vmem:[%s4 + $0x190] sm:$0xff]
        %v1753 = vld [vmem:[%s4 + $0x198] sm:$0xff]
        %v1754 = vld [vmem:[%s4 + $0x1a0] sm:$0xff]
        %v1755 = vld [vmem:[%s4 + $0x1a8] sm:$0xff]
        %v1756 = vld [vmem:[%s4 + $0x1b0] sm:$0xff]
        %v1757 = vld [vmem:[%s4 + $0x1b8] sm:$0xff]
        %v1758 = vld [vmem:[%s4 + $0x1c0] sm:$0xff]
        %v1759 = vld [vmem:[%s4 + $0x1c8] sm:$0xff]
        %v1760 = vld [vmem:[%s4 + $0x1d0] sm:$0xff]
        %v1761 = vld [vmem:[%s4 + $0x1d8] sm:$0xff]
        %v1762 = vld [vmem:[%s4 + $0x1e0] sm:$0xff]
        %v1763 = vld [vmem:[%s4 + $0x1e8] sm:$0xff]
        %v1764 = vld [vmem:[%s4 + $0x1f0] sm:$0xff]
        %v1765 = vld [vmem:[%s4 + $0x1f8] sm:$0xff]
        %1767 = vset.pattern.permute.xlu0 0
        %1768 = vperm.xlu0 %1767, %v1702
        %v1769 = vpop.permute.xlu0 %1768
        %1772 = vset.pattern.permute.xlu0 0
        %1773 = vperm.xlu0 %1772, %v1703
        %v1774 = vpop.permute.xlu0 %1773
        %1777 = vset.pattern.permute.xlu0 0
        %1778 = vperm.xlu0 %1777, %v1704
        %v1779 = vpop.permute.xlu0 %1778
        %1782 = vset.pattern.permute.xlu0 0
        %1783 = vperm.xlu0 %1782, %v1705
        %v1784 = vpop.permute.xlu0 %1783
        %1787 = vset.pattern.permute.xlu0 0
        %1788 = vperm.xlu0 %1787, %v1706
        %v1789 = vpop.permute.xlu0 %1788
        %1792 = vset.pattern.permute.xlu0 0
        %1793 = vperm.xlu0 %1792, %v1707
        %v1794 = vpop.permute.xlu0 %1793
        %1797 = vset.pattern.permute.xlu0 0
        %1798 = vperm.xlu0 %1797, %v1708
        %v1799 = vpop.permute.xlu0 %1798
        %1802 = vset.pattern.permute.xlu0 0
        %1803 = vperm.xlu0 %1802, %v1709
        %v1804 = vpop.permute.xlu0 %1803
        %1807 = vset.pattern.permute.xlu0 0
        %1808 = vperm.xlu0 %1807, %v1710
        %v1809 = vpop.permute.xlu0 %1808
        %1812 = vset.pattern.permute.xlu0 0
        %1813 = vperm.xlu0 %1812, %v1711
        %v1814 = vpop.permute.xlu0 %1813
        %1817 = vset.pattern.permute.xlu0 0
        %1818 = vperm.xlu0 %1817, %v1712
        %v1819 = vpop.permute.xlu0 %1818
        %1822 = vset.pattern.permute.xlu0 0
        %1823 = vperm.xlu0 %1822, %v1713
        %v1824 = vpop.permute.xlu0 %1823
        %1827 = vset.pattern.permute.xlu0 0
        %1828 = vperm.xlu0 %1827, %v1714
        %v1829 = vpop.permute.xlu0 %1828
        %1832 = vset.pattern.permute.xlu0 0
        %1833 = vperm.xlu0 %1832, %v1715
        %v1834 = vpop.permute.xlu0 %1833
        %1837 = vset.pattern.permute.xlu0 0
        %1838 = vperm.xlu0 %1837, %v1716
        %v1839 = vpop.permute.xlu0 %1838
        %1842 = vset.pattern.permute.xlu0 0
        %1843 = vperm.xlu0 %1842, %v1717
        %v1844 = vpop.permute.xlu0 %1843
        %1847 = vset.pattern.permute.xlu0 0
        %1848 = vperm.xlu0 %1847, %v1718
        %v1849 = vpop.permute.xlu0 %1848
        %1852 = vset.pattern.permute.xlu0 0
        %1853 = vperm.xlu0 %1852, %v1719
        %v1854 = vpop.permute.xlu0 %1853
        %1857 = vset.pattern.permute.xlu0 0
        %1858 = vperm.xlu0 %1857, %v1720
        %v1859 = vpop.permute.xlu0 %1858
        %1862 = vset.pattern.permute.xlu0 0
        %1863 = vperm.xlu0 %1862, %v1721
        %v1864 = vpop.permute.xlu0 %1863
        %1867 = vset.pattern.permute.xlu0 0
        %1868 = vperm.xlu0 %1867, %v1722
        %v1869 = vpop.permute.xlu0 %1868
        %1872 = vset.pattern.permute.xlu0 0
        %1873 = vperm.xlu0 %1872, %v1723
        %v1874 = vpop.permute.xlu0 %1873
        %1877 = vset.pattern.permute.xlu0 0
        %1878 = vperm.xlu0 %1877, %v1724
        %v1879 = vpop.permute.xlu0 %1878
        %1882 = vset.pattern.permute.xlu0 0
        %1883 = vperm.xlu0 %1882, %v1725
        %v1884 = vpop.permute.xlu0 %1883
        %1887 = vset.pattern.permute.xlu0 0
        %1888 = vperm.xlu0 %1887, %v1726
        %v1889 = vpop.permute.xlu0 %1888
        %1892 = vset.pattern.permute.xlu0 0
        %1893 = vperm.xlu0 %1892, %v1727
        %v1894 = vpop.permute.xlu0 %1893
        %1897 = vset.pattern.permute.xlu0 0
        %1898 = vperm.xlu0 %1897, %v1728
        %v1899 = vpop.permute.xlu0 %1898
        %1902 = vset.pattern.permute.xlu0 0
        %1903 = vperm.xlu0 %1902, %v1729
        %v1904 = vpop.permute.xlu0 %1903
        %1907 = vset.pattern.permute.xlu0 0
        %1908 = vperm.xlu0 %1907, %v1730
        %v1909 = vpop.permute.xlu0 %1908
        %1912 = vset.pattern.permute.xlu0 0
        %1913 = vperm.xlu0 %1912, %v1731
        %v1914 = vpop.permute.xlu0 %1913
        %1917 = vset.pattern.permute.xlu0 0
        %1918 = vperm.xlu0 %1917, %v1732
        %v1919 = vpop.permute.xlu0 %1918
        %1922 = vset.pattern.permute.xlu0 0
        %1923 = vperm.xlu0 %1922, %v1733
        %v1924 = vpop.permute.xlu0 %1923
        %1927 = vset.pattern.permute.xlu0 0
        %1928 = vperm.xlu0 %1927, %v1734
        %v1929 = vpop.permute.xlu0 %1928
        %1932 = vset.pattern.permute.xlu0 0
        %1933 = vperm.xlu0 %1932, %v1735
        %v1934 = vpop.permute.xlu0 %1933
        %1937 = vset.pattern.permute.xlu0 0
        %1938 = vperm.xlu0 %1937, %v1736
        %v1939 = vpop.permute.xlu0 %1938
        %1942 = vset.pattern.permute.xlu0 0
        %1943 = vperm.xlu0 %1942, %v1737
        %v1944 = vpop.permute.xlu0 %1943
        %1947 = vset.pattern.permute.xlu0 0
        %1948 = vperm.xlu0 %1947, %v1738
        %v1949 = vpop.permute.xlu0 %1948
        %1952 = vset.pattern.permute.xlu0 0
        %1953 = vperm.xlu0 %1952, %v1739
        %v1954 = vpop.permute.xlu0 %1953
        %1957 = vset.pattern.permute.xlu0 0
        %1958 = vperm.xlu0 %1957, %v1740
        %v1959 = vpop.permute.xlu0 %1958
        %1962 = vset.pattern.permute.xlu0 0
        %1963 = vperm.xlu0 %1962, %v1741
        %v1964 = vpop.permute.xlu0 %1963
        %1967 = vset.pattern.permute.xlu0 0
        %1968 = vperm.xlu0 %1967, %v1742
        %v1969 = vpop.permute.xlu0 %1968
        %1972 = vset.pattern.permute.xlu0 0
        %1973 = vperm.xlu0 %1972, %v1743
        %v1974 = vpop.permute.xlu0 %1973
        %1977 = vset.pattern.permute.xlu0 0
        %1978 = vperm.xlu0 %1977, %v1744
        %v1979 = vpop.permute.xlu0 %1978
        %1982 = vset.pattern.permute.xlu0 0
        %1983 = vperm.xlu0 %1982, %v1745
        %v1984 = vpop.permute.xlu0 %1983
        %1987 = vset.pattern.permute.xlu0 0
        %1988 = vperm.xlu0 %1987, %v1746
        %v1989 = vpop.permute.xlu0 %1988
        %1992 = vset.pattern.permute.xlu0 0
        %1993 = vperm.xlu0 %1992, %v1747
        %v1994 = vpop.permute.xlu0 %1993
        %1997 = vset.pattern.permute.xlu0 0
        %1998 = vperm.xlu0 %1997, %v1748
        %v1999 = vpop.permute.xlu0 %1998
        %2002 = vset.pattern.permute.xlu0 0
        %2003 = vperm.xlu0 %2002, %v1749
        %v2004 = vpop.permute.xlu0 %2003
        %2007 = vset.pattern.permute.xlu0 0
        %2008 = vperm.xlu0 %2007, %v1750
        %v2009 = vpop.permute.xlu0 %2008
        %2012 = vset.pattern.permute.xlu0 0
        %2013 = vperm.xlu0 %2012, %v1751
        %v2014 = vpop.permute.xlu0 %2013
        %2017 = vset.pattern.permute.xlu0 0
        %2018 = vperm.xlu0 %2017, %v1752
        %v2019 = vpop.permute.xlu0 %2018
        %2022 = vset.pattern.permute.xlu0 0
        %2023 = vperm.xlu0 %2022, %v1753
        %v2024 = vpop.permute.xlu0 %2023
        %2027 = vset.pattern.permute.xlu0 0
        %2028 = vperm.xlu0 %2027, %v1754
        %v2029 = vpop.permute.xlu0 %2028
        %2032 = vset.pattern.permute.xlu0 0
        %2033 = vperm.xlu0 %2032, %v1755
        %v2034 = vpop.permute.xlu0 %2033
        %2037 = vset.pattern.permute.xlu0 0
        %2038 = vperm.xlu0 %2037, %v1756
        %v2039 = vpop.permute.xlu0 %2038
        %2042 = vset.pattern.permute.xlu0 0
        %2043 = vperm.xlu0 %2042, %v1757
        %v2044 = vpop.permute.xlu0 %2043
        %2047 = vset.pattern.permute.xlu0 0
        %2048 = vperm.xlu0 %2047, %v1758
        %v2049 = vpop.permute.xlu0 %2048
        %2052 = vset.pattern.permute.xlu0 0
        %2053 = vperm.xlu0 %2052, %v1759
        %v2054 = vpop.permute.xlu0 %2053
        %2057 = vset.pattern.permute.xlu0 0
        %2058 = vperm.xlu0 %2057, %v1760
        %v2059 = vpop.permute.xlu0 %2058
        %2062 = vset.pattern.permute.xlu0 0
        %2063 = vperm.xlu0 %2062, %v1761
        %v2064 = vpop.permute.xlu0 %2063
        %2067 = vset.pattern.permute.xlu0 0
        %2068 = vperm.xlu0 %2067, %v1762
        %v2069 = vpop.permute.xlu0 %2068
        %2072 = vset.pattern.permute.xlu0 0
        %2073 = vperm.xlu0 %2072, %v1763
        %v2074 = vpop.permute.xlu0 %2073
        %2077 = vset.pattern.permute.xlu0 0
        %2078 = vperm.xlu0 %2077, %v1764
        %v2079 = vpop.permute.xlu0 %2078
        %2082 = vset.pattern.permute.xlu0 0
        %2083 = vperm.xlu0 %2082, %v1765
        %v2084 = vpop.permute.xlu0 %2083
        %v2214 = vunpack.c.l.b16 %v1574
        %v2215 = vunpack.c.h.b16 %v1574
        %v2216 = vunpack.c.l.b16 %v1575
        %v2217 = vunpack.c.h.b16 %v1575
        %v2218 = vunpack.c.l.b16 %v1576
        %v2219 = vunpack.c.h.b16 %v1576
        %v2220 = vunpack.c.l.b16 %v1577
        %v2221 = vunpack.c.h.b16 %v1577
        %v2222 = vunpack.c.l.b16 %v1578
        %v2223 = vunpack.c.h.b16 %v1578
        %v2224 = vunpack.c.l.b16 %v1579
        %v2225 = vunpack.c.h.b16 %v1579
        %v2226 = vunpack.c.l.b16 %v1580
        %v2227 = vunpack.c.h.b16 %v1580
        %v2228 = vunpack.c.l.b16 %v1581
        %v2229 = vunpack.c.h.b16 %v1581
        %v2230 = vunpack.c.l.b16 %v1582
        %v2231 = vunpack.c.h.b16 %v1582
        %v2232 = vunpack.c.l.b16 %v1583
        %v2233 = vunpack.c.h.b16 %v1583
        %v2234 = vunpack.c.l.b16 %v1584
        %v2235 = vunpack.c.h.b16 %v1584
        %v2236 = vunpack.c.l.b16 %v1585
        %v2237 = vunpack.c.h.b16 %v1585
        %v2238 = vunpack.c.l.b16 %v1586
        %v2239 = vunpack.c.h.b16 %v1586
        %v2240 = vunpack.c.l.b16 %v1587
        %v2241 = vunpack.c.h.b16 %v1587
        %v2242 = vunpack.c.l.b16 %v1588
        %v2243 = vunpack.c.h.b16 %v1588
        %v2244 = vunpack.c.l.b16 %v1589
        %v2245 = vunpack.c.h.b16 %v1589
        %v2246 = vunpack.c.l.b16 %v1590
        %v2247 = vunpack.c.h.b16 %v1590
        %v2248 = vunpack.c.l.b16 %v1591
        %v2249 = vunpack.c.h.b16 %v1591
        %v2250 = vunpack.c.l.b16 %v1592
        %v2251 = vunpack.c.h.b16 %v1592
        %v2252 = vunpack.c.l.b16 %v1593
        %v2253 = vunpack.c.h.b16 %v1593
        %v2254 = vunpack.c.l.b16 %v1594
        %v2255 = vunpack.c.h.b16 %v1594
        %v2256 = vunpack.c.l.b16 %v1595
        %v2257 = vunpack.c.h.b16 %v1595
        %v2258 = vunpack.c.l.b16 %v1596
        %v2259 = vunpack.c.h.b16 %v1596
        %v2260 = vunpack.c.l.b16 %v1597
        %v2261 = vunpack.c.h.b16 %v1597
        %v2262 = vunpack.c.l.b16 %v1598
        %v2263 = vunpack.c.h.b16 %v1598
        %v2264 = vunpack.c.l.b16 %v1599
        %v2265 = vunpack.c.h.b16 %v1599
        %v2266 = vunpack.c.l.b16 %v1600
        %v2267 = vunpack.c.h.b16 %v1600
        %v2268 = vunpack.c.l.b16 %v1601
        %v2269 = vunpack.c.h.b16 %v1601
        %v2270 = vunpack.c.l.b16 %v1602
        %v2271 = vunpack.c.h.b16 %v1602
        %v2272 = vunpack.c.l.b16 %v1603
        %v2273 = vunpack.c.h.b16 %v1603
        %v2274 = vunpack.c.l.b16 %v1604
        %v2275 = vunpack.c.h.b16 %v1604
        %v2276 = vunpack.c.l.b16 %v1605
        %v2277 = vunpack.c.h.b16 %v1605
        %v2278 = vunpack.c.l.b16 %v1606
        %v2279 = vunpack.c.h.b16 %v1606
        %v2280 = vunpack.c.l.b16 %v1607
        %v2281 = vunpack.c.h.b16 %v1607
        %v2282 = vunpack.c.l.b16 %v1608
        %v2283 = vunpack.c.h.b16 %v1608
        %v2284 = vunpack.c.l.b16 %v1609
        %v2285 = vunpack.c.h.b16 %v1609
        %v2286 = vunpack.c.l.b16 %v1610
        %v2287 = vunpack.c.h.b16 %v1610
        %v2288 = vunpack.c.l.b16 %v1611
        %v2289 = vunpack.c.h.b16 %v1611
        %v2290 = vunpack.c.l.b16 %v1612
        %v2291 = vunpack.c.h.b16 %v1612
        %v2292 = vunpack.c.l.b16 %v1613
        %v2293 = vunpack.c.h.b16 %v1613
        %v2294 = vunpack.c.l.b16 %v1614
        %v2295 = vunpack.c.h.b16 %v1614
        %v2296 = vunpack.c.l.b16 %v1615
        %v2297 = vunpack.c.h.b16 %v1615
        %v2298 = vunpack.c.l.b16 %v1616
        %v2299 = vunpack.c.h.b16 %v1616
        %v2300 = vunpack.c.l.b16 %v1617
        %v2301 = vunpack.c.h.b16 %v1617
        %v2302 = vunpack.c.l.b16 %v1618
        %v2303 = vunpack.c.h.b16 %v1618
        %v2304 = vunpack.c.l.b16 %v1619
        %v2305 = vunpack.c.h.b16 %v1619
        %v2306 = vunpack.c.l.b16 %v1620
        %v2307 = vunpack.c.h.b16 %v1620
        %v2308 = vunpack.c.l.b16 %v1621
        %v2309 = vunpack.c.h.b16 %v1621
        %v2310 = vunpack.c.l.b16 %v1622
        %v2311 = vunpack.c.h.b16 %v1622
        %v2312 = vunpack.c.l.b16 %v1623
        %v2313 = vunpack.c.h.b16 %v1623
        %v2314 = vunpack.c.l.b16 %v1624
        %v2315 = vunpack.c.h.b16 %v1624
        %v2316 = vunpack.c.l.b16 %v1625
        %v2317 = vunpack.c.h.b16 %v1625
        %v2318 = vunpack.c.l.b16 %v1626
        %v2319 = vunpack.c.h.b16 %v1626
        %v2320 = vunpack.c.l.b16 %v1627
        %v2321 = vunpack.c.h.b16 %v1627
        %v2322 = vunpack.c.l.b16 %v1628
        %v2323 = vunpack.c.h.b16 %v1628
        %v2324 = vunpack.c.l.b16 %v1629
        %v2325 = vunpack.c.h.b16 %v1629
        %v2326 = vunpack.c.l.b16 %v1630
        %v2327 = vunpack.c.h.b16 %v1630
        %v2328 = vunpack.c.l.b16 %v1631
        %v2329 = vunpack.c.h.b16 %v1631
        %v2330 = vunpack.c.l.b16 %v1632
        %v2331 = vunpack.c.h.b16 %v1632
        %v2332 = vunpack.c.l.b16 %v1633
        %v2333 = vunpack.c.h.b16 %v1633
        %v2334 = vunpack.c.l.b16 %v1634
        %v2335 = vunpack.c.h.b16 %v1634
        %v2336 = vunpack.c.l.b16 %v1635
        %v2337 = vunpack.c.h.b16 %v1635
        %v2338 = vunpack.c.l.b16 %v1636
        %v2339 = vunpack.c.h.b16 %v1636
        %v2340 = vunpack.c.l.b16 %v1637
        %v2341 = vunpack.c.h.b16 %v1637
        %v2342 = vunpack.c.l.b16 %v1638
        %v2343 = vunpack.c.h.b16 %v1638
        %v2344 = vunpack.c.l.b16 %v1639
        %v2345 = vunpack.c.h.b16 %v1639
        %v2346 = vunpack.c.l.b16 %v1640
        %v2347 = vunpack.c.h.b16 %v1640
        %v2348 = vunpack.c.l.b16 %v1641
        %v2349 = vunpack.c.h.b16 %v1641
        %v2350 = vunpack.c.l.b16 %v1642
        %v2351 = vunpack.c.h.b16 %v1642
        %v2352 = vunpack.c.l.b16 %v1643
        %v2353 = vunpack.c.h.b16 %v1643
        %v2354 = vunpack.c.l.b16 %v1644
        %v2355 = vunpack.c.h.b16 %v1644
        %v2356 = vunpack.c.l.b16 %v1645
        %v2357 = vunpack.c.h.b16 %v1645
        %v2358 = vunpack.c.l.b16 %v1646
        %v2359 = vunpack.c.h.b16 %v1646
        %v2360 = vunpack.c.l.b16 %v1647
        %v2361 = vunpack.c.h.b16 %v1647
        %v2362 = vunpack.c.l.b16 %v1648
        %v2363 = vunpack.c.h.b16 %v1648
        %v2364 = vunpack.c.l.b16 %v1649
        %v2365 = vunpack.c.h.b16 %v1649
        %v2366 = vunpack.c.l.b16 %v1650
        %v2367 = vunpack.c.h.b16 %v1650
        %v2368 = vunpack.c.l.b16 %v1651
        %v2369 = vunpack.c.h.b16 %v1651
        %v2370 = vunpack.c.l.b16 %v1652
        %v2371 = vunpack.c.h.b16 %v1652
        %v2372 = vunpack.c.l.b16 %v1653
        %v2373 = vunpack.c.h.b16 %v1653
        %v2374 = vunpack.c.l.b16 %v1654
        %v2375 = vunpack.c.h.b16 %v1654
        %v2376 = vunpack.c.l.b16 %v1655
        %v2377 = vunpack.c.h.b16 %v1655
        %v2378 = vunpack.c.l.b16 %v1656
        %v2379 = vunpack.c.h.b16 %v1656
        %v2380 = vunpack.c.l.b16 %v1657
        %v2381 = vunpack.c.h.b16 %v1657
        %v2382 = vunpack.c.l.b16 %v1658
        %v2383 = vunpack.c.h.b16 %v1658
        %v2384 = vunpack.c.l.b16 %v1659
        %v2385 = vunpack.c.h.b16 %v1659
        %v2386 = vunpack.c.l.b16 %v1660
        %v2387 = vunpack.c.h.b16 %v1660
        %v2388 = vunpack.c.l.b16 %v1661
        %v2389 = vunpack.c.h.b16 %v1661
        %v2390 = vunpack.c.l.b16 %v1662
        %v2391 = vunpack.c.h.b16 %v1662
        %v2392 = vunpack.c.l.b16 %v1663
        %v2393 = vunpack.c.h.b16 %v1663
        %v2394 = vunpack.c.l.b16 %v1664
        %v2395 = vunpack.c.h.b16 %v1664
        %v2396 = vunpack.c.l.b16 %v1665
        %v2397 = vunpack.c.h.b16 %v1665
        %v2398 = vunpack.c.l.b16 %v1666
        %v2399 = vunpack.c.h.b16 %v1666
        %v2400 = vunpack.c.l.b16 %v1667
        %v2401 = vunpack.c.h.b16 %v1667
        %v2402 = vunpack.c.l.b16 %v1668
        %v2403 = vunpack.c.h.b16 %v1668
        %v2404 = vunpack.c.l.b16 %v1669
        %v2405 = vunpack.c.h.b16 %v1669
        %v2406 = vunpack.c.l.b16 %v1670
        %v2407 = vunpack.c.h.b16 %v1670
        %v2408 = vunpack.c.l.b16 %v1671
        %v2409 = vunpack.c.h.b16 %v1671
        %v2410 = vunpack.c.l.b16 %v1672
        %v2411 = vunpack.c.h.b16 %v1672
        %v2412 = vunpack.c.l.b16 %v1673
        %v2413 = vunpack.c.h.b16 %v1673
        %v2414 = vunpack.c.l.b16 %v1674
        %v2415 = vunpack.c.h.b16 %v1674
        %v2416 = vunpack.c.l.b16 %v1675
        %v2417 = vunpack.c.h.b16 %v1675
        %v2418 = vunpack.c.l.b16 %v1676
        %v2419 = vunpack.c.h.b16 %v1676
        %v2420 = vunpack.c.l.b16 %v1677
        %v2421 = vunpack.c.h.b16 %v1677
        %v2422 = vunpack.c.l.b16 %v1678
        %v2423 = vunpack.c.h.b16 %v1678
        %v2424 = vunpack.c.l.b16 %v1679
        %v2425 = vunpack.c.h.b16 %v1679
        %v2426 = vunpack.c.l.b16 %v1680
        %v2427 = vunpack.c.h.b16 %v1680
        %v2428 = vunpack.c.l.b16 %v1681
        %v2429 = vunpack.c.h.b16 %v1681
        %v2430 = vunpack.c.l.b16 %v1682
        %v2431 = vunpack.c.h.b16 %v1682
        %v2432 = vunpack.c.l.b16 %v1683
        %v2433 = vunpack.c.h.b16 %v1683
        %v2434 = vunpack.c.l.b16 %v1684
        %v2435 = vunpack.c.h.b16 %v1684
        %v2436 = vunpack.c.l.b16 %v1685
        %v2437 = vunpack.c.h.b16 %v1685
        %v2438 = vunpack.c.l.b16 %v1686
        %v2439 = vunpack.c.h.b16 %v1686
        %v2440 = vunpack.c.l.b16 %v1687
        %v2441 = vunpack.c.h.b16 %v1687
        %v2442 = vunpack.c.l.b16 %v1688
        %v2443 = vunpack.c.h.b16 %v1688
        %v2444 = vunpack.c.l.b16 %v1689
        %v2445 = vunpack.c.h.b16 %v1689
        %v2446 = vunpack.c.l.b16 %v1690
        %v2447 = vunpack.c.h.b16 %v1690
        %v2448 = vunpack.c.l.b16 %v1691
        %v2449 = vunpack.c.h.b16 %v1691
        %v2450 = vunpack.c.l.b16 %v1692
        %v2451 = vunpack.c.h.b16 %v1692
        %v2452 = vunpack.c.l.b16 %v1693
        %v2453 = vunpack.c.h.b16 %v1693
        %v2454 = vunpack.c.l.b16 %v1694
        %v2455 = vunpack.c.h.b16 %v1694
        %v2456 = vunpack.c.l.b16 %v1695
        %v2457 = vunpack.c.h.b16 %v1695
        %v2458 = vunpack.c.l.b16 %v1696
        %v2459 = vunpack.c.h.b16 %v1696
        %v2460 = vunpack.c.l.b16 %v1697
        %v2461 = vunpack.c.h.b16 %v1697
        %v2462 = vunpack.c.l.b16 %v1698
        %v2463 = vunpack.c.h.b16 %v1698
        %v2464 = vunpack.c.l.b16 %v1699
        %v2465 = vunpack.c.h.b16 %v1699
        %v2466 = vunpack.c.l.b16 %v1700
        %v2467 = vunpack.c.h.b16 %v1700
        %v2468 = vunpack.c.l.b16 %v1701
        %v2469 = vunpack.c.h.b16 %v1701
        %v2470 = vpack.c.b16 %v2218, %v2214
        %v2471 = vpack.c.b16 %v2219, %v2215
        %v2472 = vpack.c.b16 %v2220, %v2216
        %v2473 = vpack.c.b16 %v2221, %v2217
        %v2474 = vpack.c.b16 %v2226, %v2222
        %v2475 = vpack.c.b16 %v2227, %v2223
        %v2476 = vpack.c.b16 %v2228, %v2224
        %v2477 = vpack.c.b16 %v2229, %v2225
        %v2478 = vpack.c.b16 %v2234, %v2230
        %v2479 = vpack.c.b16 %v2235, %v2231
        %v2480 = vpack.c.b16 %v2236, %v2232
        %v2481 = vpack.c.b16 %v2237, %v2233
        %v2482 = vpack.c.b16 %v2242, %v2238
        %v2483 = vpack.c.b16 %v2243, %v2239
        %v2484 = vpack.c.b16 %v2244, %v2240
        %v2485 = vpack.c.b16 %v2245, %v2241
        %v2486 = vpack.c.b16 %v2250, %v2246
        %v2487 = vpack.c.b16 %v2251, %v2247
        %v2488 = vpack.c.b16 %v2252, %v2248
        %v2489 = vpack.c.b16 %v2253, %v2249
        %v2490 = vpack.c.b16 %v2258, %v2254
        %v2491 = vpack.c.b16 %v2259, %v2255
        %v2492 = vpack.c.b16 %v2260, %v2256
        %v2493 = vpack.c.b16 %v2261, %v2257
        %v2494 = vpack.c.b16 %v2266, %v2262
        %v2495 = vpack.c.b16 %v2267, %v2263
        %v2496 = vpack.c.b16 %v2268, %v2264
        %v2497 = vpack.c.b16 %v2269, %v2265
        %v2498 = vpack.c.b16 %v2274, %v2270
        %v2499 = vpack.c.b16 %v2275, %v2271
        %v2500 = vpack.c.b16 %v2276, %v2272
        %v2501 = vpack.c.b16 %v2277, %v2273
        %v2502 = vpack.c.b16 %v2282, %v2278
        %v2503 = vpack.c.b16 %v2283, %v2279
        %v2504 = vpack.c.b16 %v2284, %v2280
        %v2505 = vpack.c.b16 %v2285, %v2281
        %v2506 = vpack.c.b16 %v2290, %v2286
        %v2507 = vpack.c.b16 %v2291, %v2287
        %v2508 = vpack.c.b16 %v2292, %v2288
        %v2509 = vpack.c.b16 %v2293, %v2289
        %v2510 = vpack.c.b16 %v2298, %v2294
        %v2511 = vpack.c.b16 %v2299, %v2295
        %v2512 = vpack.c.b16 %v2300, %v2296
        %v2513 = vpack.c.b16 %v2301, %v2297
        %v2514 = vpack.c.b16 %v2306, %v2302
        %v2515 = vpack.c.b16 %v2307, %v2303
        %v2516 = vpack.c.b16 %v2308, %v2304
        %v2517 = vpack.c.b16 %v2309, %v2305
        %v2518 = vpack.c.b16 %v2314, %v2310
        %v2519 = vpack.c.b16 %v2315, %v2311
        %v2520 = vpack.c.b16 %v2316, %v2312
        %v2521 = vpack.c.b16 %v2317, %v2313
        %v2522 = vpack.c.b16 %v2322, %v2318
        %v2523 = vpack.c.b16 %v2323, %v2319
        %v2524 = vpack.c.b16 %v2324, %v2320
        %v2525 = vpack.c.b16 %v2325, %v2321
        %v2526 = vpack.c.b16 %v2330, %v2326
        %v2527 = vpack.c.b16 %v2331, %v2327
        %v2528 = vpack.c.b16 %v2332, %v2328
        %v2529 = vpack.c.b16 %v2333, %v2329
        %v2530 = vpack.c.b16 %v2338, %v2334
        %v2531 = vpack.c.b16 %v2339, %v2335
        %v2532 = vpack.c.b16 %v2340, %v2336
        %v2533 = vpack.c.b16 %v2341, %v2337
        %v2534 = vpack.c.b16 %v2346, %v2342
        %v2535 = vpack.c.b16 %v2347, %v2343
        %v2536 = vpack.c.b16 %v2348, %v2344
        %v2537 = vpack.c.b16 %v2349, %v2345
        %v2538 = vpack.c.b16 %v2354, %v2350
        %v2539 = vpack.c.b16 %v2355, %v2351
        %v2540 = vpack.c.b16 %v2356, %v2352
        %v2541 = vpack.c.b16 %v2357, %v2353
        %v2542 = vpack.c.b16 %v2362, %v2358
        %v2543 = vpack.c.b16 %v2363, %v2359
        %v2544 = vpack.c.b16 %v2364, %v2360
        %v2545 = vpack.c.b16 %v2365, %v2361
        %v2546 = vpack.c.b16 %v2370, %v2366
        %v2547 = vpack.c.b16 %v2371, %v2367
        %v2548 = vpack.c.b16 %v2372, %v2368
        %v2549 = vpack.c.b16 %v2373, %v2369
        %v2550 = vpack.c.b16 %v2378, %v2374
        %v2551 = vpack.c.b16 %v2379, %v2375
        %v2552 = vpack.c.b16 %v2380, %v2376
        %v2553 = vpack.c.b16 %v2381, %v2377
        %v2554 = vpack.c.b16 %v2386, %v2382
        %v2555 = vpack.c.b16 %v2387, %v2383
        %v2556 = vpack.c.b16 %v2388, %v2384
        %v2557 = vpack.c.b16 %v2389, %v2385
        %v2558 = vpack.c.b16 %v2394, %v2390
        %v2559 = vpack.c.b16 %v2395, %v2391
        %v2560 = vpack.c.b16 %v2396, %v2392
        %v2561 = vpack.c.b16 %v2397, %v2393
        %v2562 = vpack.c.b16 %v2402, %v2398
        %v2563 = vpack.c.b16 %v2403, %v2399
        %v2564 = vpack.c.b16 %v2404, %v2400
        %v2565 = vpack.c.b16 %v2405, %v2401
        %v2566 = vpack.c.b16 %v2410, %v2406
        %v2567 = vpack.c.b16 %v2411, %v2407
        %v2568 = vpack.c.b16 %v2412, %v2408
        %v2569 = vpack.c.b16 %v2413, %v2409
        %v2570 = vpack.c.b16 %v2418, %v2414
        %v2571 = vpack.c.b16 %v2419, %v2415
        %v2572 = vpack.c.b16 %v2420, %v2416
        %v2573 = vpack.c.b16 %v2421, %v2417
        %v2574 = vpack.c.b16 %v2426, %v2422
        %v2575 = vpack.c.b16 %v2427, %v2423
        %v2576 = vpack.c.b16 %v2428, %v2424
        %v2577 = vpack.c.b16 %v2429, %v2425
        %v2578 = vpack.c.b16 %v2434, %v2430
        %v2579 = vpack.c.b16 %v2435, %v2431
        %v2580 = vpack.c.b16 %v2436, %v2432
        %v2581 = vpack.c.b16 %v2437, %v2433
        %v2582 = vpack.c.b16 %v2442, %v2438
        %v2583 = vpack.c.b16 %v2443, %v2439
        %v2584 = vpack.c.b16 %v2444, %v2440
        %v2585 = vpack.c.b16 %v2445, %v2441
        %v2586 = vpack.c.b16 %v2450, %v2446
        %v2587 = vpack.c.b16 %v2451, %v2447
        %v2588 = vpack.c.b16 %v2452, %v2448
        %v2589 = vpack.c.b16 %v2453, %v2449
        %v2590 = vpack.c.b16 %v2458, %v2454
        %v2591 = vpack.c.b16 %v2459, %v2455
        %v2592 = vpack.c.b16 %v2460, %v2456
        %v2593 = vpack.c.b16 %v2461, %v2457
        %v2594 = vpack.c.b16 %v2466, %v2462
        %v2595 = vpack.c.b16 %v2467, %v2463
        %v2596 = vpack.c.b16 %v2468, %v2464
        %v2597 = vpack.c.b16 %v2469, %v2465
        %2726 = vmatprep.subr.bf16.mxu0 %v1511
        %2727 = vmatpush1.bf16.msra.mxu0 %v1510
        %2728 = vmatprep.subr.bf16.mxu0 %v1513
        %2729 = vmatpush1.bf16.msra.mxu0 %v1512
        %2730 = vmatprep.subr.bf16.mxu0 %v1515
        %2731 = vmatpush1.bf16.msra.mxu0 %v1514
        %2732 = vmatprep.subr.bf16.mxu0 %v1517
        %2733 = vmatpush1.bf16.msra.mxu0 %v1516
        %2734 = vmatprep.subr.bf16.mxu0 %v1519
        %2735 = vmatpush1.bf16.msra.mxu0 %v1518
        %2736 = vmatprep.subr.bf16.mxu0 %v1521
        %2737 = vmatpush1.bf16.msra.mxu0 %v1520
        %2738 = vmatprep.subr.bf16.mxu0 %v1523
        %2739 = vmatpush1.bf16.msra.mxu0 %v1522
        %2740 = vmatprep.subr.bf16.mxu0 %v1525
        %2741 = vmatpush1.bf16.msra.mxu0 %v1524
        %2742 = vmatprep.subr.bf16.mxu0 %v1527
        %2743 = vmatpush1.bf16.msra.mxu0 %v1526
        %2744 = vmatprep.subr.bf16.mxu0 %v1529
        %2745 = vmatpush1.bf16.msra.mxu0 %v1528
        %2746 = vmatprep.subr.bf16.mxu0 %v1531
        %2747 = vmatpush1.bf16.msra.mxu0 %v1530
        %2748 = vmatprep.subr.bf16.mxu0 %v1533
        %2749 = vmatpush1.bf16.msra.mxu0 %v1532
        %2750 = vmatprep.subr.bf16.mxu0 %v1535
        %2751 = vmatpush1.bf16.msra.mxu0 %v1534
        %2752 = vmatprep.subr.bf16.mxu0 %v1537
        %2753 = vmatpush1.bf16.msra.mxu0 %v1536
        %2754 = vmatprep.subr.bf16.mxu0 %v1539
        %2755 = vmatpush1.bf16.msra.mxu0 %v1538
        %2756 = vmatprep.subr.bf16.mxu0 %v1541
        %2757 = vmatpush1.bf16.msra.mxu0 %v1540
        %2758 = vmatprep.mubr.bf16.mxu0 %v2471
        %2759 = vmatmul.mubr.bf16.gmra.mrb[0].mxu0 %v2470
        %v2760 = vpop.f32.mrb[0].mxu0
        %v2761 = vadd.f32 %v1769, %v2760
        %v2762 = vpop.f32.mrb[0].mxu0
        %v2763 = vadd.f32 %v1769, %v2762
        %v2764 = vpop.f32.mrb[0].mxu0
        %v2765 = vadd.f32 %v1774, %v2764
        %v2766 = vpop.f32.mrb[0].mxu0
        %v2767 = vadd.f32 %v1774, %v2766
        %2768 = vmatprep.mubr.bf16.mxu0 %v2475
        %2769 = vmatmul.mubr.bf16.gmra.mrb[0].mxu0 %v2474
        %v2770 = vpop.f32.mrb[0].mxu0
        %v2771 = vadd.f32 %v1779, %v2770
        %v2772 = vpop.f32.mrb[0].mxu0
        %v2773 = vadd.f32 %v1779, %v2772
        %v2774 = vpop.f32.mrb[0].mxu0
        %v2775 = vadd.f32 %v1784, %v2774
        %v2776 = vpop.f32.mrb[0].mxu0
        %v2777 = vadd.f32 %v1784, %v2776
        %2778 = vmatprep.mubr.bf16.mxu0 %v2479
        %2779 = vmatmul.mubr.bf16.gmra.mrb[0].mxu0 %v2478
        %v2780 = vpop.f32.mrb[0].mxu0
        %v2781 = vadd.f32 %v1789, %v2780
        %v2782 = vpop.f32.mrb[0].mxu0
        %v2783 = vadd.f32 %v1789, %v2782
        %v2784 = vpop.f32.mrb[0].mxu0
        %v2785 = vadd.f32 %v1794, %v2784
        %v2786 = vpop.f32.mrb[0].mxu0
        %v2787 = vadd.f32 %v1794, %v2786
        %2788 = vmatprep.mubr.bf16.mxu0 %v2483
        %2789 = vmatmul.mubr.bf16.gmra.mrb[0].mxu0 %v2482
        %v2790 = vpop.f32.mrb[0].mxu0
        %v2791 = vadd.f32 %v1799, %v2790
        %v2792 = vpop.f32.mrb[0].mxu0
        %v2793 = vadd.f32 %v1799, %v2792
        %v2794 = vpop.f32.mrb[0].mxu0
        %v2795 = vadd.f32 %v1804, %v2794
        %v2796 = vpop.f32.mrb[0].mxu0
        %v2797 = vadd.f32 %v1804, %v2796
        %2798 = vmatprep.mubr.bf16.mxu0 %v2487
        %2799 = vmatmul.mubr.bf16.gmra.mrb[0].mxu0 %v2486
        %v2800 = vpop.f32.mrb[0].mxu0
        %v2801 = vadd.f32 %v1809, %v2800
        %v2802 = vpop.f32.mrb[0].mxu0
        %v2803 = vadd.f32 %v1809, %v2802
        %v2804 = vpop.f32.mrb[0].mxu0
        %v2805 = vadd.f32 %v1814, %v2804
        %v2806 = vpop.f32.mrb[0].mxu0
        %v2807 = vadd.f32 %v1814, %v2806
        %2808 = vmatprep.mubr.bf16.mxu0 %v2491
        %2809 = vmatmul.mubr.bf16.gmra.mrb[0].mxu0 %v2490
        %v2810 = vpop.f32.mrb[0].mxu0
        %v2811 = vadd.f32 %v1819, %v2810
        %v2812 = vpop.f32.mrb[0].mxu0
        %v2813 = vadd.f32 %v1819, %v2812
        %v2814 = vpop.f32.mrb[0].mxu0
        %v2815 = vadd.f32 %v1824, %v2814
        %v2816 = vpop.f32.mrb[0].mxu0
        %v2817 = vadd.f32 %v1824, %v2816
        %2818 = vmatprep.mubr.bf16.mxu0 %v2495
        %2819 = vmatmul.mubr.bf16.gmra.mrb[0].mxu0 %v2494
        %v2820 = vpop.f32.mrb[0].mxu0
        %v2821 = vadd.f32 %v1829, %v2820
        %v2822 = vpop.f32.mrb[0].mxu0
        %v2823 = vadd.f32 %v1829, %v2822
        %v2824 = vpop.f32.mrb[0].mxu0
        %v2825 = vadd.f32 %v1834, %v2824
        %v2826 = vpop.f32.mrb[0].mxu0
        %v2827 = vadd.f32 %v1834, %v2826
        %2828 = vmatprep.mubr.bf16.mxu0 %v2499
        %2829 = vmatmul.mubr.bf16.gmra.mrb[0].mxu0 %v2498
        %v2830 = vpop.f32.mrb[0].mxu0
        %v2831 = vadd.f32 %v1839, %v2830
        %v2832 = vpop.f32.mrb[0].mxu0
        %v2833 = vadd.f32 %v1839, %v2832
        %v2834 = vpop.f32.mrb[0].mxu0
        %v2835 = vadd.f32 %v1844, %v2834
        %v2836 = vpop.f32.mrb[0].mxu0
        %v2837 = vadd.f32 %v1844, %v2836
        %2838 = vmatprep.mubr.bf16.mxu0 %v2503
        %2839 = vmatmul.mubr.bf16.gmra.mrb[0].mxu0 %v2502
        %v2840 = vpop.f32.mrb[0].mxu0
        %v2841 = vadd.f32 %v1849, %v2840
        %v2842 = vpop.f32.mrb[0].mxu0
        %v2843 = vadd.f32 %v1849, %v2842
        %v2844 = vpop.f32.mrb[0].mxu0
        %v2845 = vadd.f32 %v1854, %v2844
        %v2846 = vpop.f32.mrb[0].mxu0
        %v2847 = vadd.f32 %v1854, %v2846
        %2848 = vmatprep.mubr.bf16.mxu0 %v2507
        %2849 = vmatmul.mubr.bf16.gmra.mrb[0].mxu0 %v2506
        %v2850 = vpop.f32.mrb[0].mxu0
        %v2851 = vadd.f32 %v1859, %v2850
        %v2852 = vpop.f32.mrb[0].mxu0
        %v2853 = vadd.f32 %v1859, %v2852
        %v2854 = vpop.f32.mrb[0].mxu0
        %v2855 = vadd.f32 %v1864, %v2854
        %v2856 = vpop.f32.mrb[0].mxu0
        %v2857 = vadd.f32 %v1864, %v2856
        %2858 = vmatprep.mubr.bf16.mxu0 %v2511
        %2859 = vmatmul.mubr.bf16.gmra.mrb[0].mxu0 %v2510
        %v2860 = vpop.f32.mrb[0].mxu0
        %v2861 = vadd.f32 %v1869, %v2860
        %v2862 = vpop.f32.mrb[0].mxu0
        %v2863 = vadd.f32 %v1869, %v2862
        %v2864 = vpop.f32.mrb[0].mxu0
        %v2865 = vadd.f32 %v1874, %v2864
        %v2866 = vpop.f32.mrb[0].mxu0
        %v2867 = vadd.f32 %v1874, %v2866
        %2868 = vmatprep.mubr.bf16.mxu0 %v2515
        %2869 = vmatmul.mubr.bf16.gmra.mrb[0].mxu0 %v2514
        %v2870 = vpop.f32.mrb[0].mxu0
        %v2871 = vadd.f32 %v1879, %v2870
        %v2872 = vpop.f32.mrb[0].mxu0
        %v2873 = vadd.f32 %v1879, %v2872
        %v2874 = vpop.f32.mrb[0].mxu0
        %v2875 = vadd.f32 %v1884, %v2874
        %v2876 = vpop.f32.mrb[0].mxu0
        %v2877 = vadd.f32 %v1884, %v2876
        %2878 = vmatprep.mubr.bf16.mxu0 %v2519
        %2879 = vmatmul.mubr.bf16.gmra.mrb[0].mxu0 %v2518
        %v2880 = vpop.f32.mrb[0].mxu0
        %v2881 = vadd.f32 %v1889, %v2880
        %v2882 = vpop.f32.mrb[0].mxu0
        %v2883 = vadd.f32 %v1889, %v2882
        %v2884 = vpop.f32.mrb[0].mxu0
        %v2885 = vadd.f32 %v1894, %v2884
        %v2886 = vpop.f32.mrb[0].mxu0
        %v2887 = vadd.f32 %v1894, %v2886
        %2888 = vmatprep.mubr.bf16.mxu0 %v2523
        %2889 = vmatmul.mubr.bf16.gmra.mrb[0].mxu0 %v2522
        %v2890 = vpop.f32.mrb[0].mxu0
        %v2891 = vadd.f32 %v1899, %v2890
        %v2892 = vpop.f32.mrb[0].mxu0
        %v2893 = vadd.f32 %v1899, %v2892
        %v2894 = vpop.f32.mrb[0].mxu0
        %v2895 = vadd.f32 %v1904, %v2894
        %v2896 = vpop.f32.mrb[0].mxu0
        %v2897 = vadd.f32 %v1904, %v2896
        %2898 = vmatprep.mubr.bf16.mxu0 %v2527
        %2899 = vmatmul.mubr.bf16.gmra.mrb[0].mxu0 %v2526
        %v2900 = vpop.f32.mrb[0].mxu0
        %v2901 = vadd.f32 %v1909, %v2900
        %v2902 = vpop.f32.mrb[0].mxu0
        %v2903 = vadd.f32 %v1909, %v2902
        %v2904 = vpop.f32.mrb[0].mxu0
        %v2905 = vadd.f32 %v1914, %v2904
        %v2906 = vpop.f32.mrb[0].mxu0
        %v2907 = vadd.f32 %v1914, %v2906
        %2908 = vmatprep.mubr.bf16.mxu0 %v2531
        %2909 = vmatmul.mubr.bf16.gmra.mrb[0].mxu0 %v2530
        %v2910 = vpop.f32.mrb[0].mxu0
        %v2911 = vadd.f32 %v1919, %v2910
        %v2912 = vpop.f32.mrb[0].mxu0
        %v2913 = vadd.f32 %v1919, %v2912
        %v2914 = vpop.f32.mrb[0].mxu0
        %v2915 = vadd.f32 %v1924, %v2914
        %v2916 = vpop.f32.mrb[0].mxu0
        %v2917 = vadd.f32 %v1924, %v2916
        %2918 = vmatprep.mubr.bf16.mxu0 %v2535
        %2919 = vmatmul.mubr.bf16.gmra.mrb[0].mxu0 %v2534
        %v2920 = vpop.f32.mrb[0].mxu0
        %v2921 = vadd.f32 %v1929, %v2920
        %v2922 = vpop.f32.mrb[0].mxu0
        %v2923 = vadd.f32 %v1929, %v2922
        %v2924 = vpop.f32.mrb[0].mxu0
        %v2925 = vadd.f32 %v1934, %v2924
        %v2926 = vpop.f32.mrb[0].mxu0
        %v2927 = vadd.f32 %v1934, %v2926
        %2928 = vmatprep.mubr.bf16.mxu0 %v2539
        %2929 = vmatmul.mubr.bf16.gmra.mrb[0].mxu0 %v2538
        %v2930 = vpop.f32.mrb[0].mxu0
        %v2931 = vadd.f32 %v1939, %v2930
        %v2932 = vpop.f32.mrb[0].mxu0
        %v2933 = vadd.f32 %v1939, %v2932
        %v2934 = vpop.f32.mrb[0].mxu0
        %v2935 = vadd.f32 %v1944, %v2934
        %v2936 = vpop.f32.mrb[0].mxu0
        %v2937 = vadd.f32 %v1944, %v2936
        %2938 = vmatprep.mubr.bf16.mxu0 %v2543
        %2939 = vmatmul.mubr.bf16.gmra.mrb[0].mxu0 %v2542
        %v2940 = vpop.f32.mrb[0].mxu0
        %v2941 = vadd.f32 %v1949, %v2940
        %v2942 = vpop.f32.mrb[0].mxu0
        %v2943 = vadd.f32 %v1949, %v2942
        %v2944 = vpop.f32.mrb[0].mxu0
        %v2945 = vadd.f32 %v1954, %v2944
        %v2946 = vpop.f32.mrb[0].mxu0
        %v2947 = vadd.f32 %v1954, %v2946
        %2948 = vmatprep.mubr.bf16.mxu0 %v2547
        %2949 = vmatmul.mubr.bf16.gmra.mrb[0].mxu0 %v2546
        %v2950 = vpop.f32.mrb[0].mxu0
        %v2951 = vadd.f32 %v1959, %v2950
        %v2952 = vpop.f32.mrb[0].mxu0
        %v2953 = vadd.f32 %v1959, %v2952
        %v2954 = vpop.f32.mrb[0].mxu0
        %v2955 = vadd.f32 %v1964, %v2954
        %v2956 = vpop.f32.mrb[0].mxu0
        %v2957 = vadd.f32 %v1964, %v2956
        %2958 = vmatprep.mubr.bf16.mxu0 %v2551
        %2959 = vmatmul.mubr.bf16.gmra.mrb[0].mxu0 %v2550
        %v2960 = vpop.f32.mrb[0].mxu0
        %v2961 = vadd.f32 %v1969, %v2960
        %v2962 = vpop.f32.mrb[0].mxu0
        %v2963 = vadd.f32 %v1969, %v2962
        %v2964 = vpop.f32.mrb[0].mxu0
        %v2965 = vadd.f32 %v1974, %v2964
        %v2966 = vpop.f32.mrb[0].mxu0
        %v2967 = vadd.f32 %v1974, %v2966
        %2968 = vmatprep.mubr.bf16.mxu0 %v2555
        %2969 = vmatmul.mubr.bf16.gmra.mrb[0].mxu0 %v2554
        %v2970 = vpop.f32.mrb[0].mxu0
        %v2971 = vadd.f32 %v1979, %v2970
        %v2972 = vpop.f32.mrb[0].mxu0
        %v2973 = vadd.f32 %v1979, %v2972
        %v2974 = vpop.f32.mrb[0].mxu0
        %v2975 = vadd.f32 %v1984, %v2974
        %v2976 = vpop.f32.mrb[0].mxu0
        %v2977 = vadd.f32 %v1984, %v2976
        %2978 = vmatprep.mubr.bf16.mxu0 %v2559
        %2979 = vmatmul.mubr.bf16.gmra.mrb[0].mxu0 %v2558
        %v2980 = vpop.f32.mrb[0].mxu0
        %v2981 = vadd.f32 %v1989, %v2980
        %v2982 = vpop.f32.mrb[0].mxu0
        %v2983 = vadd.f32 %v1989, %v2982
        %v2984 = vpop.f32.mrb[0].mxu0
        %v2985 = vadd.f32 %v1994, %v2984
        %v2986 = vpop.f32.mrb[0].mxu0
        %v2987 = vadd.f32 %v1994, %v2986
        %2988 = vmatprep.mubr.bf16.mxu0 %v2563
        %2989 = vmatmul.mubr.bf16.gmra.mrb[0].mxu0 %v2562
        %v2990 = vpop.f32.mrb[0].mxu0
        %v2991 = vadd.f32 %v1999, %v2990
        %v2992 = vpop.f32.mrb[0].mxu0
        %v2993 = vadd.f32 %v1999, %v2992
        %v2994 = vpop.f32.mrb[0].mxu0
        %v2995 = vadd.f32 %v2004, %v2994
        %v2996 = vpop.f32.mrb[0].mxu0
        %v2997 = vadd.f32 %v2004, %v2996
        %2998 = vmatprep.mubr.bf16.mxu0 %v2567
        %2999 = vmatmul.mubr.bf16.gmra.mrb[0].mxu0 %v2566
        %v3000 = vpop.f32.mrb[0].mxu0
        %v3001 = vadd.f32 %v2009, %v3000
        %v3002 = vpop.f32.mrb[0].mxu0
        %v3003 = vadd.f32 %v2009, %v3002
        %v3004 = vpop.f32.mrb[0].mxu0
        %v3005 = vadd.f32 %v2014, %v3004
        %v3006 = vpop.f32.mrb[0].mxu0
        %v3007 = vadd.f32 %v2014, %v3006
        %3008 = vmatprep.mubr.bf16.mxu0 %v2571
        %3009 = vmatmul.mubr.bf16.gmra.mrb[0].mxu0 %v2570
        %v3010 = vpop.f32.mrb[0].mxu0
        %v3011 = vadd.f32 %v2019, %v3010
        %v3012 = vpop.f32.mrb[0].mxu0
        %v3013 = vadd.f32 %v2019, %v3012
        %v3014 = vpop.f32.mrb[0].mxu0
        %v3015 = vadd.f32 %v2024, %v3014
        %v3016 = vpop.f32.mrb[0].mxu0
        %v3017 = vadd.f32 %v2024, %v3016
        %3018 = vmatprep.mubr.bf16.mxu0 %v2575
        %3019 = vmatmul.mubr.bf16.gmra.mrb[0].mxu0 %v2574
        %v3020 = vpop.f32.mrb[0].mxu0
        %v3021 = vadd.f32 %v2029, %v3020
        %v3022 = vpop.f32.mrb[0].mxu0
        %v3023 = vadd.f32 %v2029, %v3022
        %v3024 = vpop.f32.mrb[0].mxu0
        %v3025 = vadd.f32 %v2034, %v3024
        %v3026 = vpop.f32.mrb[0].mxu0
        %v3027 = vadd.f32 %v2034, %v3026
        %3028 = vmatprep.mubr.bf16.mxu0 %v2579
        %3029 = vmatmul.mubr.bf16.gmra.mrb[0].mxu0 %v2578
        %v3030 = vpop.f32.mrb[0].mxu0
        %v3031 = vadd.f32 %v2039, %v3030
        %v3032 = vpop.f32.mrb[0].mxu0
        %v3033 = vadd.f32 %v2039, %v3032
        %v3034 = vpop.f32.mrb[0].mxu0
        %v3035 = vadd.f32 %v2044, %v3034
        %v3036 = vpop.f32.mrb[0].mxu0
        %v3037 = vadd.f32 %v2044, %v3036
        %3038 = vmatprep.mubr.bf16.mxu0 %v2583
        %3039 = vmatmul.mubr.bf16.gmra.mrb[0].mxu0 %v2582
        %v3040 = vpop.f32.mrb[0].mxu0
        %v3041 = vadd.f32 %v2049, %v3040
        %v3042 = vpop.f32.mrb[0].mxu0
        %v3043 = vadd.f32 %v2049, %v3042
        %v3044 = vpop.f32.mrb[0].mxu0
        %v3045 = vadd.f32 %v2054, %v3044
        %v3046 = vpop.f32.mrb[0].mxu0
        %v3047 = vadd.f32 %v2054, %v3046
        %3048 = vmatprep.mubr.bf16.mxu0 %v2587
        %3049 = vmatmul.mubr.bf16.gmra.mrb[0].mxu0 %v2586
        %v3050 = vpop.f32.mrb[0].mxu0
        %v3051 = vadd.f32 %v2059, %v3050
        %v3052 = vpop.f32.mrb[0].mxu0
        %v3053 = vadd.f32 %v2059, %v3052
        %v3054 = vpop.f32.mrb[0].mxu0
        %v3055 = vadd.f32 %v2064, %v3054
        %v3056 = vpop.f32.mrb[0].mxu0
        %v3057 = vadd.f32 %v2064, %v3056
        %3058 = vmatprep.mubr.bf16.mxu0 %v2591
        %3059 = vmatmul.mubr.bf16.gmra.mrb[0].mxu0 %v2590
        %v3060 = vpop.f32.mrb[0].mxu0
        %v3061 = vadd.f32 %v2069, %v3060
        %v3062 = vpop.f32.mrb[0].mxu0
        %v3063 = vadd.f32 %v2069, %v3062
        %v3064 = vpop.f32.mrb[0].mxu0
        %v3065 = vadd.f32 %v2074, %v3064
        %v3066 = vpop.f32.mrb[0].mxu0
        %v3067 = vadd.f32 %v2074, %v3066
        %3068 = vmatprep.mubr.bf16.mxu0 %v2595
        %3069 = vmatmul.mubr.bf16.gmra.mrb[0].mxu0 %v2594
        %v3070 = vpop.f32.mrb[0].mxu0
        %v3071 = vadd.f32 %v2079, %v3070
        %v3072 = vpop.f32.mrb[0].mxu0
        %v3073 = vadd.f32 %v2079, %v3072
        %v3074 = vpop.f32.mrb[0].mxu0
        %v3075 = vadd.f32 %v2084, %v3074
        %v3076 = vpop.f32.mrb[0].mxu0
        %v3077 = vadd.f32 %v2084, %v3076
        %3078 = vdwg.mxu0
        %3079 = vmatprep.subr.bf16.mxu0 %v1543
        %3080 = vmatpush1.bf16.msra.mxu0 %v1542
        %3081 = vmatprep.subr.bf16.mxu0 %v1545
        %3082 = vmatpush1.bf16.msra.mxu0 %v1544
        %3083 = vmatprep.subr.bf16.mxu0 %v1547
        %3084 = vmatpush1.bf16.msra.mxu0 %v1546
        %3085 = vmatprep.subr.bf16.mxu0 %v1549
        %3086 = vmatpush1.bf16.msra.mxu0 %v1548
        %3087 = vmatprep.subr.bf16.mxu0 %v1551
        %3088 = vmatpush1.bf16.msra.mxu0 %v1550
        %3089 = vmatprep.subr.bf16.mxu0 %v1553
        %3090 = vmatpush1.bf16.msra.mxu0 %v1552
        %3091 = vmatprep.subr.bf16.mxu0 %v1555
        %3092 = vmatpush1.bf16.msra.mxu0 %v1554
        %3093 = vmatprep.subr.bf16.mxu0 %v1557
        %3094 = vmatpush1.bf16.msra.mxu0 %v1556
        %3095 = vmatprep.subr.bf16.mxu0 %v1559
        %3096 = vmatpush1.bf16.msra.mxu0 %v1558
        %3097 = vmatprep.subr.bf16.mxu0 %v1561
        %3098 = vmatpush1.bf16.msra.mxu0 %v1560
        %3099 = vmatprep.subr.bf16.mxu0 %v1563
        %3100 = vmatpush1.bf16.msra.mxu0 %v1562
        %3101 = vmatprep.subr.bf16.mxu0 %v1565
        %3102 = vmatpush1.bf16.msra.mxu0 %v1564
        %3103 = vmatprep.subr.bf16.mxu0 %v1567
        %3104 = vmatpush1.bf16.msra.mxu0 %v1566
        %3105 = vmatprep.subr.bf16.mxu0 %v1569
        %3106 = vmatpush1.bf16.msra.mxu0 %v1568
        %3107 = vmatprep.subr.bf16.mxu0 %v1571
        %3108 = vmatpush1.bf16.msra.mxu0 %v1570
        %3109 = vmatprep.subr.bf16.mxu0 %v1573
        %3110 = vmatpush1.bf16.msra.mxu0 %v1572
        %3111 = vmatprep.mubr.bf16.mxu0 %v2473
        %3112 = vmatmul.mubr.bf16.gmra.mrb[0].mxu0 %v2472
        %v3113 = vpop.f32.mrb[0].mxu0
        %v3114 = vadd.f32 %v2761, %v3113
        %v3115 = vpop.f32.mrb[0].mxu0
        %v3116 = vadd.f32 %v2763, %v3115
        %v3117 = vpop.f32.mrb[0].mxu0
        %v3118 = vadd.f32 %v2765, %v3117
        %v3119 = vpop.f32.mrb[0].mxu0
        %v3120 = vadd.f32 %v2767, %v3119
        %3121 = vmatprep.mubr.bf16.mxu0 %v2477
        %3122 = vmatmul.mubr.bf16.gmra.mrb[0].mxu0 %v2476
        %v3123 = vpop.f32.mrb[0].mxu0
        %v3124 = vadd.f32 %v2771, %v3123
        %v3125 = vpop.f32.mrb[0].mxu0
        %v3126 = vadd.f32 %v2773, %v3125
        %v3127 = vpop.f32.mrb[0].mxu0
        %v3128 = vadd.f32 %v2775, %v3127
        %v3129 = vpop.f32.mrb[0].mxu0
        %v3130 = vadd.f32 %v2777, %v3129
        %3131 = vmatprep.mubr.bf16.mxu0 %v2481
        %3132 = vmatmul.mubr.bf16.gmra.mrb[0].mxu0 %v2480
        %v3133 = vpop.f32.mrb[0].mxu0
        %v3134 = vadd.f32 %v2781, %v3133
        %v3135 = vpop.f32.mrb[0].mxu0
        %v3136 = vadd.f32 %v2783, %v3135
        %v3137 = vpop.f32.mrb[0].mxu0
        %v3138 = vadd.f32 %v2785, %v3137
        %v3139 = vpop.f32.mrb[0].mxu0
        %v3140 = vadd.f32 %v2787, %v3139
        %3141 = vmatprep.mubr.bf16.mxu0 %v2485
        %3142 = vmatmul.mubr.bf16.gmra.mrb[0].mxu0 %v2484
        %v3143 = vpop.f32.mrb[0].mxu0
        %v3144 = vadd.f32 %v2791, %v3143
        %v3145 = vpop.f32.mrb[0].mxu0
        %v3146 = vadd.f32 %v2793, %v3145
        %v3147 = vpop.f32.mrb[0].mxu0
        %v3148 = vadd.f32 %v2795, %v3147
        %v3149 = vpop.f32.mrb[0].mxu0
        %v3150 = vadd.f32 %v2797, %v3149
        %3151 = vmatprep.mubr.bf16.mxu0 %v2489
        %3152 = vmatmul.mubr.bf16.gmra.mrb[0].mxu0 %v2488
        %v3153 = vpop.f32.mrb[0].mxu0
        %v3154 = vadd.f32 %v2801, %v3153
        %v3155 = vpop.f32.mrb[0].mxu0
        %v3156 = vadd.f32 %v2803, %v3155
        %v3157 = vpop.f32.mrb[0].mxu0
        %v3158 = vadd.f32 %v2805, %v3157
        %v3159 = vpop.f32.mrb[0].mxu0
        %v3160 = vadd.f32 %v2807, %v3159
        %3161 = vmatprep.mubr.bf16.mxu0 %v2493
        %3162 = vmatmul.mubr.bf16.gmra.mrb[0].mxu0 %v2492
        %v3163 = vpop.f32.mrb[0].mxu0
        %v3164 = vadd.f32 %v2811, %v3163
        %v3165 = vpop.f32.mrb[0].mxu0
        %v3166 = vadd.f32 %v2813, %v3165
        %v3167 = vpop.f32.mrb[0].mxu0
        %v3168 = vadd.f32 %v2815, %v3167
        %v3169 = vpop.f32.mrb[0].mxu0
        %v3170 = vadd.f32 %v2817, %v3169
        %3171 = vmatprep.mubr.bf16.mxu0 %v2497
        %3172 = vmatmul.mubr.bf16.gmra.mrb[0].mxu0 %v2496
        %v3173 = vpop.f32.mrb[0].mxu0
        %v3174 = vadd.f32 %v2821, %v3173
        %v3175 = vpop.f32.mrb[0].mxu0
        %v3176 = vadd.f32 %v2823, %v3175
        %v3177 = vpop.f32.mrb[0].mxu0
        %v3178 = vadd.f32 %v2825, %v3177
        %v3179 = vpop.f32.mrb[0].mxu0
        %v3180 = vadd.f32 %v2827, %v3179
        %3181 = vmatprep.mubr.bf16.mxu0 %v2501
        %3182 = vmatmul.mubr.bf16.gmra.mrb[0].mxu0 %v2500
        %v3183 = vpop.f32.mrb[0].mxu0
        %v3184 = vadd.f32 %v2831, %v3183
        %v3185 = vpop.f32.mrb[0].mxu0
        %v3186 = vadd.f32 %v2833, %v3185
        %v3187 = vpop.f32.mrb[0].mxu0
        %v3188 = vadd.f32 %v2835, %v3187
        %v3189 = vpop.f32.mrb[0].mxu0
        %v3190 = vadd.f32 %v2837, %v3189
        %3191 = vmatprep.mubr.bf16.mxu0 %v2505
        %3192 = vmatmul.mubr.bf16.gmra.mrb[0].mxu0 %v2504
        %v3193 = vpop.f32.mrb[0].mxu0
        %v3194 = vadd.f32 %v2841, %v3193
        %v3195 = vpop.f32.mrb[0].mxu0
        %v3196 = vadd.f32 %v2843, %v3195
        %v3197 = vpop.f32.mrb[0].mxu0
        %v3198 = vadd.f32 %v2845, %v3197
        %v3199 = vpop.f32.mrb[0].mxu0
        %v3200 = vadd.f32 %v2847, %v3199
        %3201 = vmatprep.mubr.bf16.mxu0 %v2509
        %3202 = vmatmul.mubr.bf16.gmra.mrb[0].mxu0 %v2508
        %v3203 = vpop.f32.mrb[0].mxu0
        %v3204 = vadd.f32 %v2851, %v3203
        %v3205 = vpop.f32.mrb[0].mxu0
        %v3206 = vadd.f32 %v2853, %v3205
        %v3207 = vpop.f32.mrb[0].mxu0
        %v3208 = vadd.f32 %v2855, %v3207
        %v3209 = vpop.f32.mrb[0].mxu0
        %v3210 = vadd.f32 %v2857, %v3209
        %3211 = vmatprep.mubr.bf16.mxu0 %v2513
        %3212 = vmatmul.mubr.bf16.gmra.mrb[0].mxu0 %v2512
        %v3213 = vpop.f32.mrb[0].mxu0
        %v3214 = vadd.f32 %v2861, %v3213
        %v3215 = vpop.f32.mrb[0].mxu0
        %v3216 = vadd.f32 %v2863, %v3215
        %v3217 = vpop.f32.mrb[0].mxu0
        %v3218 = vadd.f32 %v2865, %v3217
        %v3219 = vpop.f32.mrb[0].mxu0
        %v3220 = vadd.f32 %v2867, %v3219
        %3221 = vmatprep.mubr.bf16.mxu0 %v2517
        %3222 = vmatmul.mubr.bf16.gmra.mrb[0].mxu0 %v2516
        %v3223 = vpop.f32.mrb[0].mxu0
        %v3224 = vadd.f32 %v2871, %v3223
        %v3225 = vpop.f32.mrb[0].mxu0
        %v3226 = vadd.f32 %v2873, %v3225
        %v3227 = vpop.f32.mrb[0].mxu0
        %v3228 = vadd.f32 %v2875, %v3227
        %v3229 = vpop.f32.mrb[0].mxu0
        %v3230 = vadd.f32 %v2877, %v3229
        %3231 = vmatprep.mubr.bf16.mxu0 %v2521
        %3232 = vmatmul.mubr.bf16.gmra.mrb[0].mxu0 %v2520
        %v3233 = vpop.f32.mrb[0].mxu0
        %v3234 = vadd.f32 %v2881, %v3233
        %v3235 = vpop.f32.mrb[0].mxu0
        %v3236 = vadd.f32 %v2883, %v3235
        %v3237 = vpop.f32.mrb[0].mxu0
        %v3238 = vadd.f32 %v2885, %v3237
        %v3239 = vpop.f32.mrb[0].mxu0
        %v3240 = vadd.f32 %v2887, %v3239
        %3241 = vmatprep.mubr.bf16.mxu0 %v2525
        %3242 = vmatmul.mubr.bf16.gmra.mrb[0].mxu0 %v2524
        %v3243 = vpop.f32.mrb[0].mxu0
        %v3244 = vadd.f32 %v2891, %v3243
        %v3245 = vpop.f32.mrb[0].mxu0
        %v3246 = vadd.f32 %v2893, %v3245
        %v3247 = vpop.f32.mrb[0].mxu0
        %v3248 = vadd.f32 %v2895, %v3247
        %v3249 = vpop.f32.mrb[0].mxu0
        %v3250 = vadd.f32 %v2897, %v3249
        %3251 = vmatprep.mubr.bf16.mxu0 %v2529
        %3252 = vmatmul.mubr.bf16.gmra.mrb[0].mxu0 %v2528
        %v3253 = vpop.f32.mrb[0].mxu0
        %v3254 = vadd.f32 %v2901, %v3253
        %v3255 = vpop.f32.mrb[0].mxu0
        %v3256 = vadd.f32 %v2903, %v3255
        %v3257 = vpop.f32.mrb[0].mxu0
        %v3258 = vadd.f32 %v2905, %v3257
        %v3259 = vpop.f32.mrb[0].mxu0
        %v3260 = vadd.f32 %v2907, %v3259
        %3261 = vmatprep.mubr.bf16.mxu0 %v2533
        %3262 = vmatmul.mubr.bf16.gmra.mrb[0].mxu0 %v2532
        %v3263 = vpop.f32.mrb[0].mxu0
        %v3264 = vadd.f32 %v2911, %v3263
        %v3265 = vpop.f32.mrb[0].mxu0
        %v3266 = vadd.f32 %v2913, %v3265
        %v3267 = vpop.f32.mrb[0].mxu0
        %v3268 = vadd.f32 %v2915, %v3267
        %v3269 = vpop.f32.mrb[0].mxu0
        %v3270 = vadd.f32 %v2917, %v3269
        %3271 = vmatprep.mubr.bf16.mxu0 %v2537
        %3272 = vmatmul.mubr.bf16.gmra.mrb[0].mxu0 %v2536
        %v3273 = vpop.f32.mrb[0].mxu0
        %v3274 = vadd.f32 %v2921, %v3273
        %v3275 = vpop.f32.mrb[0].mxu0
        %v3276 = vadd.f32 %v2923, %v3275
        %v3277 = vpop.f32.mrb[0].mxu0
        %v3278 = vadd.f32 %v2925, %v3277
        %v3279 = vpop.f32.mrb[0].mxu0
        %v3280 = vadd.f32 %v2927, %v3279
        %3281 = vmatprep.mubr.bf16.mxu0 %v2541
        %3282 = vmatmul.mubr.bf16.gmra.mrb[0].mxu0 %v2540
        %v3283 = vpop.f32.mrb[0].mxu0
        %v3284 = vadd.f32 %v2931, %v3283
        %v3285 = vpop.f32.mrb[0].mxu0
        %v3286 = vadd.f32 %v2933, %v3285
        %v3287 = vpop.f32.mrb[0].mxu0
        %v3288 = vadd.f32 %v2935, %v3287
        %v3289 = vpop.f32.mrb[0].mxu0
        %v3290 = vadd.f32 %v2937, %v3289
        %3291 = vmatprep.mubr.bf16.mxu0 %v2545
        %3292 = vmatmul.mubr.bf16.gmra.mrb[0].mxu0 %v2544
        %v3293 = vpop.f32.mrb[0].mxu0
        %v3294 = vadd.f32 %v2941, %v3293
        %v3295 = vpop.f32.mrb[0].mxu0
        %v3296 = vadd.f32 %v2943, %v3295
        %v3297 = vpop.f32.mrb[0].mxu0
        %v3298 = vadd.f32 %v2945, %v3297
        %v3299 = vpop.f32.mrb[0].mxu0
        %v3300 = vadd.f32 %v2947, %v3299
        %3301 = vmatprep.mubr.bf16.mxu0 %v2549
        %3302 = vmatmul.mubr.bf16.gmra.mrb[0].mxu0 %v2548
        %v3303 = vpop.f32.mrb[0].mxu0
        %v3304 = vadd.f32 %v2951, %v3303
        %v3305 = vpop.f32.mrb[0].mxu0
        %v3306 = vadd.f32 %v2953, %v3305
        %v3307 = vpop.f32.mrb[0].mxu0
        %v3308 = vadd.f32 %v2955, %v3307
        %v3309 = vpop.f32.mrb[0].mxu0
        %v3310 = vadd.f32 %v2957, %v3309
        %3311 = vmatprep.mubr.bf16.mxu0 %v2553
        %3312 = vmatmul.mubr.bf16.gmra.mrb[0].mxu0 %v2552
        %v3313 = vpop.f32.mrb[0].mxu0
        %v3314 = vadd.f32 %v2961, %v3313
        %v3315 = vpop.f32.mrb[0].mxu0
        %v3316 = vadd.f32 %v2963, %v3315
        %v3317 = vpop.f32.mrb[0].mxu0
        %v3318 = vadd.f32 %v2965, %v3317
        %v3319 = vpop.f32.mrb[0].mxu0
        %v3320 = vadd.f32 %v2967, %v3319
        %3321 = vmatprep.mubr.bf16.mxu0 %v2557
        %3322 = vmatmul.mubr.bf16.gmra.mrb[0].mxu0 %v2556
        %v3323 = vpop.f32.mrb[0].mxu0
        %v3324 = vadd.f32 %v2971, %v3323
        %v3325 = vpop.f32.mrb[0].mxu0
        %v3326 = vadd.f32 %v2973, %v3325
        %v3327 = vpop.f32.mrb[0].mxu0
        %v3328 = vadd.f32 %v2975, %v3327
        %v3329 = vpop.f32.mrb[0].mxu0
        %v3330 = vadd.f32 %v2977, %v3329
        %3331 = vmatprep.mubr.bf16.mxu0 %v2561
        %3332 = vmatmul.mubr.bf16.gmra.mrb[0].mxu0 %v2560
        %v3333 = vpop.f32.mrb[0].mxu0
        %v3334 = vadd.f32 %v2981, %v3333
        %v3335 = vpop.f32.mrb[0].mxu0
        %v3336 = vadd.f32 %v2983, %v3335
        %v3337 = vpop.f32.mrb[0].mxu0
        %v3338 = vadd.f32 %v2985, %v3337
        %v3339 = vpop.f32.mrb[0].mxu0
        %v3340 = vadd.f32 %v2987, %v3339
        %3341 = vmatprep.mubr.bf16.mxu0 %v2565
        %3342 = vmatmul.mubr.bf16.gmra.mrb[0].mxu0 %v2564
        %v3343 = vpop.f32.mrb[0].mxu0
        %v3344 = vadd.f32 %v2991, %v3343
        %v3345 = vpop.f32.mrb[0].mxu0
        %v3346 = vadd.f32 %v2993, %v3345
        %v3347 = vpop.f32.mrb[0].mxu0
        %v3348 = vadd.f32 %v2995, %v3347
        %v3349 = vpop.f32.mrb[0].mxu0
        %v3350 = vadd.f32 %v2997, %v3349
        %3351 = vmatprep.mubr.bf16.mxu0 %v2569
        %3352 = vmatmul.mubr.bf16.gmra.mrb[0].mxu0 %v2568
        %v3353 = vpop.f32.mrb[0].mxu0
        %v3354 = vadd.f32 %v3001, %v3353
        %v3355 = vpop.f32.mrb[0].mxu0
        %v3356 = vadd.f32 %v3003, %v3355
        %v3357 = vpop.f32.mrb[0].mxu0
        %v3358 = vadd.f32 %v3005, %v3357
        %v3359 = vpop.f32.mrb[0].mxu0
        %v3360 = vadd.f32 %v3007, %v3359
        %3361 = vmatprep.mubr.bf16.mxu0 %v2573
        %3362 = vmatmul.mubr.bf16.gmra.mrb[0].mxu0 %v2572
        %v3363 = vpop.f32.mrb[0].mxu0
        %v3364 = vadd.f32 %v3011, %v3363
        %v3365 = vpop.f32.mrb[0].mxu0
        %v3366 = vadd.f32 %v3013, %v3365
        %v3367 = vpop.f32.mrb[0].mxu0
        %v3368 = vadd.f32 %v3015, %v3367
        %v3369 = vpop.f32.mrb[0].mxu0
        %v3370 = vadd.f32 %v3017, %v3369
        %3371 = vmatprep.mubr.bf16.mxu0 %v2577
        %3372 = vmatmul.mubr.bf16.gmra.mrb[0].mxu0 %v2576
        %v3373 = vpop.f32.mrb[0].mxu0
        %v3374 = vadd.f32 %v3021, %v3373
        %v3375 = vpop.f32.mrb[0].mxu0
        %v3376 = vadd.f32 %v3023, %v3375
        %v3377 = vpop.f32.mrb[0].mxu0
        %v3378 = vadd.f32 %v3025, %v3377
        %v3379 = vpop.f32.mrb[0].mxu0
        %v3380 = vadd.f32 %v3027, %v3379
        %3381 = vmatprep.mubr.bf16.mxu0 %v2581
        %3382 = vmatmul.mubr.bf16.gmra.mrb[0].mxu0 %v2580
        %v3383 = vpop.f32.mrb[0].mxu0
        %v3384 = vadd.f32 %v3031, %v3383
        %v3385 = vpop.f32.mrb[0].mxu0
        %v3386 = vadd.f32 %v3033, %v3385
        %v3387 = vpop.f32.mrb[0].mxu0
        %v3388 = vadd.f32 %v3035, %v3387
        %v3389 = vpop.f32.mrb[0].mxu0
        %v3390 = vadd.f32 %v3037, %v3389
        %3391 = vmatprep.mubr.bf16.mxu0 %v2585
        %3392 = vmatmul.mubr.bf16.gmra.mrb[0].mxu0 %v2584
        %v3393 = vpop.f32.mrb[0].mxu0
        %v3394 = vadd.f32 %v3041, %v3393
        %v3395 = vpop.f32.mrb[0].mxu0
        %v3396 = vadd.f32 %v3043, %v3395
        %v3397 = vpop.f32.mrb[0].mxu0
        %v3398 = vadd.f32 %v3045, %v3397
        %v3399 = vpop.f32.mrb[0].mxu0
        %v3400 = vadd.f32 %v3047, %v3399
        %3401 = vmatprep.mubr.bf16.mxu0 %v2589
        %3402 = vmatmul.mubr.bf16.gmra.mrb[0].mxu0 %v2588
        %v3403 = vpop.f32.mrb[0].mxu0
        %v3404 = vadd.f32 %v3051, %v3403
        %v3405 = vpop.f32.mrb[0].mxu0
        %v3406 = vadd.f32 %v3053, %v3405
        %v3407 = vpop.f32.mrb[0].mxu0
        %v3408 = vadd.f32 %v3055, %v3407
        %v3409 = vpop.f32.mrb[0].mxu0
        %v3410 = vadd.f32 %v3057, %v3409
        %3411 = vmatprep.mubr.bf16.mxu0 %v2593
        %3412 = vmatmul.mubr.bf16.gmra.mrb[0].mxu0 %v2592
        %v3413 = vpop.f32.mrb[0].mxu0
        %v3414 = vadd.f32 %v3061, %v3413
        %v3415 = vpop.f32.mrb[0].mxu0
        %v3416 = vadd.f32 %v3063, %v3415
        %v3417 = vpop.f32.mrb[0].mxu0
        %v3418 = vadd.f32 %v3065, %v3417
        %v3419 = vpop.f32.mrb[0].mxu0
        %v3420 = vadd.f32 %v3067, %v3419
        %3421 = vmatprep.mubr.bf16.mxu0 %v2597
        %3422 = vmatmul.mubr.bf16.gmra.mrb[0].mxu0 %v2596
        %v3423 = vpop.f32.mrb[0].mxu0
        %v3424 = vadd.f32 %v3071, %v3423
        %v3425 = vpop.f32.mrb[0].mxu0
        %v3426 = vadd.f32 %v3073, %v3425
        %v3427 = vpop.f32.mrb[0].mxu0
        %v3428 = vadd.f32 %v3075, %v3427
        %v3429 = vpop.f32.mrb[0].mxu0
        %v3430 = vadd.f32 %v3077, %v3429
        %3431 = vdwg.mxu0
        %v3432 = vmax.f32 %v3114, 0.0
        %v3433 = vmax.f32 %v3116, 0.0
        %v3434 = vmax.f32 %v3118, 0.0
        %v3435 = vmax.f32 %v3120, 0.0
        %v3436 = vmax.f32 %v3124, 0.0
        %v3437 = vmax.f32 %v3126, 0.0
        %v3438 = vmax.f32 %v3128, 0.0
        %v3439 = vmax.f32 %v3130, 0.0
        %v3440 = vmax.f32 %v3134, 0.0
        %v3441 = vmax.f32 %v3136, 0.0
        %v3442 = vmax.f32 %v3138, 0.0
        %v3443 = vmax.f32 %v3140, 0.0
        %v3444 = vmax.f32 %v3144, 0.0
        %v3445 = vmax.f32 %v3146, 0.0
        %v3446 = vmax.f32 %v3148, 0.0
        %v3447 = vmax.f32 %v3150, 0.0
        %v3448 = vmax.f32 %v3154, 0.0
        %v3449 = vmax.f32 %v3156, 0.0
        %v3450 = vmax.f32 %v3158, 0.0
        %v3451 = vmax.f32 %v3160, 0.0
        %v3452 = vmax.f32 %v3164, 0.0
        %v3453 = vmax.f32 %v3166, 0.0
        %v3454 = vmax.f32 %v3168, 0.0
        %v3455 = vmax.f32 %v3170, 0.0
        %v3456 = vmax.f32 %v3174, 0.0
        %v3457 = vmax.f32 %v3176, 0.0
        %v3458 = vmax.f32 %v3178, 0.0
        %v3459 = vmax.f32 %v3180, 0.0
        %v3460 = vmax.f32 %v3184, 0.0
        %v3461 = vmax.f32 %v3186, 0.0
        %v3462 = vmax.f32 %v3188, 0.0
        %v3463 = vmax.f32 %v3190, 0.0
        %v3464 = vmax.f32 %v3194, 0.0
        %v3465 = vmax.f32 %v3196, 0.0
        %v3466 = vmax.f32 %v3198, 0.0
        %v3467 = vmax.f32 %v3200, 0.0
        %v3468 = vmax.f32 %v3204, 0.0
        %v3469 = vmax.f32 %v3206, 0.0
        %v3470 = vmax.f32 %v3208, 0.0
        %v3471 = vmax.f32 %v3210, 0.0
        %v3472 = vmax.f32 %v3214, 0.0
        %v3473 = vmax.f32 %v3216, 0.0
        %v3474 = vmax.f32 %v3218, 0.0
        %v3475 = vmax.f32 %v3220, 0.0
        %v3476 = vmax.f32 %v3224, 0.0
        %v3477 = vmax.f32 %v3226, 0.0
        %v3478 = vmax.f32 %v3228, 0.0
        %v3479 = vmax.f32 %v3230, 0.0
        %v3480 = vmax.f32 %v3234, 0.0
        %v3481 = vmax.f32 %v3236, 0.0
        %v3482 = vmax.f32 %v3238, 0.0
        %v3483 = vmax.f32 %v3240, 0.0
        %v3484 = vmax.f32 %v3244, 0.0
        %v3485 = vmax.f32 %v3246, 0.0
        %v3486 = vmax.f32 %v3248, 0.0
        %v3487 = vmax.f32 %v3250, 0.0
        %v3488 = vmax.f32 %v3254, 0.0
        %v3489 = vmax.f32 %v3256, 0.0
        %v3490 = vmax.f32 %v3258, 0.0
        %v3491 = vmax.f32 %v3260, 0.0
        %v3492 = vmax.f32 %v3264, 0.0
        %v3493 = vmax.f32 %v3266, 0.0
        %v3494 = vmax.f32 %v3268, 0.0
        %v3495 = vmax.f32 %v3270, 0.0
        %v3496 = vmax.f32 %v3274, 0.0
        %v3497 = vmax.f32 %v3276, 0.0
        %v3498 = vmax.f32 %v3278, 0.0
        %v3499 = vmax.f32 %v3280, 0.0
        %v3500 = vmax.f32 %v3284, 0.0
        %v3501 = vmax.f32 %v3286, 0.0
        %v3502 = vmax.f32 %v3288, 0.0
        %v3503 = vmax.f32 %v3290, 0.0
        %v3504 = vmax.f32 %v3294, 0.0
        %v3505 = vmax.f32 %v3296, 0.0
        %v3506 = vmax.f32 %v3298, 0.0
        %v3507 = vmax.f32 %v3300, 0.0
        %v3508 = vmax.f32 %v3304, 0.0
        %v3509 = vmax.f32 %v3306, 0.0
        %v3510 = vmax.f32 %v3308, 0.0
        %v3511 = vmax.f32 %v3310, 0.0
        %v3512 = vmax.f32 %v3314, 0.0
        %v3513 = vmax.f32 %v3316, 0.0
        %v3514 = vmax.f32 %v3318, 0.0
        %v3515 = vmax.f32 %v3320, 0.0
        %v3516 = vmax.f32 %v3324, 0.0
        %v3517 = vmax.f32 %v3326, 0.0
        %v3518 = vmax.f32 %v3328, 0.0
        %v3519 = vmax.f32 %v3330, 0.0
        %v3520 = vmax.f32 %v3334, 0.0
        %v3521 = vmax.f32 %v3336, 0.0
        %v3522 = vmax.f32 %v3338, 0.0
        %v3523 = vmax.f32 %v3340, 0.0
        %v3524 = vmax.f32 %v3344, 0.0
        %v3525 = vmax.f32 %v3346, 0.0
        %v3526 = vmax.f32 %v3348, 0.0
        %v3527 = vmax.f32 %v3350, 0.0
        %v3528 = vmax.f32 %v3354, 0.0
        %v3529 = vmax.f32 %v3356, 0.0
        %v3530 = vmax.f32 %v3358, 0.0
        %v3531 = vmax.f32 %v3360, 0.0
        %v3532 = vmax.f32 %v3364, 0.0
        %v3533 = vmax.f32 %v3366, 0.0
        %v3534 = vmax.f32 %v3368, 0.0
        %v3535 = vmax.f32 %v3370, 0.0
        %v3536 = vmax.f32 %v3374, 0.0
        %v3537 = vmax.f32 %v3376, 0.0
        %v3538 = vmax.f32 %v3378, 0.0
        %v3539 = vmax.f32 %v3380, 0.0
        %v3540 = vmax.f32 %v3384, 0.0
        %v3541 = vmax.f32 %v3386, 0.0
        %v3542 = vmax.f32 %v3388, 0.0
        %v3543 = vmax.f32 %v3390, 0.0
        %v3544 = vmax.f32 %v3394, 0.0
        %v3545 = vmax.f32 %v3396, 0.0
        %v3546 = vmax.f32 %v3398, 0.0
        %v3547 = vmax.f32 %v3400, 0.0
        %v3548 = vmax.f32 %v3404, 0.0
        %v3549 = vmax.f32 %v3406, 0.0
        %v3550 = vmax.f32 %v3408, 0.0
        %v3551 = vmax.f32 %v3410, 0.0
        %v3552 = vmax.f32 %v3414, 0.0
        %v3553 = vmax.f32 %v3416, 0.0
        %v3554 = vmax.f32 %v3418, 0.0
        %v3555 = vmax.f32 %v3420, 0.0
        %v3556 = vmax.f32 %v3424, 0.0
        %v3557 = vmax.f32 %v3426, 0.0
        %v3558 = vmax.f32 %v3428, 0.0
        %v3559 = vmax.f32 %v3430, 0.0
        %v3560 = vpack.c.bf16 %v3434, %v3432
        %v3561 = vpack.c.bf16 %v3435, %v3433
        %v3562 = vpack.c.bf16 %v3438, %v3436
        %v3563 = vpack.c.bf16 %v3439, %v3437
        %v3564 = vpack.c.bf16 %v3442, %v3440
        %v3565 = vpack.c.bf16 %v3443, %v3441
        %v3566 = vpack.c.bf16 %v3446, %v3444
        %v3567 = vpack.c.bf16 %v3447, %v3445
        %v3568 = vpack.c.bf16 %v3450, %v3448
        %v3569 = vpack.c.bf16 %v3451, %v3449
        %v3570 = vpack.c.bf16 %v3454, %v3452
        %v3571 = vpack.c.bf16 %v3455, %v3453
        %v3572 = vpack.c.bf16 %v3458, %v3456
        %v3573 = vpack.c.bf16 %v3459, %v3457
        %v3574 = vpack.c.bf16 %v3462, %v3460
        %v3575 = vpack.c.bf16 %v3463, %v3461
        %v3576 = vpack.c.bf16 %v3466, %v3464
        %v3577 = vpack.c.bf16 %v3467, %v3465
        %v3578 = vpack.c.bf16 %v3470, %v3468
        %v3579 = vpack.c.bf16 %v3471, %v3469
        %v3580 = vpack.c.bf16 %v3474, %v3472
        %v3581 = vpack.c.bf16 %v3475, %v3473
        %v3582 = vpack.c.bf16 %v3478, %v3476
        %v3583 = vpack.c.bf16 %v3479, %v3477
        %v3584 = vpack.c.bf16 %v3482, %v3480
        %v3585 = vpack.c.bf16 %v3483, %v3481
        %v3586 = vpack.c.bf16 %v3486, %v3484
        %v3587 = vpack.c.bf16 %v3487, %v3485
        %v3588 = vpack.c.bf16 %v3490, %v3488
        %v3589 = vpack.c.bf16 %v3491, %v3489
        %v3590 = vpack.c.bf16 %v3494, %v3492
        %v3591 = vpack.c.bf16 %v3495, %v3493
        %v3592 = vpack.c.bf16 %v3498, %v3496
        %v3593 = vpack.c.bf16 %v3499, %v3497
        %v3594 = vpack.c.bf16 %v3502, %v3500
        %v3595 = vpack.c.bf16 %v3503, %v3501
        %v3596 = vpack.c.bf16 %v3506, %v3504
        %v3597 = vpack.c.bf16 %v3507, %v3505
        %v3598 = vpack.c.bf16 %v3510, %v3508
        %v3599 = vpack.c.bf16 %v3511, %v3509
        %v3600 = vpack.c.bf16 %v3514, %v3512
        %v3601 = vpack.c.bf16 %v3515, %v3513
        %v3602 = vpack.c.bf16 %v3518, %v3516
        %v3603 = vpack.c.bf16 %v3519, %v3517
        %v3604 = vpack.c.bf16 %v3522, %v3520
        %v3605 = vpack.c.bf16 %v3523, %v3521
        %v3606 = vpack.c.bf16 %v3526, %v3524
        %v3607 = vpack.c.bf16 %v3527, %v3525
        %v3608 = vpack.c.bf16 %v3530, %v3528
        %v3609 = vpack.c.bf16 %v3531, %v3529
        %v3610 = vpack.c.bf16 %v3534, %v3532
        %v3611 = vpack.c.bf16 %v3535, %v3533
        %v3612 = vpack.c.bf16 %v3538, %v3536
        %v3613 = vpack.c.bf16 %v3539, %v3537
        %v3614 = vpack.c.bf16 %v3542, %v3540
        %v3615 = vpack.c.bf16 %v3543, %v3541
        %v3616 = vpack.c.bf16 %v3546, %v3544
        %v3617 = vpack.c.bf16 %v3547, %v3545
        %v3618 = vpack.c.bf16 %v3550, %v3548
        %v3619 = vpack.c.bf16 %v3551, %v3549
        %v3620 = vpack.c.bf16 %v3554, %v3552
        %v3621 = vpack.c.bf16 %v3555, %v3553
        %v3622 = vpack.c.bf16 %v3558, %v3556
        %v3623 = vpack.c.bf16 %v3559, %v3557
        %v3624 = vld [vmem:[%s5] sm:$0xf]
        %v3625 = vld [vmem:[#allocation2] sm:$0x1]
        %3627 = vset.pattern.permute.xlu0 0
        %3628 = vperm.xlu0 %3627, %v3625
        %v3629 = vpop.permute.xlu0 %3628
        %v3631 = vlaneseq
        %v3632 = vshrl.u32 %v3631, 7
        %v3633 = vsub.s32 0, %v3632
        %v3634 = vrot.slane %v3629, %v3633
        %v3637 = vunpack.c.l.s4 1966171168
        %v3638 = vunpack.c.0.s8 %v3637
        %v3639 = vlaneseq
        %v3640 = vshrl.u32 %v3639, 7
        %v3641 = vsub.s32 %v3638, %v3640
        %v3642 = vrot.slane %v3624, %v3641
        %v3643 = vcombine.high %v3642, %v3642
        %v3645 = vunpack.c.l.s4 1966171168
        %v3646 = vunpack.c.0.s8 %v3645
        %v3647 = vlaneseq
        %v3648 = vshrl.u32 %v3647, 7
        %v3649 = vsub.s32 %v3646, %v3648
        %v3650 = vrot.slane %v3642, %v3649
        %v3652 = vunpack.c.l.s4 1966171168
        %v3653 = vunpack.c.0.s8 %v3652
        %v3654 = vlaneseq
        %v3655 = vshrl.u32 %v3654, 7
        %v3656 = vsub.s32 %v3653, %v3655
        %v3657 = vrot.slane %v3643, %v3656
        %v3658 = vcombine.high %v3650, %v3650
        %v3659 = vcombine.high %v3657, %v3657
        %3664 = vmatprep.subr.bf16.mxu0 %v3561
        %3665 = vmatpush1.bf16.msra.mxu0 %v3560
        %3666 = vmatprep.subr.bf16.mxu0 %v3563
        %3667 = vmatpush1.bf16.msra.mxu0 %v3562
        %3668 = vmatprep.subr.bf16.mxu0 %v3565
        %3669 = vmatpush1.bf16.msra.mxu0 %v3564
        %3670 = vmatprep.subr.bf16.mxu0 %v3567
        %3671 = vmatpush1.bf16.msra.mxu0 %v3566
        %3672 = vmatprep.subr.bf16.mxu0 %v3569
        %3673 = vmatpush1.bf16.msra.mxu0 %v3568
        %3674 = vmatprep.subr.bf16.mxu0 %v3571
        %3675 = vmatpush1.bf16.msra.mxu0 %v3570
        %3676 = vmatprep.subr.bf16.mxu0 %v3573
        %3677 = vmatpush1.bf16.msra.mxu0 %v3572
        %3678 = vmatprep.subr.bf16.mxu0 %v3575
        %3679 = vmatpush1.bf16.msra.mxu0 %v3574
        %3680 = vmatprep.subr.bf16.mxu0 %v3577
        %3681 = vmatpush1.bf16.msra.mxu0 %v3576
        %3682 = vmatprep.subr.bf16.mxu0 %v3579
        %3683 = vmatpush1.bf16.msra.mxu0 %v3578
        %3684 = vmatprep.subr.bf16.mxu0 %v3581
        %3685 = vmatpush1.bf16.msra.mxu0 %v3580
        %3686 = vmatprep.subr.bf16.mxu0 %v3583
        %3687 = vmatpush1.bf16.msra.mxu0 %v3582
        %3688 = vmatprep.subr.bf16.mxu0 %v3585
        %3689 = vmatpush1.bf16.msra.mxu0 %v3584
        %3690 = vmatprep.subr.bf16.mxu0 %v3587
        %3691 = vmatpush1.bf16.msra.mxu0 %v3586
        %3692 = vmatprep.subr.bf16.mxu0 %v3589
        %3693 = vmatpush1.bf16.msra.mxu0 %v3588
        %3694 = vmatprep.subr.bf16.mxu0 %v3591
        %3695 = vmatpush1.bf16.msra.mxu0 %v3590
        %3696 = vmatprep.mubr.bf16.mxu0 %v3657
        %3697 = vmatmul.mubr.bf16.gmra.mrb[0].mxu0 %v3650
        %v3698 = vpop.f32.mrb[0].mxu0
        %v3699 = vadd.f32 %v3634, %v3698
        %v3700 = vpop.f32.mrb[0].mxu0
        %v3701 = vadd.f32 %v3634, %v3700
        %v3702 = vpop.f32.mrb[0].mxu0
        %v3703 = vpop.f32.mrb[0].mxu0
        %3704 = vdwg.mxu0
        %3705 = vmatprep.subr.bf16.mxu0 %v3593
        %3706 = vmatpush1.bf16.msra.mxu0 %v3592
        %3707 = vmatprep.subr.bf16.mxu0 %v3595
        %3708 = vmatpush1.bf16.msra.mxu0 %v3594
        %3709 = vmatprep.subr.bf16.mxu0 %v3597
        %3710 = vmatpush1.bf16.msra.mxu0 %v3596
        %3711 = vmatprep.subr.bf16.mxu0 %v3599
        %3712 = vmatpush1.bf16.msra.mxu0 %v3598
        %3713 = vmatprep.subr.bf16.mxu0 %v3601
        %3714 = vmatpush1.bf16.msra.mxu0 %v3600
        %3715 = vmatprep.subr.bf16.mxu0 %v3603
        %3716 = vmatpush1.bf16.msra.mxu0 %v3602
        %3717 = vmatprep.subr.bf16.mxu0 %v3605
        %3718 = vmatpush1.bf16.msra.mxu0 %v3604
        %3719 = vmatprep.subr.bf16.mxu0 %v3607
        %3720 = vmatpush1.bf16.msra.mxu0 %v3606
        %3721 = vmatprep.subr.bf16.mxu0 %v3609
        %3722 = vmatpush1.bf16.msra.mxu0 %v3608
        %3723 = vmatprep.subr.bf16.mxu0 %v3611
        %3724 = vmatpush1.bf16.msra.mxu0 %v3610
        %3725 = vmatprep.subr.bf16.mxu0 %v3613
        %3726 = vmatpush1.bf16.msra.mxu0 %v3612
        %3727 = vmatprep.subr.bf16.mxu0 %v3615
        %3728 = vmatpush1.bf16.msra.mxu0 %v3614
        %3729 = vmatprep.subr.bf16.mxu0 %v3617
        %3730 = vmatpush1.bf16.msra.mxu0 %v3616
        %3731 = vmatprep.subr.bf16.mxu0 %v3619
        %3732 = vmatpush1.bf16.msra.mxu0 %v3618
        %3733 = vmatprep.subr.bf16.mxu0 %v3621
        %3734 = vmatpush1.bf16.msra.mxu0 %v3620
        %3735 = vmatprep.subr.bf16.mxu0 %v3623
        %3736 = vmatpush1.bf16.msra.mxu0 %v3622
        %3737 = vmatprep.mubr.bf16.mxu0 %v3659
        %3738 = vmatmul.mubr.bf16.gmra.mrb[0].mxu0 %v3658
        %v3739 = vpop.f32.mrb[0].mxu0
        %v3740 = vadd.f32 %v3699, %v3739
        %v3741 = vpop.f32.mrb[0].mxu0
        %v3742 = vadd.f32 %v3701, %v3741
        %v3743 = vpop.f32.mrb[0].mxu0
        %v3744 = vpop.f32.mrb[0].mxu0
        %3745 = vdwg.mxu0
        %v3748 = vcombine.low %v3740, %v3742
        %v3750 = vunpack.c.l.s4 1966171168
        %v3751 = vunpack.c.0.s8 %v3750
        %v3752 = vlaneseq
        %v3753 = vshrl.u32 %v3752, 7
        %v3754 = vsub.s32 %v3751, %v3753
        %v3755 = vrot.slane %v3748, %v3754
        %v3757 = vunpack.c.l.s4 1966171168
        %v3758 = vunpack.c.0.s8 %v3757
        %v3759 = vlaneseq
        %v3760 = vshrl.u32 %v3759, 7
        %v3761 = vsub.s32 %v3758, %v3760
        %v3762 = vrot.slane %v3755, %v3761
        %v3764 = vlaneseq
        %vm3765 = vcmp.ge.s32.totalorder %v3764, 0
        %vm3766 = vcmp.lt.s32.totalorder %v3764, 256
        %vm3767 = vmand %vm3765, %vm3766
        %3768 = vst.msk [vmem:[%s298] sm:$0x3] %vm3767, %v3762
        %s3769 = sand.u32 %s199, 1
        %s3770 = scalar_lea.sflag [#allocation4], %s3769
        %s3771 = sand.u32 %s199, 1
        %s3772 = smul.addr %s3771, 2
        %s3773 = scalar_lea.vmem [#allocation3], %s3772
        // Predicated region
        $region49: #{tpu_custom_call.1} parent=47 // pred_check
          %p3774 = pneg %p209
        $region50: #{tpu_custom_call.1} parent=47 // pred_check_branch
          %3776 = sbr.rel (%p3774) target = $region52
        $region51: #{tpu_custom_call.1} parent=47 // pred_region
          %s3777 = smul.u32 2, %s28
          %s3779 = ssub.s32 32, 32
          %3780 = vsyncadd %s3770, %s3779
          %s3781 = smul.addr %s27, 2
          %s3782 = sadd.s32 %s3777, %s3781
          %s3783 = smul.addr %s3782, 16
          %s3784 = scalar_lea.hbm %s7, %s3783
          %s3786 = sshll.u32 %s3773, 4
          %s3787 = int_to_ptr.vmem [resolvable:$true] %s3786
          %3789 = dma.vmem_to_hbm [thread:$0]  %s3787, 32, %s3784, %s3770
        $region52: #{tpu_custom_call.1} parent=47 // pred_fallthru
          _
      $region48: #{tpu_custom_call.1} parent=5 // pred_fallthru
        _
      %p3790 = scmp.le.s32.totalorder 2, %s18
      // Predicated region
      $region53: #{tpu_custom_call.1} parent=5 // pred_check
        %p3791 = pneg %p3790
      $region54: #{tpu_custom_call.1} parent=5 // pred_check_branch
        %3793 = sbr.rel (%p3791) target = $region56
      $region55: #{tpu_custom_call.1} parent=5 // pred_region
        %s3794 = ssub.s32 %s18, 2
        // Predicated region
        $region57: #{tpu_custom_call.1} parent=55 // pred_check
          %p3795 = pneg %p215
        $region58: #{tpu_custom_call.1} parent=55 // pred_check_branch
          %3797 = sbr.rel (%p3795) target = $region60
        $region59: #{tpu_custom_call.1} parent=55 // pred_region
          %s3798 = sand.u32 %s200, 1
          %s3799 = scalar_lea.sflag [#allocation4], %s3798
          %s3800 = sand.u32 %s200, 1
          %s3801 = smul.addr %s3800, 2
          %s3802 = scalar_lea.vmem [#allocation3], %s3801
          %3803 = dma.done %s3799, 32
        $region60: #{tpu_custom_call.1} parent=55 // pred_fallthru
          _
      $region56: #{tpu_custom_call.1} parent=5 // pred_fallthru
        _
    $region6: #{tpu_custom_call.1} parent=1 // loop_footer
      %s22 = sadd.s32 1, %s18
    $region7: #{tpu_custom_call.1} parent=1 // loop_footer_branch
      %17 = sbr.rel target = $region3
    $region8: #{tpu_custom_call.1} parent=1 // loop_exit
      _
    %3804 = vsyncpa [#allocation4], 1
    %s3805 = scalar_lea.sflag [#allocation4], 1
    %3806 = vsyncpa %s3805, 1

</llo_original>
